<compile_context>
chip_gen: v7x
topology: tpu7x:2x2x1
jax: 0.10.0
libtpu: 0.0.40
codegen_flags: <defaults>
</compile_context>

<pallas_src>
import functools

import jax
import jax.numpy as jnp
from jax.experimental import pallas as pl
from jax.experimental.pallas import tpu as pltpu


# --------------------------------------------------------------------------- #
# Kernels
# --------------------------------------------------------------------------- #

def _proj_kernel(tf_ref, wi_ref, bi_ref, wj_ref, bj_ref, br_ref,
                 wm_ref, bm_ref, bmsa_ref,
                 emb_i_ref, emb_jb_ref, tfm_ref):
    """Per-residue projections, hoisted out of the pair / MSA kernels.

    emb_i  = tf @ Wi + bi
    emb_jb = tf @ Wj + bj + b_relpos      (relpos bias folded in)
    tfm    = tf @ Wm + bm + b_msa         (msa bias folded in)
    """
    tf = tf_ref[...]
    emb_i_ref[...] = (jnp.dot(tf, wi_ref[...],
                              preferred_element_type=jnp.float32) + bi_ref[...])
    emb_jb_ref[...] = (jnp.dot(tf, wj_ref[...],
                               preferred_element_type=jnp.float32)
                       + bj_ref[...] + br_ref[...])
    tfm_ref[...] = (jnp.dot(tf, wm_ref[...],
                            preferred_element_type=jnp.float32)
                    + bm_ref[...] + bmsa_ref[...])


def _pair_kernel(relpos_k,
                 ri_col_ref, ri_rep_ref, emb_i_ref, emb_jb_ref,
                 wr_ref, rep_ref, out_ref):
    """One (TI, TJ*c_z) tile of the flattened pair embedding.

    out[i, j*c_z + c] = relpos(ri)[i, j, c] + emb_i[i, c] + emb_j[j, c] + biases
    """
    # emb_i replicated along the flattened j axis: [TI, c_z] @ [c_z, TJ*c_z]
    out = jnp.dot(emb_i_ref[...], rep_ref[...],
                  preferred_element_type=jnp.float32)
    out = out + emb_jb_ref[...]                        # [1, TJ*c_z] broadcast

    # relpos (Algorithm 4). For integer residue indices, argmin_b |d - bins_b|
    # over bins arange(-k, k+1) is exactly clip(d, -k, k) + k (no ties).
    d = ri_col_ref[...] - ri_rep_ref[...]              # [TI, TJ*c_z]  (int32)
    idx = jnp.clip(d, -relpos_k, relpos_k) + relpos_k
    for b in range(2 * relpos_k + 1):                  # bin-select on the VPU
        out = out + jnp.where(idx == b, wr_ref[b:b + 1, :], 0.0)

    out_ref[...] = out


def _msa_kernel(msa_ref, w_ref, tfm_ref, out_ref):
    """msa_emb rows = msa @ W_msa + (tf_m + biases), on a 2-D [rows, msa_dim] tile."""
    out_ref[...] = (jnp.dot(msa_ref[...], w_ref[...],
                            preferred_element_type=jnp.float32) + tfm_ref[...])


# --------------------------------------------------------------------------- #
# Wrapper
# --------------------------------------------------------------------------- #

def _largest_divisor_leq(n, cap):
    cap = int(max(1, min(n, cap)))
    for t in range(cap, 0, -1):
        if n % t == 0:
            return t
    return 1


@functools.partial(jax.jit, static_argnames=("relpos_k", "ti", "tj", "tc"))
def input_embedder_forward(tf, ri, msa, params, relpos_k, ti=None, tj=None, tc=None):
    n_res, _ = tf.shape
    n_clust, _, msa_dim = msa.shape
    c_z = params["w_tf_z_i"].shape[1]
    c_m = params["w_tf_m"].shape[1]
    no_bins = 2 * relpos_k + 1
    f32 = jnp.float32

    tf = tf.astype(f32)
    msa = msa.astype(f32)

    # ---- tile selection (legal + VMEM-budgeted on all generations) ----------
    if ti is None:
        ti = _largest_divisor_leq(n_res, 128)
        if ti % 8 != 0 and ti != n_res:
            ti = n_res
    if tj is None:
        max_tj = max(1, (2 * 1024 * 1024) // (ti * c_z * 4))
        tj = _largest_divisor_leq(n_res, max_tj)
        if (tj * c_z) % 128 != 0 and tj != n_res:
            tj = n_res
    assert n_res % ti == 0 and n_res % tj == 0
    tjc = tj * c_z

    # ---- 1) per-residue projections (one small un-gridded kernel) -----------
    vmem = pl.BlockSpec(memory_space=pltpu.MemorySpace.VMEM)
    emb_i, emb_jb, tfm = pl.pallas_call(
        _proj_kernel,
        out_shape=(jax.ShapeDtypeStruct((n_res, c_z), f32),
                   jax.ShapeDtypeStruct((n_res, c_z), f32),
                   jax.ShapeDtypeStruct((n_res, c_m), f32)),
        in_specs=[vmem] * 9,
        out_specs=(vmem, vmem, vmem),
        compiler_params=pltpu.CompilerParams(vmem_limit_bytes=32 * 1024 * 1024),
    )(tf,
      params["w_tf_z_i"].astype(f32), params["b_tf_z_i"].astype(f32),
      params["w_tf_z_j"].astype(f32), params["b_tf_z_j"].astype(f32),
      params["b_relpos"].astype(f32),
      params["w_tf_m"].astype(f32), params["b_tf_m"].astype(f32),
      params["b_msa_m"].astype(f32))

    # ---- 2) pair embedding, tiled grid, lane-dense flat layout --------------
    ri_i32 = ri.astype(jnp.int32)
    ri_col = ri_i32.reshape(n_res, 1)
    ri_rep = jnp.repeat(ri_i32, c_z).reshape(1, n_res * c_z)   # [1, N*c_z]
    emb_jb_flat = emb_jb.reshape(1, n_res * c_z)               # [1, N*c_z]
    wr_flat = jnp.tile(params["w_relpos"].astype(f32), (1, tj))  # [no_bins, tjc]
    rep_mat = jnp.tile(jnp.eye(c_z, dtype=f32), (1, tj))         # [c_z, tjc]

    pair_flat = pl.pallas_call(
        functools.partial(_pair_kernel, relpos_k),
        out_shape=jax.ShapeDtypeStruct((n_res, n_res * c_z), f32),
        grid=(n_res // ti, n_res // tj),
        in_specs=[
            pl.BlockSpec((ti, 1), lambda i, j: (i, 0)),        # ri rows
            pl.BlockSpec((1, tjc), lambda i, j: (0, j)),       # ri cols (flat)
            pl.BlockSpec((ti, c_z), lambda i, j: (i, 0)),      # emb_i
            pl.BlockSpec((1, tjc), lambda i, j: (0, j)),       # emb_j + biases
            pl.BlockSpec((no_bins, tjc), lambda i, j: (0, 0)),  # relpos weights
            pl.BlockSpec((c_z, tjc), lambda i, j: (0, 0)),      # replication mat
        ],
        out_specs=pl.BlockSpec((ti, tjc), lambda i, j: (i, j)),
        compiler_params=pltpu.CompilerParams(
            dimension_semantics=("parallel", "parallel"),
            vmem_limit_bytes=32 * 1024 * 1024),
    )(ri_col, ri_rep, emb_i, emb_jb_flat, wr_flat, rep_mat)
    pair_emb = pair_flat.reshape(n_res, n_res, c_z)

    # ---- 3) MSA embedding, gridded over cluster tiles ------------------------
    dp = ((msa_dim + 7) // 8) * 8                      # sublane-align contraction
    pad = dp - msa_dim
    w_msa = params["w_msa_m"].astype(f32)
    if pad:
        msa_p = jnp.pad(msa, ((0, 0), (0, 0), (0, pad)))
        w_msa = jnp.pad(w_msa, ((0, pad), (0, 0)))
    else:
        msa_p = msa
    msa2d = msa_p.reshape(n_clust * n_res, dp)

    if tc is None:
        cap = max(1, (4 * 1024 * 1024) // (n_res * (dp + c_m) * 4))
        tc = _largest_divisor_leq(n_clust, cap)
        if (tc * n_res) % 8 != 0 and tc != n_clust:
            tc = n_clust
    assert n_clust % tc == 0
    rows = tc * n_res
    tfm_rep = jnp.tile(tfm, (tc, 1))                   # [rows, c_m]

    msa_flat = pl.pallas_call(
        _msa_kernel,
        out_shape=jax.ShapeDtypeStruct((n_clust * n_res, c_m), f32),
        grid=(n_clust // tc,),
        in_specs=[
            pl.BlockSpec((rows, dp), lambda c: (c, 0)),
            pl.BlockSpec((dp, c_m), lambda c: (0, 0)),
            pl.BlockSpec((rows, c_m), lambda c: (0, 0)),
        ],
        out_specs=pl.BlockSpec((rows, c_m), lambda c: (c, 0)),
        compiler_params=pltpu.CompilerParams(
            dimension_semantics=("parallel",),
            vmem_limit_bytes=32 * 1024 * 1024),
    )(msa2d, w_msa, tfm_rep)
    msa_emb = msa_flat.reshape(n_clust, n_res, c_m)

    return msa_emb, pair_emb


# --------------------------------------------------------------------------- #
# Params & pure-JAX reference
# --------------------------------------------------------------------------- #

def init_params(key, tf_dim, msa_dim, c_z, c_m, relpos_k):
    """Lecun-style weights. The module's default init zeroes biases; we use
    small random biases here to actually exercise the bias paths."""
    no_bins = 2 * relpos_k + 1
    ks = jax.random.split(key, 10)

    def lecun(k, fan_in, fan_out):
        return jax.random.normal(k, (fan_in, fan_out), jnp.float32) / jnp.sqrt(
            jnp.float32(fan_in))

    def bias(k, dim):
        return 0.1 * jax.random.normal(k, (1, dim), jnp.float32)

    return {
        "w_tf_z_i": lecun(ks[0], tf_dim, c_z), "b_tf_z_i": bias(ks[5], c_z),
        "w_tf_z_j": lecun(ks[1], tf_dim, c_z), "b_tf_z_j": bias(ks[6], c_z),
        "w_tf_m":   lecun(ks[2], tf_dim, c_m), "b_tf_m":   bias(ks[7], c_m),
        "w_msa_m":  lecun(ks[3], msa_dim, c_m), "b_msa_m": bias(ks[8], c_m),
        "w_relpos": lecun(ks[4], no_bins, c_z), "b_relpos": bias(ks[9], c_z),
    }


def reference_forward(tf, ri, msa, params, relpos_k):
    hp = jax.lax.Precision.HIGHEST
    emb_i = jnp.dot(tf, params["w_tf_z_i"], precision=hp) + params["b_tf_z_i"][0]
    emb_j = jnp.dot(tf, params["w_tf_z_j"], precision=hp) + params["b_tf_z_j"][0]
    ri_f = ri.astype(tf.dtype)
    d = ri_f[:, None] - ri_f[None, :]
    bins = jnp.arange(-relpos_k, relpos_k + 1, dtype=tf.dtype)
    idx = jnp.argmin(jnp.abs(d[..., None] - bins), axis=-1)
    one_hot = jax.nn.one_hot(idx, 2 * relpos_k + 1, dtype=tf.dtype)
    relpos = jnp.dot(one_hot, params["w_relpos"], precision=hp) + params["b_relpos"][0]
    pair = relpos + emb_i[:, None, :] + emb_j[None, :, :]
    tf_m = jnp.dot(tf, params["w_tf_m"], precision=hp) + params["b_tf_m"][0]
    msa_emb = (jnp.dot(msa, params["w_msa_m"], precision=hp)
               + params["b_msa_m"][0] + tf_m[None, :, :])
    return msa_emb, pair


# --------------------------------------------------------------------------- #
# Main
# --------------------------------------------------------------------------- #

if __name__ == "__main__":
    TF_DIM, MSA_DIM = 22, 49
    C_Z, C_M = 32, 32
    RELPOS_K = 4
    N_RES, N_CLUST = 32, 4

    key = jax.random.PRNGKey(0)
    k_tf, k_msa, k_p = jax.random.split(key, 3)

    tf = jax.random.normal(k_tf, (N_RES, TF_DIM), jnp.float32)
    ri = jnp.arange(N_RES, dtype=jnp.int32)
    msa = jax.random.normal(k_msa, (N_CLUST, N_RES, MSA_DIM), jnp.float32)
    params = init_params(k_p, TF_DIM, MSA_DIM, C_Z, C_M, RELPOS_K)

    # Small explicit tiles so the toy problem still exercises a multi-step
    # pipelined grid: pair grid = (2, 2), msa grid = (2,).
    msa_emb, pair_emb = input_embedder_forward(
        tf, ri, msa, params, relpos_k=RELPOS_K, ti=16, tj=16, tc=2)
    jax.block_until_ready((msa_emb, pair_emb))

    msa_ref, pair_ref = reference_forward(tf, ri, msa, params, RELPOS_K)
    assert msa_emb.shape == (N_CLUST, N_RES, C_M)
    assert pair_emb.shape == (N_RES, N_RES, C_Z)
    assert jnp.allclose(msa_emb, msa_ref, atol=1e-4, rtol=1e-4)
    assert jnp.allclose(pair_emb, pair_ref, atol=1e-4, rtol=1e-4)

    print("KERNEL_OK")
</pallas_src>

<mosaic_0001>
module attributes {stable_mosaic.version = 11 : i64} {
  func.func @_proj_kernel(%arg0: memref<32x22xf32, #tpu.memory_space<vmem>>, %arg1: memref<22x32xf32, #tpu.memory_space<vmem>>, %arg2: memref<1x32xf32, #tpu.memory_space<vmem>>, %arg3: memref<22x32xf32, #tpu.memory_space<vmem>>, %arg4: memref<1x32xf32, #tpu.memory_space<vmem>>, %arg5: memref<1x32xf32, #tpu.memory_space<vmem>>, %arg6: memref<22x32xf32, #tpu.memory_space<vmem>>, %arg7: memref<1x32xf32, #tpu.memory_space<vmem>>, %arg8: memref<1x32xf32, #tpu.memory_space<vmem>>, %arg9: memref<32x32xf32, #tpu.memory_space<vmem>>, %arg10: memref<32x32xf32, #tpu.memory_space<vmem>>, %arg11: memref<32x32xf32, #tpu.memory_space<vmem>>) attributes {dimension_semantics = [], scalar_prefetch = 0 : i64, scratch_operands = 0 : i64, tpu.core_type = #tpu.core_type<tc>} {
    %c0 = arith.constant 0 : index
    %c0_0 = arith.constant 0 : index
    %0 = vector.load %arg0[%c0, %c0_0] : memref<32x22xf32, #tpu.memory_space<vmem>>, vector<32x22xf32>
    %c0_1 = arith.constant 0 : index
    %c0_2 = arith.constant 0 : index
    %1 = vector.load %arg1[%c0_1, %c0_2] : memref<22x32xf32, #tpu.memory_space<vmem>>, vector<22x32xf32>
    %cst = arith.constant dense<0.000000e+00> : vector<32x32xf32>
    %2 = tpu.matmul %0, %1, %cst {dimension_numbers = #tpu.dot_dimension_numbers<[1], [0], [0], [1], [0, 0, 1, 1], [], []>} : vector<32x22xf32>, vector<22x32xf32>, vector<32x32xf32> -> vector<32x32xf32>
    %c0_3 = arith.constant 0 : index
    %c0_4 = arith.constant 0 : index
    %3 = vector.load %arg2[%c0_3, %c0_4] : memref<1x32xf32, #tpu.memory_space<vmem>>, vector<1x32xf32>
    %4 = vector.broadcast %3 : vector<1x32xf32> to vector<32x32xf32>
    %5 = arith.addf %2, %4 : vector<32x32xf32>
    %c0_5 = arith.constant 0 : index
    %c0_6 = arith.constant 0 : index
    %6 = vector.load %arg9[%c0_5, %c0_6] : memref<32x32xf32, #tpu.memory_space<vmem>>, vector<32x32xf32>
    tpu.vector_store %arg9[%c0_5, %c0_6], %5 {strides = array<i32>} : memref<32x32xf32, #tpu.memory_space<vmem>>, vector<32x32xf32>,
    %c0_7 = arith.constant 0 : index
    %c0_8 = arith.constant 0 : index
    %7 = vector.load %arg3[%c0_7, %c0_8] : memref<22x32xf32, #tpu.memory_space<vmem>>, vector<22x32xf32>
    %cst_9 = arith.constant dense<0.000000e+00> : vector<32x32xf32>
    %8 = tpu.matmul %0, %7, %cst_9 {dimension_numbers = #tpu.dot_dimension_numbers<[1], [0], [0], [1], [0, 0, 1, 1], [], []>} : vector<32x22xf32>, vector<22x32xf32>, vector<32x32xf32> -> vector<32x32xf32>
    %c0_10 = arith.constant 0 : index
    %c0_11 = arith.constant 0 : index
    %9 = vector.load %arg4[%c0_10, %c0_11] : memref<1x32xf32, #tpu.memory_space<vmem>>, vector<1x32xf32>
    %10 = vector.broadcast %9 : vector<1x32xf32> to vector<32x32xf32>
    %11 = arith.addf %8, %10 : vector<32x32xf32>
    %c0_12 = arith.constant 0 : index
    %c0_13 = arith.constant 0 : index
    %12 = vector.load %arg5[%c0_12, %c0_13] : memref<1x32xf32, #tpu.memory_space<vmem>>, vector<1x32xf32>
    %13 = vector.broadcast %12 : vector<1x32xf32> to vector<32x32xf32>
    %14 = arith.addf %11, %13 : vector<32x32xf32>
    %c0_14 = arith.constant 0 : index
    %c0_15 = arith.constant 0 : index
    %15 = vector.load %arg10[%c0_14, %c0_15] : memref<32x32xf32, #tpu.memory_space<vmem>>, vector<32x32xf32>
    tpu.vector_store %arg10[%c0_14, %c0_15], %14 {strides = array<i32>} : memref<32x32xf32, #tpu.memory_space<vmem>>, vector<32x32xf32>,
    %c0_16 = arith.constant 0 : index
    %c0_17 = arith.constant 0 : index
    %16 = vector.load %arg6[%c0_16, %c0_17] : memref<22x32xf32, #tpu.memory_space<vmem>>, vector<22x32xf32>
    %cst_18 = arith.constant dense<0.000000e+00> : vector<32x32xf32>
    %17 = tpu.matmul %0, %16, %cst_18 {dimension_numbers = #tpu.dot_dimension_numbers<[1], [0], [0], [1], [0, 0, 1, 1], [], []>} : vector<32x22xf32>, vector<22x32xf32>, vector<32x32xf32> -> vector<32x32xf32>
    %c0_19 = arith.constant 0 : index
    %c0_20 = arith.constant 0 : index
    %18 = vector.load %arg7[%c0_19, %c0_20] : memref<1x32xf32, #tpu.memory_space<vmem>>, vector<1x32xf32>
    %19 = vector.broadcast %18 : vector<1x32xf32> to vector<32x32xf32>
    %20 = arith.addf %17, %19 : vector<32x32xf32>
    %c0_21 = arith.constant 0 : index
    %c0_22 = arith.constant 0 : index
    %21 = vector.load %arg8[%c0_21, %c0_22] : memref<1x32xf32, #tpu.memory_space<vmem>>, vector<1x32xf32>
    %22 = vector.broadcast %21 : vector<1x32xf32> to vector<32x32xf32>
    %23 = arith.addf %20, %22 : vector<32x32xf32>
    %c0_23 = arith.constant 0 : index
    %c0_24 = arith.constant 0 : index
    %24 = vector.load %arg11[%c0_23, %c0_24] : memref<32x32xf32, #tpu.memory_space<vmem>>, vector<32x32xf32>
    tpu.vector_store %arg11[%c0_23, %c0_24], %23 {strides = array<i32>} : memref<32x32xf32, #tpu.memory_space<vmem>>, vector<32x32xf32>,
    return
  }
}

module attributes {stable_mosaic.version = 11 : i64} {
  func.func @_pair_kernel(%arg0: i32, %arg1: i32, %arg2: memref<16x1xi32, #tpu.memory_space<vmem>>, %arg3: memref<1x512xi32, #tpu.memory_space<vmem>>, %arg4: memref<16x32xf32, #tpu.memory_space<vmem>>, %arg5: memref<1x512xf32, #tpu.memory_space<vmem>>, %arg6: memref<9x512xf32, #tpu.memory_space<vmem>>, %arg7: memref<32x512xf32, #tpu.memory_space<vmem>>, %arg8: memref<16x512xf32, #tpu.memory_space<vmem>>) attributes {dimension_semantics = [#tpu.dimension_semantics<parallel>, #tpu.dimension_semantics<parallel>], iteration_bounds = array<i64: 2, 2>, scalar_prefetch = 0 : i64, scratch_operands = 0 : i64, tpu.core_type = #tpu.core_type<tc>, window_params = [{transform_indices = @transform_0, window_bounds = array<i64: 16, 1>}, {transform_indices = @transform_1, window_bounds = array<i64: 1, 512>}, {transform_indices = @transform_2, window_bounds = array<i64: 16, 32>}, {transform_indices = @transform_3, window_bounds = array<i64: 1, 512>}, {pipeline_mode = #tpu.pipeline_mode<synchronous>, transform_indices = @transform_4, window_bounds = array<i64: 9, 512>}, {pipeline_mode = #tpu.pipeline_mode<synchronous>, transform_indices = @transform_5, window_bounds = array<i64: 32, 512>}, {transform_indices = @transform_6, window_bounds = array<i64: 16, 512>}]} {
    %c0 = arith.constant 0 : index
    %c0_0 = arith.constant 0 : index
    %0 = vector.load %arg4[%c0, %c0_0] : memref<16x32xf32, #tpu.memory_space<vmem>>, vector<16x32xf32>
    %c0_1 = arith.constant 0 : index
    %c0_2 = arith.constant 0 : index
    %1 = vector.load %arg7[%c0_1, %c0_2] : memref<32x512xf32, #tpu.memory_space<vmem>>, vector<32x512xf32>
    %cst = arith.constant dense<0.000000e+00> : vector<16x512xf32>
    %2 = tpu.matmul %0, %1, %cst {dimension_numbers = #tpu.dot_dimension_numbers<[1], [0], [0], [1], [0, 0, 1, 1], [], []>} : vector<16x32xf32>, vector<32x512xf32>, vector<16x512xf32> -> vector<16x512xf32>
    %c0_3 = arith.constant 0 : index
    %c0_4 = arith.constant 0 : index
    %3 = vector.load %arg5[%c0_3, %c0_4] : memref<1x512xf32, #tpu.memory_space<vmem>>, vector<1x512xf32>
    %4 = vector.broadcast %3 : vector<1x512xf32> to vector<16x512xf32>
    %5 = arith.addf %2, %4 : vector<16x512xf32>
    %c0_5 = arith.constant 0 : index
    %c0_6 = arith.constant 0 : index
    %6 = vector.load %arg2[%c0_5, %c0_6] : memref<16x1xi32, #tpu.memory_space<vmem>>, vector<16x1xi32>
    %c0_7 = arith.constant 0 : index
    %c0_8 = arith.constant 0 : index
    %7 = vector.load %arg3[%c0_7, %c0_8] : memref<1x512xi32, #tpu.memory_space<vmem>>, vector<1x512xi32>
    %8 = vector.broadcast %6 : vector<16x1xi32> to vector<16x512xi32>
    %9 = vector.broadcast %7 : vector<1x512xi32> to vector<16x512xi32>
    %10 = arith.subi %8, %9 : vector<16x512xi32>
    %c-4_i32 = arith.constant -4 : i32
    %c4_i32 = arith.constant 4 : i32
    %11 = vector.broadcast %c-4_i32 : i32 to vector<16x512xi32>
    %12 = arith.maxsi %11, %10 : vector<16x512xi32>
    %13 = vector.broadcast %c4_i32 : i32 to vector<16x512xi32>
    %14 = arith.minsi %13, %12 : vector<16x512xi32>
    %c4_i32_9 = arith.constant 4 : i32
    %15 = vector.broadcast %c4_i32_9 : i32 to vector<16x512xi32>
    %16 = arith.addi %14, %15 : vector<16x512xi32>
    %c0_i32 = arith.constant 0 : i32
    %17 = vector.broadcast %c0_i32 : i32 to vector<16x512xi32>
    %18 = arith.cmpi eq, %16, %17 : vector<16x512xi32>
    %c0_10 = arith.constant 0 : index
    %c0_11 = arith.constant 0 : index
    %19 = vector.load %arg6[%c0_10, %c0_11] : memref<9x512xf32, #tpu.memory_space<vmem>>, vector<1x512xf32>
    %cst_12 = arith.constant 0.000000e+00 : f32
    %20 = vector.shape_cast %19 : vector<1x512xf32> to vector<1x512xf32>
    %21 = vector.broadcast %20 : vector<1x512xf32> to vector<16x512xf32>
    %22 = vector.broadcast %cst_12 : f32 to vector<16x512xf32>
    %23 = arith.select %18, %21, %22 : vector<16x512xi1>, vector<16x512xf32>
    %24 = arith.addf %5, %23 : vector<16x512xf32>
    %c1_i32 = arith.constant 1 : i32
    %25 = vector.broadcast %c1_i32 : i32 to vector<16x512xi32>
    %26 = arith.cmpi eq, %16, %25 : vector<16x512xi32>
    %c1 = arith.constant 1 : index
    %c0_13 = arith.constant 0 : index
    %27 = vector.load %arg6[%c1, %c0_13] : memref<9x512xf32, #tpu.memory_space<vmem>>, vector<1x512xf32>
    %cst_14 = arith.constant 0.000000e+00 : f32
    %28 = vector.shape_cast %27 : vector<1x512xf32> to vector<1x512xf32>
    %29 = vector.broadcast %28 : vector<1x512xf32> to vector<16x512xf32>
    %30 = vector.broadcast %cst_14 : f32 to vector<16x512xf32>
    %31 = arith.select %26, %29, %30 : vector<16x512xi1>, vector<16x512xf32>
    %32 = arith.addf %24, %31 : vector<16x512xf32>
    %c2_i32 = arith.constant 2 : i32
    %33 = vector.broadcast %c2_i32 : i32 to vector<16x512xi32>
    %34 = arith.cmpi eq, %16, %33 : vector<16x512xi32>
    %c2 = arith.constant 2 : index
    %c0_15 = arith.constant 0 : index
    %35 = vector.load %arg6[%c2, %c0_15] : memref<9x512xf32, #tpu.memory_space<vmem>>, vector<1x512xf32>
    %cst_16 = arith.constant 0.000000e+00 : f32
    %36 = vector.shape_cast %35 : vector<1x512xf32> to vector<1x512xf32>
    %37 = vector.broadcast %36 : vector<1x512xf32> to vector<16x512xf32>
    %38 = vector.broadcast %cst_16 : f32 to vector<16x512xf32>
    %39 = arith.select %34, %37, %38 : vector<16x512xi1>, vector<16x512xf32>
    %40 = arith.addf %32, %39 : vector<16x512xf32>
    %c3_i32 = arith.constant 3 : i32
    %41 = vector.broadcast %c3_i32 : i32 to vector<16x512xi32>
    %42 = arith.cmpi eq, %16, %41 : vector<16x512xi32>
    %c3 = arith.constant 3 : index
    %c0_17 = arith.constant 0 : index
    %43 = vector.load %arg6[%c3, %c0_17] : memref<9x512xf32, #tpu.memory_space<vmem>>, vector<1x512xf32>
    %cst_18 = arith.constant 0.000000e+00 : f32
    %44 = vector.shape_cast %43 : vector<1x512xf32> to vector<1x512xf32>
    %45 = vector.broadcast %44 : vector<1x512xf32> to vector<16x512xf32>
    %46 = vector.broadcast %cst_18 : f32 to vector<16x512xf32>
    %47 = arith.select %42, %45, %46 : vector<16x512xi1>, vector<16x512xf32>
    %48 = arith.addf %40, %47 : vector<16x512xf32>
    %c4_i32_19 = arith.constant 4 : i32
    %49 = vector.broadcast %c4_i32_19 : i32 to vector<16x512xi32>
    %50 = arith.cmpi eq, %16, %49 : vector<16x512xi32>
    %c4 = arith.constant 4 : index
    %c0_20 = arith.constant 0 : index
    %51 = vector.load %arg6[%c4, %c0_20] : memref<9x512xf32, #tpu.memory_space<vmem>>, vector<1x512xf32>
    %cst_21 = arith.constant 0.000000e+00 : f32
    %52 = vector.shape_cast %51 : vector<1x512xf32> to vector<1x512xf32>
    %53 = vector.broadcast %52 : vector<1x512xf32> to vector<16x512xf32>
    %54 = vector.broadcast %cst_21 : f32 to vector<16x512xf32>
    %55 = arith.select %50, %53, %54 : vector<16x512xi1>, vector<16x512xf32>
    %56 = arith.addf %48, %55 : vector<16x512xf32>
    %c5_i32 = arith.constant 5 : i32
    %57 = vector.broadcast %c5_i32 : i32 to vector<16x512xi32>
    %58 = arith.cmpi eq, %16, %57 : vector<16x512xi32>
    %c5 = arith.constant 5 : index
    %c0_22 = arith.constant 0 : index
    %59 = vector.load %arg6[%c5, %c0_22] : memref<9x512xf32, #tpu.memory_space<vmem>>, vector<1x512xf32>
    %cst_23 = arith.constant 0.000000e+00 : f32
    %60 = vector.shape_cast %59 : vector<1x512xf32> to vector<1x512xf32>
    %61 = vector.broadcast %60 : vector<1x512xf32> to vector<16x512xf32>
    %62 = vector.broadcast %cst_23 : f32 to vector<16x512xf32>
    %63 = arith.select %58, %61, %62 : vector<16x512xi1>, vector<16x512xf32>
    %64 = arith.addf %56, %63 : vector<16x512xf32>
    %c6_i32 = arith.constant 6 : i32
    %65 = vector.broadcast %c6_i32 : i32 to vector<16x512xi32>
    %66 = arith.cmpi eq, %16, %65 : vector<16x512xi32>
    %c6 = arith.constant 6 : index
    %c0_24 = arith.constant 0 : index
    %67 = vector.load %arg6[%c6, %c0_24] : memref<9x512xf32, #tpu.memory_space<vmem>>, vector<1x512xf32>
    %cst_25 = arith.constant 0.000000e+00 : f32
    %68 = vector.shape_cast %67 : vector<1x512xf32> to vector<1x512xf32>
    %69 = vector.broadcast %68 : vector<1x512xf32> to vector<16x512xf32>
    %70 = vector.broadcast %cst_25 : f32 to vector<16x512xf32>
    %71 = arith.select %66, %69, %70 : vector<16x512xi1>, vector<16x512xf32>
    %72 = arith.addf %64, %71 : vector<16x512xf32>
    %c7_i32 = arith.constant 7 : i32
    %73 = vector.broadcast %c7_i32 : i32 to vector<16x512xi32>
    %74 = arith.cmpi eq, %16, %73 : vector<16x512xi32>
    %c7 = arith.constant 7 : index
    %c0_26 = arith.constant 0 : index
    %75 = vector.load %arg6[%c7, %c0_26] : memref<9x512xf32, #tpu.memory_space<vmem>>, vector<1x512xf32>
    %cst_27 = arith.constant 0.000000e+00 : f32
    %76 = vector.shape_cast %75 : vector<1x512xf32> to vector<1x512xf32>
    %77 = vector.broadcast %76 : vector<1x512xf32> to vector<16x512xf32>
    %78 = vector.broadcast %cst_27 : f32 to vector<16x512xf32>
    %79 = arith.select %74, %77, %78 : vector<16x512xi1>, vector<16x512xf32>
    %80 = arith.addf %72, %79 : vector<16x512xf32>
    %c8_i32 = arith.constant 8 : i32
    %81 = vector.broadcast %c8_i32 : i32 to vector<16x512xi32>
    %82 = arith.cmpi eq, %16, %81 : vector<16x512xi32>
    %c8 = arith.constant 8 : index
    %c0_28 = arith.constant 0 : index
    %83 = vector.load %arg6[%c8, %c0_28] : memref<9x512xf32, #tpu.memory_space<vmem>>, vector<1x512xf32>
    %cst_29 = arith.constant 0.000000e+00 : f32
    %84 = vector.shape_cast %83 : vector<1x512xf32> to vector<1x512xf32>
    %85 = vector.broadcast %84 : vector<1x512xf32> to vector<16x512xf32>
    %86 = vector.broadcast %cst_29 : f32 to vector<16x512xf32>
    %87 = arith.select %82, %85, %86 : vector<16x512xi1>, vector<16x512xf32>
    %88 = arith.addf %80, %87 : vector<16x512xf32>
    %c0_30 = arith.constant 0 : index
    %c0_31 = arith.constant 0 : index
    %89 = vector.load %arg8[%c0_30, %c0_31] : memref<16x512xf32, #tpu.memory_space<vmem>>, vector<16x512xf32>
    tpu.vector_store %arg8[%c0_30, %c0_31], %88 {strides = array<i32>} : memref<16x512xf32, #tpu.memory_space<vmem>>, vector<16x512xf32>,
    return
  }
  func.func @transform_0(%arg0: i32, %arg1: i32) -> (i32, i32) {
    %c0_i32 = arith.constant 0 : i32
    %c0_i32_0 = arith.constant 0 : i32
    return %arg0, %c0_i32 : i32, i32
  }
  func.func @transform_1(%arg0: i32, %arg1: i32) -> (i32, i32) {
    %c0_i32 = arith.constant 0 : i32
    %c0_i32_0 = arith.constant 0 : i32
    return %c0_i32, %arg1 : i32, i32
  }
  func.func @transform_2(%arg0: i32, %arg1: i32) -> (i32, i32) {
    %c0_i32 = arith.constant 0 : i32
    %c0_i32_0 = arith.constant 0 : i32
    return %arg0, %c0_i32 : i32, i32
  }
  func.func @transform_3(%arg0: i32, %arg1: i32) -> (i32, i32) {
    %c0_i32 = arith.constant 0 : i32
    %c0_i32_0 = arith.constant 0 : i32
    return %c0_i32, %arg1 : i32, i32
  }
  func.func @transform_4(%arg0: i32, %arg1: i32) -> (i32, i32) {
    %c0_i32 = arith.constant 0 : i32
    %c0_i32_0 = arith.constant 0 : i32
    %c0_i32_1 = arith.constant 0 : i32
    return %c0_i32, %c0_i32_0 : i32, i32
  }
  func.func @transform_5(%arg0: i32, %arg1: i32) -> (i32, i32) {
    %c0_i32 = arith.constant 0 : i32
    %c0_i32_0 = arith.constant 0 : i32
    %c0_i32_1 = arith.constant 0 : i32
    return %c0_i32, %c0_i32_0 : i32, i32
  }
  func.func @transform_6(%arg0: i32, %arg1: i32) -> (i32, i32) {
    %c0_i32 = arith.constant 0 : i32
    return %arg0, %arg1 : i32, i32
  }
}

module attributes {stable_mosaic.version = 11 : i64} {
  func.func @_msa_kernel(%arg0: i32, %arg1: memref<64x56xf32, #tpu.memory_space<vmem>>, %arg2: memref<56x32xf32, #tpu.memory_space<vmem>>, %arg3: memref<64x32xf32, #tpu.memory_space<vmem>>, %arg4: memref<64x32xf32, #tpu.memory_space<vmem>>) attributes {dimension_semantics = [#tpu.dimension_semantics<parallel>], iteration_bounds = array<i64: 2>, scalar_prefetch = 0 : i64, scratch_operands = 0 : i64, tpu.core_type = #tpu.core_type<tc>, window_params = [{transform_indices = @transform_0, window_bounds = array<i64: 64, 56>}, {pipeline_mode = #tpu.pipeline_mode<synchronous>, transform_indices = @transform_1, window_bounds = array<i64: 56, 32>}, {pipeline_mode = #tpu.pipeline_mode<synchronous>, transform_indices = @transform_2, window_bounds = array<i64: 64, 32>}, {transform_indices = @transform_3, window_bounds = array<i64: 64, 32>}]} {
    %c0 = arith.constant 0 : index
    %c0_0 = arith.constant 0 : index
    %0 = vector.load %arg1[%c0, %c0_0] : memref<64x56xf32, #tpu.memory_space<vmem>>, vector<64x56xf32>
    %c0_1 = arith.constant 0 : index
    %c0_2 = arith.constant 0 : index
    %1 = vector.load %arg2[%c0_1, %c0_2] : memref<56x32xf32, #tpu.memory_space<vmem>>, vector<56x32xf32>
    %cst = arith.constant dense<0.000000e+00> : vector<64x32xf32>
    %2 = tpu.matmul %0, %1, %cst {dimension_numbers = #tpu.dot_dimension_numbers<[1], [0], [0], [1], [0, 0, 1, 1], [], []>} : vector<64x56xf32>, vector<56x32xf32>, vector<64x32xf32> -> vector<64x32xf32>
    %c0_3 = arith.constant 0 : index
    %c0_4 = arith.constant 0 : index
    %3 = vector.load %arg3[%c0_3, %c0_4] : memref<64x32xf32, #tpu.memory_space<vmem>>, vector<64x32xf32>
    %4 = arith.addf %2, %3 : vector<64x32xf32>
    %c0_5 = arith.constant 0 : index
    %c0_6 = arith.constant 0 : index
    %5 = vector.load %arg4[%c0_5, %c0_6] : memref<64x32xf32, #tpu.memory_space<vmem>>, vector<64x32xf32>
    tpu.vector_store %arg4[%c0_5, %c0_6], %4 {strides = array<i32>} : memref<64x32xf32, #tpu.memory_space<vmem>>, vector<64x32xf32>,
    return
  }
  func.func @transform_0(%arg0: i32) -> (i32, i32) {
    %c0_i32 = arith.constant 0 : i32
    %c0_i32_0 = arith.constant 0 : i32
    return %arg0, %c0_i32 : i32, i32
  }
  func.func @transform_1(%arg0: i32) -> (i32, i32) {
    %c0_i32 = arith.constant 0 : i32
    %c0_i32_0 = arith.constant 0 : i32
    %c0_i32_1 = arith.constant 0 : i32
    return %c0_i32, %c0_i32_0 : i32, i32
  }
  func.func @transform_2(%arg0: i32) -> (i32, i32) {
    %c0_i32 = arith.constant 0 : i32
    %c0_i32_0 = arith.constant 0 : i32
    %c0_i32_1 = arith.constant 0 : i32
    return %c0_i32, %c0_i32_0 : i32, i32
  }
  func.func @transform_3(%arg0: i32) -> (i32, i32) {
    %c0_i32 = arith.constant 0 : i32
    %c0_i32_0 = arith.constant 0 : i32
    return %arg0, %c0_i32 : i32, i32
  }
}

</mosaic_0001>

<llo_original>
// kernel: tile.19
$region0: #{tile.19}
  %s0 = inlined_call_operand.vmem [shape: f32[9,16,32], index: 0, kind: input, shape index: {}]
  %s1 = inlined_call_operand.vmem [shape: f32[9,512], index: 1, kind: output, shape index: {}]
  %v2 = vld [vmem:[%s0] ss:$4 sm:$0xff]
  %vm3 = vcmask 261120
  %4 = vst.msk [vmem:[%s1] ss:$8 sm:$0xf] %vm3, %v2
  %s5 = scalar_lea.vmem %s1, 4294967265
  %6 = vst.msk [vmem:[%s5] ss:$8 sm:$0xf0] %vm3, %v2
  %s7 = scalar_lea.vmem %s0, 32
  %v8 = vld [vmem:[%s7] ss:$4 sm:$0xff]
  %vm9 = vcmask 261120
  %s10 = scalar_lea.vmem %s1, 2
  %11 = vst.msk [vmem:[%s10] ss:$8 sm:$0xf] %vm9, %v8
  %s12 = scalar_lea.vmem %s1, 4294967267
  %13 = vst.msk [vmem:[%s12] ss:$8 sm:$0xf0] %vm9, %v8
  %s14 = scalar_lea.vmem %s0, 64
  %v15 = vld [vmem:[%s14] ss:$4 sm:$0xff]
  %vm16 = vcmask 261120
  %s17 = scalar_lea.vmem %s1, 4
  %18 = vst.msk [vmem:[%s17] ss:$8 sm:$0xf] %vm16, %v15
  %s19 = scalar_lea.vmem %s1, 4294967269
  %20 = vst.msk [vmem:[%s19] ss:$8 sm:$0xf0] %vm16, %v15
  %s21 = scalar_lea.vmem %s0, 96
  %v22 = vld [vmem:[%s21] ss:$4 sm:$0xff]
  %vm23 = vcmask 261120
  %s24 = scalar_lea.vmem %s1, 6
  %25 = vst.msk [vmem:[%s24] ss:$8 sm:$0xf] %vm23, %v22
  %s26 = scalar_lea.vmem %s1, 4294967271
  %27 = vst.msk [vmem:[%s26] ss:$8 sm:$0xf0] %vm23, %v22
  %s28 = scalar_lea.vmem %s0, 128
  %v29 = vld [vmem:[%s28] ss:$4 sm:$0xf]
  %vm30 = vcmask 261120
  %s31 = scalar_lea.vmem %s1, 32
  %32 = vst.msk [vmem:[%s31] ss:$8 sm:$0xf] %vm30, %v29
  %s33 = scalar_lea.vmem %s0, 3
  %s34 = smov 3
  %v35 = vld [vmem:[%s33] ss:$16 sm:%s34]
  %s36 = scalar_lea.vmem %s0, 3
  %s37 = smov 12
  %v38 = vld [vmem:[%s36] ss:$16 sm:%s37]
  %vm39 = vcmask 1043458
  %v40 = vsel %vm39, %v38, %v35
  %s41 = scalar_lea.vmem %s0, 3
  %s42 = smov 48
  %v43 = vld [vmem:[%s41] ss:$16 sm:%s42]
  %vm44 = vcmask 1045508
  %v45 = vsel %vm44, %v43, %v40
  %s46 = scalar_lea.vmem %s0, 3
  %s47 = smov 192
  %v48 = vld [vmem:[%s46] ss:$16 sm:%s47]
  %vm49 = vcmask 1047558
  %v50 = vsel %vm49, %v48, %v45
  %51 = vrot.lane.b32.xlu0 %v50, 96
  %v52 = vpop.permute.xlu0 %51
  %vm53 = vcmask 1048320
  %54 = vst.msk [vmem:[%s1] sm:$0xff] %vm53, %v52
  %s55 = scalar_lea.vmem %s0, 131
  %s56 = smov 3
  %v57 = vld [vmem:[%s55] ss:$-124 sm:%s56]
  %s58 = scalar_lea.vmem %s0, 4294967287
  %s59 = smov 12
  %v60 = vld [vmem:[%s58] ss:$16 sm:%s59]
  %vm61 = vcmask 1043458
  %v62 = vsel %vm61, %v60, %v57
  %s63 = scalar_lea.vmem %s0, 4294967287
  %s64 = smov 48
  %v65 = vld [vmem:[%s63] ss:$16 sm:%s64]
  %vm66 = vcmask 1045508
  %v67 = vsel %vm66, %v65, %v62
  %s68 = scalar_lea.vmem %s0, 4294967287
  %s69 = smov 192
  %v70 = vld [vmem:[%s68] ss:$16 sm:%s69]
  %vm71 = vcmask 1047558
  %v72 = vsel %vm71, %v70, %v67
  %73 = vrot.lane.b32.xlu0 %v72, 96
  %v74 = vpop.permute.xlu0 %73
  %vm75 = vcmask 1048320
  %s76 = scalar_lea.vmem %s1, 32
  %77 = vst.msk [vmem:[%s76] ss:$-24 sm:$0x3] %vm75, %v74
  %s78 = scalar_lea.vmem %s1, 7
  %79 = vst.msk [vmem:[%s78] sm:$0xfc] %vm75, %v74
  %s80 = scalar_lea.vmem %s0, 135
  %s81 = smov 3
  %v82 = vld [vmem:[%s80] ss:$-16 sm:%s81]
  %s83 = scalar_lea.vmem %s0, 4294967275
  %s84 = smov 12
  %v85 = vld [vmem:[%s83] ss:$16 sm:%s84]
  %vm86 = vcmask 1043458
  %v87 = vsel %vm86, %v85, %v82
  %s88 = scalar_lea.vmem %s0, 4294967275
  %s89 = smov 48
  %v90 = vld [vmem:[%s88] ss:$16 sm:%s89]
  %vm91 = vcmask 1045508
  %v92 = vsel %vm91, %v90, %v87
  %s93 = scalar_lea.vmem %s0, 4294967275
  %s94 = smov 192
  %v95 = vld [vmem:[%s93] ss:$16 sm:%s94]
  %vm96 = vcmask 1047558
  %v97 = vsel %vm96, %v95, %v92
  %98 = vrot.lane.b32.xlu0 %v97, 96
  %v99 = vpop.permute.xlu0 %98
  %vm100 = vcmask 1048320
  %s101 = scalar_lea.vmem %s1, 40
  %102 = vst.msk [vmem:[%s101] ss:$-25 sm:$0x3] %vm100, %v99
  %s103 = scalar_lea.vmem %s1, 14
  %104 = vst.msk [vmem:[%s103] sm:$0xfc] %vm100, %v99
  %s105 = scalar_lea.vmem %s0, 139
  %v106 = vld [vmem:[%s105] sm:$0x1]
  %s107 = scalar_lea.vmem %s0, 91
  %s108 = smov 6
  %v109 = vld [vmem:[%s107] ss:$16 sm:%s108]
  %vm110 = vcmask 1042433
  %v111 = vsel %vm110, %v109, %v106
  %s112 = scalar_lea.vmem %s0, 4294967263
  %s113 = smov 24
  %v114 = vld [vmem:[%s112] ss:$16 sm:%s113]
  %vm115 = vcmask 1044483
  %v116 = vsel %vm115, %v114, %v111
  %s117 = scalar_lea.vmem %s0, 4294967263
  %s118 = smov 96
  %v119 = vld [vmem:[%s117] ss:$16 sm:%s118]
  %vm120 = vcmask 1046533
  %v121 = vsel %vm120, %v119, %v116
  %s122 = scalar_lea.vmem %s0, 72
  %v123 = vld [vmem:[%s122] sm:$0x80]
  %vm124 = vcmask 1047559
  %v125 = vsel %vm124, %v123, %v121
  %126 = vrot.lane.b32.xlu0 %v125, 96
  %v127 = vpop.permute.xlu0 %126
  %vm128 = vcmask 1048320
  %s129 = scalar_lea.vmem %s1, 48
  %130 = vst.msk [vmem:[%s129] ss:$-26 sm:$0x3] %vm128, %v127
  %s131 = scalar_lea.vmem %s1, 21
  %132 = vst.msk [vmem:[%s131] sm:$0xfc] %vm128, %v127
  %s133 = scalar_lea.vmem %s0, 143
  %s134 = smov 3
  %v135 = vld [vmem:[%s133] ss:$-48 sm:%s134]
  %s136 = scalar_lea.vmem %s0, 79
  %s137 = smov 12
  %v138 = vld [vmem:[%s136] ss:$16 sm:%s137]
  %vm139 = vcmask 1043458
  %v140 = vsel %vm139, %v138, %v135
  %141 = vrot.lane.b32.xlu0 %v140, 96
  %v142 = vpop.permute.xlu0 %141
  %vm143 = vcmask 1048320
  %s144 = scalar_lea.vmem %s1, 56
  %145 = vst.msk [vmem:[%s144] ss:$-27 sm:$0x3] %vm143, %v142
  %s146 = scalar_lea.vmem %s1, 28
  %147 = vst.msk [vmem:[%s146] sm:$0xc] %vm143, %v142
  %s148 = scalar_lea.vmem %s0, 2
  %s149 = smov 3
  %v150 = vld [vmem:[%s148] ss:$16 sm:%s149]
  %s151 = scalar_lea.vmem %s0, 2
  %s152 = smov 12
  %v153 = vld [vmem:[%s151] ss:$16 sm:%s152]
  %vm154 = vcmask 1043458
  %v155 = vsel %vm154, %v153, %v150
  %s156 = scalar_lea.vmem %s0, 2
  %s157 = smov 48
  %v158 = vld [vmem:[%s156] ss:$16 sm:%s157]
  %vm159 = vcmask 1045508
  %v160 = vsel %vm159, %v158, %v155
  %s161 = scalar_lea.vmem %s0, 2
  %s162 = smov 192
  %v163 = vld [vmem:[%s161] ss:$16 sm:%s162]
  %vm164 = vcmask 1047558
  %v165 = vsel %vm164, %v163, %v160
  %166 = vrot.lane.b32.xlu0 %v165, 64
  %v167 = vpop.permute.xlu0 %166
  %vm168 = vcmask 785920
  %169 = vst.msk [vmem:[%s1] sm:$0xff] %vm168, %v167
  %s170 = scalar_lea.vmem %s0, 130
  %s171 = smov 3
  %v172 = vld [vmem:[%s170] ss:$-124 sm:%s171]
  %s173 = scalar_lea.vmem %s0, 4294967286
  %s174 = smov 12
  %v175 = vld [vmem:[%s173] ss:$16 sm:%s174]
  %vm176 = vcmask 1043458
  %v177 = vsel %vm176, %v175, %v172
  %s178 = scalar_lea.vmem %s0, 4294967286
  %s179 = smov 48
  %v180 = vld [vmem:[%s178] ss:$16 sm:%s179]
  %vm181 = vcmask 1045508
  %v182 = vsel %vm181, %v180, %v177
  %s183 = scalar_lea.vmem %s0, 4294967286
  %s184 = smov 192
  %v185 = vld [vmem:[%s183] ss:$16 sm:%s184]
  %vm186 = vcmask 1047558
  %v187 = vsel %vm186, %v185, %v182
  %188 = vrot.lane.b32.xlu0 %v187, 64
  %v189 = vpop.permute.xlu0 %188
  %vm190 = vcmask 785920
  %s191 = scalar_lea.vmem %s1, 32
  %192 = vst.msk [vmem:[%s191] ss:$-24 sm:$0x3] %vm190, %v189
  %s193 = scalar_lea.vmem %s1, 7
  %194 = vst.msk [vmem:[%s193] sm:$0xfc] %vm190, %v189
  %s195 = scalar_lea.vmem %s0, 134
  %s196 = smov 3
  %v197 = vld [vmem:[%s195] ss:$-16 sm:%s196]
  %s198 = scalar_lea.vmem %s0, 4294967274
  %s199 = smov 12
  %v200 = vld [vmem:[%s198] ss:$16 sm:%s199]
  %vm201 = vcmask 1043458
  %v202 = vsel %vm201, %v200, %v197
  %s203 = scalar_lea.vmem %s0, 4294967274
  %s204 = smov 48
  %v205 = vld [vmem:[%s203] ss:$16 sm:%s204]
  %vm206 = vcmask 1045508
  %v207 = vsel %vm206, %v205, %v202
  %s208 = scalar_lea.vmem %s0, 4294967274
  %s209 = smov 192
  %v210 = vld [vmem:[%s208] ss:$16 sm:%s209]
  %vm211 = vcmask 1047558
  %v212 = vsel %vm211, %v210, %v207
  %213 = vrot.lane.b32.xlu0 %v212, 64
  %v214 = vpop.permute.xlu0 %213
  %vm215 = vcmask 785920
  %s216 = scalar_lea.vmem %s1, 40
  %217 = vst.msk [vmem:[%s216] ss:$-25 sm:$0x3] %vm215, %v214
  %s218 = scalar_lea.vmem %s1, 14
  %219 = vst.msk [vmem:[%s218] sm:$0xfc] %vm215, %v214
  %s220 = scalar_lea.vmem %s0, 138
  %v221 = vld [vmem:[%s220] sm:$0x1]
  %s222 = scalar_lea.vmem %s0, 90
  %s223 = smov 6
  %v224 = vld [vmem:[%s222] ss:$16 sm:%s223]
  %vm225 = vcmask 1042433
  %v226 = vsel %vm225, %v224, %v221
  %s227 = scalar_lea.vmem %s0, 4294967262
  %s228 = smov 24
  %v229 = vld [vmem:[%s227] ss:$16 sm:%s228]
  %vm230 = vcmask 1044483
  %v231 = vsel %vm230, %v229, %v226
  %s232 = scalar_lea.vmem %s0, 4294967262
  %s233 = smov 96
  %v234 = vld [vmem:[%s232] ss:$16 sm:%s233]
  %vm235 = vcmask 1046533
  %v236 = vsel %vm235, %v234, %v231
  %s237 = scalar_lea.vmem %s0, 71
  %v238 = vld [vmem:[%s237] sm:$0x80]
  %vm239 = vcmask 1047559
  %v240 = vsel %vm239, %v238, %v236
  %241 = vrot.lane.b32.xlu0 %v240, 64
  %v242 = vpop.permute.xlu0 %241
  %vm243 = vcmask 785920
  %s244 = scalar_lea.vmem %s1, 48
  %245 = vst.msk [vmem:[%s244] ss:$-26 sm:$0x3] %vm243, %v242
  %s246 = scalar_lea.vmem %s1, 21
  %247 = vst.msk [vmem:[%s246] sm:$0xfc] %vm243, %v242
  %s248 = scalar_lea.vmem %s0, 142
  %s249 = smov 3
  %v250 = vld [vmem:[%s248] ss:$-48 sm:%s249]
  %s251 = scalar_lea.vmem %s0, 78
  %s252 = smov 12
  %v253 = vld [vmem:[%s251] ss:$16 sm:%s252]
  %vm254 = vcmask 1043458
  %v255 = vsel %vm254, %v253, %v250
  %256 = vrot.lane.b32.xlu0 %v255, 64
  %v257 = vpop.permute.xlu0 %256
  %vm258 = vcmask 785920
  %s259 = scalar_lea.vmem %s1, 56
  %260 = vst.msk [vmem:[%s259] ss:$-27 sm:$0x3] %vm258, %v257
  %s261 = scalar_lea.vmem %s1, 28
  %262 = vst.msk [vmem:[%s261] sm:$0xc] %vm258, %v257
  %s263 = scalar_lea.vmem %s0, 1
  %s264 = smov 3
  %v265 = vld [vmem:[%s263] ss:$16 sm:%s264]
  %s266 = scalar_lea.vmem %s0, 1
  %s267 = smov 12
  %v268 = vld [vmem:[%s266] ss:$16 sm:%s267]
  %vm269 = vcmask 1043458
  %v270 = vsel %vm269, %v268, %v265
  %s271 = scalar_lea.vmem %s0, 1
  %s272 = smov 48
  %v273 = vld [vmem:[%s271] ss:$16 sm:%s272]
  %vm274 = vcmask 1045508
  %v275 = vsel %vm274, %v273, %v270
  %s276 = scalar_lea.vmem %s0, 1
  %s277 = smov 192
  %v278 = vld [vmem:[%s276] ss:$16 sm:%s277]
  %vm279 = vcmask 1047558
  %v280 = vsel %vm279, %v278, %v275
  %281 = vrot.lane.b32.xlu0 %v280, 32
  %v282 = vpop.permute.xlu0 %281
  %vm283 = vcmask 523520
  %284 = vst.msk [vmem:[%s1] sm:$0xff] %vm283, %v282
  %s285 = scalar_lea.vmem %s0, 129
  %s286 = smov 3
  %v287 = vld [vmem:[%s285] ss:$-124 sm:%s286]
  %s288 = scalar_lea.vmem %s0, 4294967285
  %s289 = smov 12
  %v290 = vld [vmem:[%s288] ss:$16 sm:%s289]
  %vm291 = vcmask 1043458
  %v292 = vsel %vm291, %v290, %v287
  %s293 = scalar_lea.vmem %s0, 4294967285
  %s294 = smov 48
  %v295 = vld [vmem:[%s293] ss:$16 sm:%s294]
  %vm296 = vcmask 1045508
  %v297 = vsel %vm296, %v295, %v292
  %s298 = scalar_lea.vmem %s0, 4294967285
  %s299 = smov 192
  %v300 = vld [vmem:[%s298] ss:$16 sm:%s299]
  %vm301 = vcmask 1047558
  %v302 = vsel %vm301, %v300, %v297
  %303 = vrot.lane.b32.xlu0 %v302, 32
  %v304 = vpop.permute.xlu0 %303
  %vm305 = vcmask 523520
  %s306 = scalar_lea.vmem %s1, 32
  %307 = vst.msk [vmem:[%s306] ss:$-24 sm:$0x3] %vm305, %v304
  %s308 = scalar_lea.vmem %s1, 7
  %309 = vst.msk [vmem:[%s308] sm:$0xfc] %vm305, %v304
  %s310 = scalar_lea.vmem %s0, 133
  %s311 = smov 3
  %v312 = vld [vmem:[%s310] ss:$-16 sm:%s311]
  %s313 = scalar_lea.vmem %s0, 4294967273
  %s314 = smov 12
  %v315 = vld [vmem:[%s313] ss:$16 sm:%s314]
  %vm316 = vcmask 1043458
  %v317 = vsel %vm316, %v315, %v312
  %s318 = scalar_lea.vmem %s0, 4294967273
  %s319 = smov 48
  %v320 = vld [vmem:[%s318] ss:$16 sm:%s319]
  %vm321 = vcmask 1045508
  %v322 = vsel %vm321, %v320, %v317
  %s323 = scalar_lea.vmem %s0, 4294967273
  %s324 = smov 192
  %v325 = vld [vmem:[%s323] ss:$16 sm:%s324]
  %vm326 = vcmask 1047558
  %v327 = vsel %vm326, %v325, %v322
  %328 = vrot.lane.b32.xlu0 %v327, 32
  %v329 = vpop.permute.xlu0 %328
  %vm330 = vcmask 523520
  %s331 = scalar_lea.vmem %s1, 40
  %332 = vst.msk [vmem:[%s331] ss:$-25 sm:$0x3] %vm330, %v329
  %s333 = scalar_lea.vmem %s1, 14
  %334 = vst.msk [vmem:[%s333] sm:$0xfc] %vm330, %v329
  %s335 = scalar_lea.vmem %s0, 137
  %v336 = vld [vmem:[%s335] sm:$0x1]
  %s337 = scalar_lea.vmem %s0, 89
  %s338 = smov 6
  %v339 = vld [vmem:[%s337] ss:$16 sm:%s338]
  %vm340 = vcmask 1042433
  %v341 = vsel %vm340, %v339, %v336
  %s342 = scalar_lea.vmem %s0, 4294967261
  %s343 = smov 24
  %v344 = vld [vmem:[%s342] ss:$16 sm:%s343]
  %vm345 = vcmask 1044483
  %v346 = vsel %vm345, %v344, %v341
  %s347 = scalar_lea.vmem %s0, 4294967261
  %s348 = smov 96
  %v349 = vld [vmem:[%s347] ss:$16 sm:%s348]
  %vm350 = vcmask 1046533
  %v351 = vsel %vm350, %v349, %v346
  %s352 = scalar_lea.vmem %s0, 70
  %v353 = vld [vmem:[%s352] sm:$0x80]
  %vm354 = vcmask 1047559
  %v355 = vsel %vm354, %v353, %v351
  %356 = vrot.lane.b32.xlu0 %v355, 32
  %v357 = vpop.permute.xlu0 %356
  %vm358 = vcmask 523520
  %s359 = scalar_lea.vmem %s1, 48
  %360 = vst.msk [vmem:[%s359] ss:$-26 sm:$0x3] %vm358, %v357
  %s361 = scalar_lea.vmem %s1, 21
  %362 = vst.msk [vmem:[%s361] sm:$0xfc] %vm358, %v357
  %s363 = scalar_lea.vmem %s0, 141
  %s364 = smov 3
  %v365 = vld [vmem:[%s363] ss:$-48 sm:%s364]
  %s366 = scalar_lea.vmem %s0, 77
  %s367 = smov 12
  %v368 = vld [vmem:[%s366] ss:$16 sm:%s367]
  %vm369 = vcmask 1043458
  %v370 = vsel %vm369, %v368, %v365
  %371 = vrot.lane.b32.xlu0 %v370, 32
  %v372 = vpop.permute.xlu0 %371
  %vm373 = vcmask 523520
  %s374 = scalar_lea.vmem %s1, 56
  %375 = vst.msk [vmem:[%s374] ss:$-27 sm:$0x3] %vm373, %v372
  %s376 = scalar_lea.vmem %s1, 28
  %377 = vst.msk [vmem:[%s376] sm:$0xc] %vm373, %v372

// kernel: tile.24
$region0: #{tile.24}
  %s0 = inlined_call_operand.vmem [shape: f32[32,16,32], index: 0, kind: input, shape index: {}]
  %s1 = inlined_call_operand.vmem [shape: f32[32,512], index: 1, kind: output, shape index: {}]
  %v2 = vld [vmem:[%s0] ss:$4 sm:$0xff]
  %vm3 = vcmask 261120
  %4 = vst.msk [vmem:[%s1] ss:$8 sm:$0xf] %vm3, %v2
  %s5 = scalar_lea.vmem %s1, 4294967265
  %6 = vst.msk [vmem:[%s5] ss:$8 sm:$0xf0] %vm3, %v2
  %s7 = scalar_lea.vmem %s0, 32
  %v8 = vld [vmem:[%s7] ss:$4 sm:$0xff]
  %vm9 = vcmask 261120
  %s10 = scalar_lea.vmem %s1, 2
  %11 = vst.msk [vmem:[%s10] ss:$8 sm:$0xf] %vm9, %v8
  %s12 = scalar_lea.vmem %s1, 4294967267
  %13 = vst.msk [vmem:[%s12] ss:$8 sm:$0xf0] %vm9, %v8
  %s14 = scalar_lea.vmem %s0, 64
  %v15 = vld [vmem:[%s14] ss:$4 sm:$0xff]
  %vm16 = vcmask 261120
  %s17 = scalar_lea.vmem %s1, 4
  %18 = vst.msk [vmem:[%s17] ss:$8 sm:$0xf] %vm16, %v15
  %s19 = scalar_lea.vmem %s1, 4294967269
  %20 = vst.msk [vmem:[%s19] ss:$8 sm:$0xf0] %vm16, %v15
  %s21 = scalar_lea.vmem %s0, 96
  %v22 = vld [vmem:[%s21] ss:$4 sm:$0xff]
  %vm23 = vcmask 261120
  %s24 = scalar_lea.vmem %s1, 6
  %25 = vst.msk [vmem:[%s24] ss:$8 sm:$0xf] %vm23, %v22
  %s26 = scalar_lea.vmem %s1, 4294967271
  %27 = vst.msk [vmem:[%s26] ss:$8 sm:$0xf0] %vm23, %v22
  %s28 = scalar_lea.vmem %s0, 128
  %v29 = vld [vmem:[%s28] ss:$4 sm:$0xff]
  %vm30 = vcmask 261120
  %s31 = scalar_lea.vmem %s1, 32
  %32 = vst.msk [vmem:[%s31] ss:$8 sm:$0xf] %vm30, %v29
  %s33 = scalar_lea.vmem %s1, 1
  %34 = vst.msk [vmem:[%s33] ss:$8 sm:$0xf0] %vm30, %v29
  %s35 = scalar_lea.vmem %s0, 160
  %v36 = vld [vmem:[%s35] ss:$4 sm:$0xff]
  %vm37 = vcmask 261120
  %s38 = scalar_lea.vmem %s1, 34
  %39 = vst.msk [vmem:[%s38] ss:$8 sm:$0xf] %vm37, %v36
  %s40 = scalar_lea.vmem %s1, 3
  %41 = vst.msk [vmem:[%s40] ss:$8 sm:$0xf0] %vm37, %v36
  %s42 = scalar_lea.vmem %s0, 192
  %v43 = vld [vmem:[%s42] ss:$4 sm:$0xff]
  %vm44 = vcmask 261120
  %s45 = scalar_lea.vmem %s1, 36
  %46 = vst.msk [vmem:[%s45] ss:$8 sm:$0xf] %vm44, %v43
  %s47 = scalar_lea.vmem %s1, 5
  %48 = vst.msk [vmem:[%s47] ss:$8 sm:$0xf0] %vm44, %v43
  %s49 = scalar_lea.vmem %s0, 224
  %v50 = vld [vmem:[%s49] ss:$4 sm:$0xff]
  %vm51 = vcmask 261120
  %s52 = scalar_lea.vmem %s1, 38
  %53 = vst.msk [vmem:[%s52] ss:$8 sm:$0xf] %vm51, %v50
  %s54 = scalar_lea.vmem %s1, 7
  %55 = vst.msk [vmem:[%s54] ss:$8 sm:$0xf0] %vm51, %v50
  %s56 = scalar_lea.vmem %s0, 256
  %v57 = vld [vmem:[%s56] ss:$4 sm:$0xff]
  %vm58 = vcmask 261120
  %s59 = scalar_lea.vmem %s1, 64
  %60 = vst.msk [vmem:[%s59] ss:$8 sm:$0xf] %vm58, %v57
  %s61 = scalar_lea.vmem %s1, 33
  %62 = vst.msk [vmem:[%s61] ss:$8 sm:$0xf0] %vm58, %v57
  %s63 = scalar_lea.vmem %s0, 288
  %v64 = vld [vmem:[%s63] ss:$4 sm:$0xff]
  %vm65 = vcmask 261120
  %s66 = scalar_lea.vmem %s1, 66
  %67 = vst.msk [vmem:[%s66] ss:$8 sm:$0xf] %vm65, %v64
  %s68 = scalar_lea.vmem %s1, 35
  %69 = vst.msk [vmem:[%s68] ss:$8 sm:$0xf0] %vm65, %v64
  %s70 = scalar_lea.vmem %s0, 320
  %v71 = vld [vmem:[%s70] ss:$4 sm:$0xff]
  %vm72 = vcmask 261120
  %s73 = scalar_lea.vmem %s1, 68
  %74 = vst.msk [vmem:[%s73] ss:$8 sm:$0xf] %vm72, %v71
  %s75 = scalar_lea.vmem %s1, 37
  %76 = vst.msk [vmem:[%s75] ss:$8 sm:$0xf0] %vm72, %v71
  %s77 = scalar_lea.vmem %s0, 352
  %v78 = vld [vmem:[%s77] ss:$4 sm:$0xff]
  %vm79 = vcmask 261120
  %s80 = scalar_lea.vmem %s1, 70
  %81 = vst.msk [vmem:[%s80] ss:$8 sm:$0xf] %vm79, %v78
  %s82 = scalar_lea.vmem %s1, 39
  %83 = vst.msk [vmem:[%s82] ss:$8 sm:$0xf0] %vm79, %v78
  %s84 = scalar_lea.vmem %s0, 384
  %v85 = vld [vmem:[%s84] ss:$4 sm:$0xff]
  %vm86 = vcmask 261120
  %s87 = scalar_lea.vmem %s1, 96
  %88 = vst.msk [vmem:[%s87] ss:$8 sm:$0xf] %vm86, %v85
  %s89 = scalar_lea.vmem %s1, 65
  %90 = vst.msk [vmem:[%s89] ss:$8 sm:$0xf0] %vm86, %v85
  %s91 = scalar_lea.vmem %s0, 416
  %v92 = vld [vmem:[%s91] ss:$4 sm:$0xff]
  %vm93 = vcmask 261120
  %s94 = scalar_lea.vmem %s1, 98
  %95 = vst.msk [vmem:[%s94] ss:$8 sm:$0xf] %vm93, %v92
  %s96 = scalar_lea.vmem %s1, 67
  %97 = vst.msk [vmem:[%s96] ss:$8 sm:$0xf0] %vm93, %v92
  %s98 = scalar_lea.vmem %s0, 448
  %v99 = vld [vmem:[%s98] ss:$4 sm:$0xff]
  %vm100 = vcmask 261120
  %s101 = scalar_lea.vmem %s1, 100
  %102 = vst.msk [vmem:[%s101] ss:$8 sm:$0xf] %vm100, %v99
  %s103 = scalar_lea.vmem %s1, 69
  %104 = vst.msk [vmem:[%s103] ss:$8 sm:$0xf0] %vm100, %v99
  %s105 = scalar_lea.vmem %s0, 480
  %v106 = vld [vmem:[%s105] ss:$4 sm:$0xff]
  %vm107 = vcmask 261120
  %s108 = scalar_lea.vmem %s1, 102
  %109 = vst.msk [vmem:[%s108] ss:$8 sm:$0xf] %vm107, %v106
  %s110 = scalar_lea.vmem %s1, 71
  %111 = vst.msk [vmem:[%s110] ss:$8 sm:$0xf0] %vm107, %v106
  %s112 = scalar_lea.vmem %s0, 3
  %s113 = smov 3
  %v114 = vld [vmem:[%s112] ss:$16 sm:%s113]
  %s115 = scalar_lea.vmem %s0, 3
  %s116 = smov 12
  %v117 = vld [vmem:[%s115] ss:$16 sm:%s116]
  %vm118 = vcmask 1043458
  %v119 = vsel %vm118, %v117, %v114
  %s120 = scalar_lea.vmem %s0, 3
  %s121 = smov 48
  %v122 = vld [vmem:[%s120] ss:$16 sm:%s121]
  %vm123 = vcmask 1045508
  %v124 = vsel %vm123, %v122, %v119
  %s125 = scalar_lea.vmem %s0, 3
  %s126 = smov 192
  %v127 = vld [vmem:[%s125] ss:$16 sm:%s126]
  %vm128 = vcmask 1047558
  %v129 = vsel %vm128, %v127, %v124
  %130 = vrot.lane.b32.xlu0 %v129, 96
  %v131 = vpop.permute.xlu0 %130
  %vm132 = vcmask 1048320
  %133 = vst.msk [vmem:[%s1] sm:$0xff] %vm132, %v131
  %s134 = scalar_lea.vmem %s0, 131
  %s135 = smov 3
  %v136 = vld [vmem:[%s134] ss:$16 sm:%s135]
  %s137 = scalar_lea.vmem %s0, 131
  %s138 = smov 12
  %v139 = vld [vmem:[%s137] ss:$16 sm:%s138]
  %vm140 = vcmask 1043458
  %v141 = vsel %vm140, %v139, %v136
  %s142 = scalar_lea.vmem %s0, 131
  %s143 = smov 48
  %v144 = vld [vmem:[%s142] ss:$16 sm:%s143]
  %vm145 = vcmask 1045508
  %v146 = vsel %vm145, %v144, %v141
  %s147 = scalar_lea.vmem %s0, 131
  %s148 = smov 192
  %v149 = vld [vmem:[%s147] ss:$16 sm:%s148]
  %vm150 = vcmask 1047558
  %v151 = vsel %vm150, %v149, %v146
  %152 = vrot.lane.b32.xlu0 %v151, 96
  %v153 = vpop.permute.xlu0 %152
  %vm154 = vcmask 1048320
  %s155 = scalar_lea.vmem %s1, 32
  %156 = vst.msk [vmem:[%s155] sm:$0xff] %vm154, %v153
  %s157 = scalar_lea.vmem %s0, 259
  %s158 = smov 3
  %v159 = vld [vmem:[%s157] ss:$16 sm:%s158]
  %s160 = scalar_lea.vmem %s0, 259
  %s161 = smov 12
  %v162 = vld [vmem:[%s160] ss:$16 sm:%s161]
  %vm163 = vcmask 1043458
  %v164 = vsel %vm163, %v162, %v159
  %s165 = scalar_lea.vmem %s0, 259
  %s166 = smov 48
  %v167 = vld [vmem:[%s165] ss:$16 sm:%s166]
  %vm168 = vcmask 1045508
  %v169 = vsel %vm168, %v167, %v164
  %s170 = scalar_lea.vmem %s0, 259
  %s171 = smov 192
  %v172 = vld [vmem:[%s170] ss:$16 sm:%s171]
  %vm173 = vcmask 1047558
  %v174 = vsel %vm173, %v172, %v169
  %175 = vrot.lane.b32.xlu0 %v174, 96
  %v176 = vpop.permute.xlu0 %175
  %vm177 = vcmask 1048320
  %s178 = scalar_lea.vmem %s1, 64
  %179 = vst.msk [vmem:[%s178] sm:$0xff] %vm177, %v176
  %s180 = scalar_lea.vmem %s0, 387
  %s181 = smov 3
  %v182 = vld [vmem:[%s180] ss:$16 sm:%s181]
  %s183 = scalar_lea.vmem %s0, 387
  %s184 = smov 12
  %v185 = vld [vmem:[%s183] ss:$16 sm:%s184]
  %vm186 = vcmask 1043458
  %v187 = vsel %vm186, %v185, %v182
  %s188 = scalar_lea.vmem %s0, 387
  %s189 = smov 48
  %v190 = vld [vmem:[%s188] ss:$16 sm:%s189]
  %vm191 = vcmask 1045508
  %v192 = vsel %vm191, %v190, %v187
  %s193 = scalar_lea.vmem %s0, 387
  %s194 = smov 192
  %v195 = vld [vmem:[%s193] ss:$16 sm:%s194]
  %vm196 = vcmask 1047558
  %v197 = vsel %vm196, %v195, %v192
  %198 = vrot.lane.b32.xlu0 %v197, 96
  %v199 = vpop.permute.xlu0 %198
  %vm200 = vcmask 1048320
  %s201 = scalar_lea.vmem %s1, 96
  %202 = vst.msk [vmem:[%s201] sm:$0xff] %vm200, %v199
  %s203 = scalar_lea.vmem %s0, 7
  %s204 = smov 3
  %v205 = vld [vmem:[%s203] ss:$16 sm:%s204]
  %s206 = scalar_lea.vmem %s0, 7
  %s207 = smov 12
  %v208 = vld [vmem:[%s206] ss:$16 sm:%s207]
  %vm209 = vcmask 1043458
  %v210 = vsel %vm209, %v208, %v205
  %s211 = scalar_lea.vmem %s0, 7
  %s212 = smov 48
  %v213 = vld [vmem:[%s211] ss:$16 sm:%s212]
  %vm214 = vcmask 1045508
  %v215 = vsel %vm214, %v213, %v210
  %s216 = scalar_lea.vmem %s0, 7
  %s217 = smov 192
  %v218 = vld [vmem:[%s216] ss:$16 sm:%s217]
  %vm219 = vcmask 1047558
  %v220 = vsel %vm219, %v218, %v215
  %221 = vrot.lane.b32.xlu0 %v220, 96
  %v222 = vpop.permute.xlu0 %221
  %vm223 = vcmask 1048320
  %s224 = scalar_lea.vmem %s1, 8
  %225 = vst.msk [vmem:[%s224] sm:$0xff] %vm223, %v222
  %s226 = scalar_lea.vmem %s0, 135
  %s227 = smov 3
  %v228 = vld [vmem:[%s226] ss:$16 sm:%s227]
  %s229 = scalar_lea.vmem %s0, 135
  %s230 = smov 12
  %v231 = vld [vmem:[%s229] ss:$16 sm:%s230]
  %vm232 = vcmask 1043458
  %v233 = vsel %vm232, %v231, %v228
  %s234 = scalar_lea.vmem %s0, 135
  %s235 = smov 48
  %v236 = vld [vmem:[%s234] ss:$16 sm:%s235]
  %vm237 = vcmask 1045508
  %v238 = vsel %vm237, %v236, %v233
  %s239 = scalar_lea.vmem %s0, 135
  %s240 = smov 192
  %v241 = vld [vmem:[%s239] ss:$16 sm:%s240]
  %vm242 = vcmask 1047558
  %v243 = vsel %vm242, %v241, %v238
  %244 = vrot.lane.b32.xlu0 %v243, 96
  %v245 = vpop.permute.xlu0 %244
  %vm246 = vcmask 1048320
  %s247 = scalar_lea.vmem %s1, 40
  %248 = vst.msk [vmem:[%s247] sm:$0xff] %vm246, %v245
  %s249 = scalar_lea.vmem %s0, 263
  %s250 = smov 3
  %v251 = vld [vmem:[%s249] ss:$16 sm:%s250]
  %s252 = scalar_lea.vmem %s0, 263
  %s253 = smov 12
  %v254 = vld [vmem:[%s252] ss:$16 sm:%s253]
  %vm255 = vcmask 1043458
  %v256 = vsel %vm255, %v254, %v251
  %s257 = scalar_lea.vmem %s0, 263
  %s258 = smov 48
  %v259 = vld [vmem:[%s257] ss:$16 sm:%s258]
  %vm260 = vcmask 1045508
  %v261 = vsel %vm260, %v259, %v256
  %s262 = scalar_lea.vmem %s0, 263
  %s263 = smov 192
  %v264 = vld [vmem:[%s262] ss:$16 sm:%s263]
  %vm265 = vcmask 1047558
  %v266 = vsel %vm265, %v264, %v261
  %267 = vrot.lane.b32.xlu0 %v266, 96
  %v268 = vpop.permute.xlu0 %267
  %vm269 = vcmask 1048320
  %s270 = scalar_lea.vmem %s1, 72
  %271 = vst.msk [vmem:[%s270] sm:$0xff] %vm269, %v268
  %s272 = scalar_lea.vmem %s0, 391
  %s273 = smov 3
  %v274 = vld [vmem:[%s272] ss:$16 sm:%s273]
  %s275 = scalar_lea.vmem %s0, 391
  %s276 = smov 12
  %v277 = vld [vmem:[%s275] ss:$16 sm:%s276]
  %vm278 = vcmask 1043458
  %v279 = vsel %vm278, %v277, %v274
  %s280 = scalar_lea.vmem %s0, 391
  %s281 = smov 48
  %v282 = vld [vmem:[%s280] ss:$16 sm:%s281]
  %vm283 = vcmask 1045508
  %v284 = vsel %vm283, %v282, %v279
  %s285 = scalar_lea.vmem %s0, 391
  %s286 = smov 192
  %v287 = vld [vmem:[%s285] ss:$16 sm:%s286]
  %vm288 = vcmask 1047558
  %v289 = vsel %vm288, %v287, %v284
  %290 = vrot.lane.b32.xlu0 %v289, 96
  %v291 = vpop.permute.xlu0 %290
  %vm292 = vcmask 1048320
  %s293 = scalar_lea.vmem %s1, 104
  %294 = vst.msk [vmem:[%s293] sm:$0xff] %vm292, %v291
  %s295 = scalar_lea.vmem %s0, 11
  %s296 = smov 3
  %v297 = vld [vmem:[%s295] ss:$16 sm:%s296]
  %s298 = scalar_lea.vmem %s0, 11
  %s299 = smov 12
  %v300 = vld [vmem:[%s298] ss:$16 sm:%s299]
  %vm301 = vcmask 1043458
  %v302 = vsel %vm301, %v300, %v297
  %s303 = scalar_lea.vmem %s0, 11
  %s304 = smov 48
  %v305 = vld [vmem:[%s303] ss:$16 sm:%s304]
  %vm306 = vcmask 1045508
  %v307 = vsel %vm306, %v305, %v302
  %s308 = scalar_lea.vmem %s0, 11
  %s309 = smov 192
  %v310 = vld [vmem:[%s308] ss:$16 sm:%s309]
  %vm311 = vcmask 1047558
  %v312 = vsel %vm311, %v310, %v307
  %313 = vrot.lane.b32.xlu0 %v312, 96
  %v314 = vpop.permute.xlu0 %313
  %vm315 = vcmask 1048320
  %s316 = scalar_lea.vmem %s1, 16
  %317 = vst.msk [vmem:[%s316] sm:$0xff] %vm315, %v314
  %s318 = scalar_lea.vmem %s0, 139
  %s319 = smov 3
  %v320 = vld [vmem:[%s318] ss:$16 sm:%s319]
  %s321 = scalar_lea.vmem %s0, 139
  %s322 = smov 12
  %v323 = vld [vmem:[%s321] ss:$16 sm:%s322]
  %vm324 = vcmask 1043458
  %v325 = vsel %vm324, %v323, %v320
  %s326 = scalar_lea.vmem %s0, 139
  %s327 = smov 48
  %v328 = vld [vmem:[%s326] ss:$16 sm:%s327]
  %vm329 = vcmask 1045508
  %v330 = vsel %vm329, %v328, %v325
  %s331 = scalar_lea.vmem %s0, 139
  %s332 = smov 192
  %v333 = vld [vmem:[%s331] ss:$16 sm:%s332]
  %vm334 = vcmask 1047558
  %v335 = vsel %vm334, %v333, %v330
  %336 = vrot.lane.b32.xlu0 %v335, 96
  %v337 = vpop.permute.xlu0 %336
  %vm338 = vcmask 1048320
  %s339 = scalar_lea.vmem %s1, 48
  %340 = vst.msk [vmem:[%s339] sm:$0xff] %vm338, %v337
  %s341 = scalar_lea.vmem %s0, 267
  %s342 = smov 3
  %v343 = vld [vmem:[%s341] ss:$16 sm:%s342]
  %s344 = scalar_lea.vmem %s0, 267
  %s345 = smov 12
  %v346 = vld [vmem:[%s344] ss:$16 sm:%s345]
  %vm347 = vcmask 1043458
  %v348 = vsel %vm347, %v346, %v343
  %s349 = scalar_lea.vmem %s0, 267
  %s350 = smov 48
  %v351 = vld [vmem:[%s349] ss:$16 sm:%s350]
  %vm352 = vcmask 1045508
  %v353 = vsel %vm352, %v351, %v348
  %s354 = scalar_lea.vmem %s0, 267
  %s355 = smov 192
  %v356 = vld [vmem:[%s354] ss:$16 sm:%s355]
  %vm357 = vcmask 1047558
  %v358 = vsel %vm357, %v356, %v353
  %359 = vrot.lane.b32.xlu0 %v358, 96
  %v360 = vpop.permute.xlu0 %359
  %vm361 = vcmask 1048320
  %s362 = scalar_lea.vmem %s1, 80
  %363 = vst.msk [vmem:[%s362] sm:$0xff] %vm361, %v360
  %s364 = scalar_lea.vmem %s0, 395
  %s365 = smov 3
  %v366 = vld [vmem:[%s364] ss:$16 sm:%s365]
  %s367 = scalar_lea.vmem %s0, 395
  %s368 = smov 12
  %v369 = vld [vmem:[%s367] ss:$16 sm:%s368]
  %vm370 = vcmask 1043458
  %v371 = vsel %vm370, %v369, %v366
  %s372 = scalar_lea.vmem %s0, 395
  %s373 = smov 48
  %v374 = vld [vmem:[%s372] ss:$16 sm:%s373]
  %vm375 = vcmask 1045508
  %v376 = vsel %vm375, %v374, %v371
  %s377 = scalar_lea.vmem %s0, 395
  %s378 = smov 192
  %v379 = vld [vmem:[%s377] ss:$16 sm:%s378]
  %vm380 = vcmask 1047558
  %v381 = vsel %vm380, %v379, %v376
  %382 = vrot.lane.b32.xlu0 %v381, 96
  %v383 = vpop.permute.xlu0 %382
  %vm384 = vcmask 1048320
  %s385 = scalar_lea.vmem %s1, 112
  %386 = vst.msk [vmem:[%s385] sm:$0xff] %vm384, %v383
  %s387 = scalar_lea.vmem %s0, 15
  %s388 = smov 3
  %v389 = vld [vmem:[%s387] ss:$16 sm:%s388]
  %s390 = scalar_lea.vmem %s0, 15
  %s391 = smov 12
  %v392 = vld [vmem:[%s390] ss:$16 sm:%s391]
  %vm393 = vcmask 1043458
  %v394 = vsel %vm393, %v392, %v389
  %s395 = scalar_lea.vmem %s0, 15
  %s396 = smov 48
  %v397 = vld [vmem:[%s395] ss:$16 sm:%s396]
  %vm398 = vcmask 1045508
  %v399 = vsel %vm398, %v397, %v394
  %s400 = scalar_lea.vmem %s0, 15
  %s401 = smov 192
  %v402 = vld [vmem:[%s400] ss:$16 sm:%s401]
  %vm403 = vcmask 1047558
  %v404 = vsel %vm403, %v402, %v399
  %405 = vrot.lane.b32.xlu0 %v404, 96
  %v406 = vpop.permute.xlu0 %405
  %vm407 = vcmask 1048320
  %s408 = scalar_lea.vmem %s1, 24
  %409 = vst.msk [vmem:[%s408] sm:$0xff] %vm407, %v406
  %s410 = scalar_lea.vmem %s0, 143
  %s411 = smov 3
  %v412 = vld [vmem:[%s410] ss:$16 sm:%s411]
  %s413 = scalar_lea.vmem %s0, 143
  %s414 = smov 12
  %v415 = vld [vmem:[%s413] ss:$16 sm:%s414]
  %vm416 = vcmask 1043458
  %v417 = vsel %vm416, %v415, %v412
  %s418 = scalar_lea.vmem %s0, 143
  %s419 = smov 48
  %v420 = vld [vmem:[%s418] ss:$16 sm:%s419]
  %vm421 = vcmask 1045508
  %v422 = vsel %vm421, %v420, %v417
  %s423 = scalar_lea.vmem %s0, 143
  %s424 = smov 192
  %v425 = vld [vmem:[%s423] ss:$16 sm:%s424]
  %vm426 = vcmask 1047558
  %v427 = vsel %vm426, %v425, %v422
  %428 = vrot.lane.b32.xlu0 %v427, 96
  %v429 = vpop.permute.xlu0 %428
  %vm430 = vcmask 1048320
  %s431 = scalar_lea.vmem %s1, 56
  %432 = vst.msk [vmem:[%s431] sm:$0xff] %vm430, %v429
  %s433 = scalar_lea.vmem %s0, 271
  %s434 = smov 3
  %v435 = vld [vmem:[%s433] ss:$16 sm:%s434]
  %s436 = scalar_lea.vmem %s0, 271
  %s437 = smov 12
  %v438 = vld [vmem:[%s436] ss:$16 sm:%s437]
  %vm439 = vcmask 1043458
  %v440 = vsel %vm439, %v438, %v435
  %s441 = scalar_lea.vmem %s0, 271
  %s442 = smov 48
  %v443 = vld [vmem:[%s441] ss:$16 sm:%s442]
  %vm444 = vcmask 1045508
  %v445 = vsel %vm444, %v443, %v440
  %s446 = scalar_lea.vmem %s0, 271
  %s447 = smov 192
  %v448 = vld [vmem:[%s446] ss:$16 sm:%s447]
  %vm449 = vcmask 1047558
  %v450 = vsel %vm449, %v448, %v445
  %451 = vrot.lane.b32.xlu0 %v450, 96
  %v452 = vpop.permute.xlu0 %451
  %vm453 = vcmask 1048320
  %s454 = scalar_lea.vmem %s1, 88
  %455 = vst.msk [vmem:[%s454] sm:$0xff] %vm453, %v452
  %s456 = scalar_lea.vmem %s0, 399
  %s457 = smov 3
  %v458 = vld [vmem:[%s456] ss:$16 sm:%s457]
  %s459 = scalar_lea.vmem %s0, 399
  %s460 = smov 12
  %v461 = vld [vmem:[%s459] ss:$16 sm:%s460]
  %vm462 = vcmask 1043458
  %v463 = vsel %vm462, %v461, %v458
  %s464 = scalar_lea.vmem %s0, 399
  %s465 = smov 48
  %v466 = vld [vmem:[%s464] ss:$16 sm:%s465]
  %vm467 = vcmask 1045508
  %v468 = vsel %vm467, %v466, %v463
  %s469 = scalar_lea.vmem %s0, 399
  %s470 = smov 192
  %v471 = vld [vmem:[%s469] ss:$16 sm:%s470]
  %vm472 = vcmask 1047558
  %v473 = vsel %vm472, %v471, %v468
  %474 = vrot.lane.b32.xlu0 %v473, 96
  %v475 = vpop.permute.xlu0 %474
  %vm476 = vcmask 1048320
  %s477 = scalar_lea.vmem %s1, 120
  %478 = vst.msk [vmem:[%s477] sm:$0xff] %vm476, %v475
  %s479 = scalar_lea.vmem %s0, 2
  %s480 = smov 3
  %v481 = vld [vmem:[%s479] ss:$16 sm:%s480]
  %s482 = scalar_lea.vmem %s0, 2
  %s483 = smov 12
  %v484 = vld [vmem:[%s482] ss:$16 sm:%s483]
  %vm485 = vcmask 1043458
  %v486 = vsel %vm485, %v484, %v481
  %s487 = scalar_lea.vmem %s0, 2
  %s488 = smov 48
  %v489 = vld [vmem:[%s487] ss:$16 sm:%s488]
  %vm490 = vcmask 1045508
  %v491 = vsel %vm490, %v489, %v486
  %s492 = scalar_lea.vmem %s0, 2
  %s493 = smov 192
  %v494 = vld [vmem:[%s492] ss:$16 sm:%s493]
  %vm495 = vcmask 1047558
  %v496 = vsel %vm495, %v494, %v491
  %497 = vrot.lane.b32.xlu0 %v496, 64
  %v498 = vpop.permute.xlu0 %497
  %vm499 = vcmask 785920
  %500 = vst.msk [vmem:[%s1] sm:$0xff] %vm499, %v498
  %s501 = scalar_lea.vmem %s0, 130
  %s502 = smov 3
  %v503 = vld [vmem:[%s501] ss:$16 sm:%s502]
  %s504 = scalar_lea.vmem %s0, 130
  %s505 = smov 12
  %v506 = vld [vmem:[%s504] ss:$16 sm:%s505]
  %vm507 = vcmask 1043458
  %v508 = vsel %vm507, %v506, %v503
  %s509 = scalar_lea.vmem %s0, 130
  %s510 = smov 48
  %v511 = vld [vmem:[%s509] ss:$16 sm:%s510]
  %vm512 = vcmask 1045508
  %v513 = vsel %vm512, %v511, %v508
  %s514 = scalar_lea.vmem %s0, 130
  %s515 = smov 192
  %v516 = vld [vmem:[%s514] ss:$16 sm:%s515]
  %vm517 = vcmask 1047558
  %v518 = vsel %vm517, %v516, %v513
  %519 = vrot.lane.b32.xlu0 %v518, 64
  %v520 = vpop.permute.xlu0 %519
  %vm521 = vcmask 785920
  %s522 = scalar_lea.vmem %s1, 32
  %523 = vst.msk [vmem:[%s522] sm:$0xff] %vm521, %v520
  %s524 = scalar_lea.vmem %s0, 258
  %s525 = smov 3
  %v526 = vld [vmem:[%s524] ss:$16 sm:%s525]
  %s527 = scalar_lea.vmem %s0, 258
  %s528 = smov 12
  %v529 = vld [vmem:[%s527] ss:$16 sm:%s528]
  %vm530 = vcmask 1043458
  %v531 = vsel %vm530, %v529, %v526
  %s532 = scalar_lea.vmem %s0, 258
  %s533 = smov 48
  %v534 = vld [vmem:[%s532] ss:$16 sm:%s533]
  %vm535 = vcmask 1045508
  %v536 = vsel %vm535, %v534, %v531
  %s537 = scalar_lea.vmem %s0, 258
  %s538 = smov 192
  %v539 = vld [vmem:[%s537] ss:$16 sm:%s538]
  %vm540 = vcmask 1047558
  %v541 = vsel %vm540, %v539, %v536
  %542 = vrot.lane.b32.xlu0 %v541, 64
  %v543 = vpop.permute.xlu0 %542
  %vm544 = vcmask 785920
  %s545 = scalar_lea.vmem %s1, 64
  %546 = vst.msk [vmem:[%s545] sm:$0xff] %vm544, %v543
  %s547 = scalar_lea.vmem %s0, 386
  %s548 = smov 3
  %v549 = vld [vmem:[%s547] ss:$16 sm:%s548]
  %s550 = scalar_lea.vmem %s0, 386
  %s551 = smov 12
  %v552 = vld [vmem:[%s550] ss:$16 sm:%s551]
  %vm553 = vcmask 1043458
  %v554 = vsel %vm553, %v552, %v549
  %s555 = scalar_lea.vmem %s0, 386
  %s556 = smov 48
  %v557 = vld [vmem:[%s555] ss:$16 sm:%s556]
  %vm558 = vcmask 1045508
  %v559 = vsel %vm558, %v557, %v554
  %s560 = scalar_lea.vmem %s0, 386
  %s561 = smov 192
  %v562 = vld [vmem:[%s560] ss:$16 sm:%s561]
  %vm563 = vcmask 1047558
  %v564 = vsel %vm563, %v562, %v559
  %565 = vrot.lane.b32.xlu0 %v564, 64
  %v566 = vpop.permute.xlu0 %565
  %vm567 = vcmask 785920
  %s568 = scalar_lea.vmem %s1, 96
  %569 = vst.msk [vmem:[%s568] sm:$0xff] %vm567, %v566
  %s570 = scalar_lea.vmem %s0, 6
  %s571 = smov 3
  %v572 = vld [vmem:[%s570] ss:$16 sm:%s571]
  %s573 = scalar_lea.vmem %s0, 6
  %s574 = smov 12
  %v575 = vld [vmem:[%s573] ss:$16 sm:%s574]
  %vm576 = vcmask 1043458
  %v577 = vsel %vm576, %v575, %v572
  %s578 = scalar_lea.vmem %s0, 6
  %s579 = smov 48
  %v580 = vld [vmem:[%s578] ss:$16 sm:%s579]
  %vm581 = vcmask 1045508
  %v582 = vsel %vm581, %v580, %v577
  %s583 = scalar_lea.vmem %s0, 6
  %s584 = smov 192
  %v585 = vld [vmem:[%s583] ss:$16 sm:%s584]
  %vm586 = vcmask 1047558
  %v587 = vsel %vm586, %v585, %v582
  %588 = vrot.lane.b32.xlu0 %v587, 64
  %v589 = vpop.permute.xlu0 %588
  %vm590 = vcmask 785920
  %s591 = scalar_lea.vmem %s1, 8
  %592 = vst.msk [vmem:[%s591] sm:$0xff] %vm590, %v589
  %s593 = scalar_lea.vmem %s0, 134
  %s594 = smov 3
  %v595 = vld [vmem:[%s593] ss:$16 sm:%s594]
  %s596 = scalar_lea.vmem %s0, 134
  %s597 = smov 12
  %v598 = vld [vmem:[%s596] ss:$16 sm:%s597]
  %vm599 = vcmask 1043458
  %v600 = vsel %vm599, %v598, %v595
  %s601 = scalar_lea.vmem %s0, 134
  %s602 = smov 48
  %v603 = vld [vmem:[%s601] ss:$16 sm:%s602]
  %vm604 = vcmask 1045508
  %v605 = vsel %vm604, %v603, %v600
  %s606 = scalar_lea.vmem %s0, 134
  %s607 = smov 192
  %v608 = vld [vmem:[%s606] ss:$16 sm:%s607]
  %vm609 = vcmask 1047558
  %v610 = vsel %vm609, %v608, %v605
  %611 = vrot.lane.b32.xlu0 %v610, 64
  %v612 = vpop.permute.xlu0 %611
  %vm613 = vcmask 785920
  %s614 = scalar_lea.vmem %s1, 40
  %615 = vst.msk [vmem:[%s614] sm:$0xff] %vm613, %v612
  %s616 = scalar_lea.vmem %s0, 262
  %s617 = smov 3
  %v618 = vld [vmem:[%s616] ss:$16 sm:%s617]
  %s619 = scalar_lea.vmem %s0, 262
  %s620 = smov 12
  %v621 = vld [vmem:[%s619] ss:$16 sm:%s620]
  %vm622 = vcmask 1043458
  %v623 = vsel %vm622, %v621, %v618
  %s624 = scalar_lea.vmem %s0, 262
  %s625 = smov 48
  %v626 = vld [vmem:[%s624] ss:$16 sm:%s625]
  %vm627 = vcmask 1045508
  %v628 = vsel %vm627, %v626, %v623
  %s629 = scalar_lea.vmem %s0, 262
  %s630 = smov 192
  %v631 = vld [vmem:[%s629] ss:$16 sm:%s630]
  %vm632 = vcmask 1047558
  %v633 = vsel %vm632, %v631, %v628
  %634 = vrot.lane.b32.xlu0 %v633, 64
  %v635 = vpop.permute.xlu0 %634
  %vm636 = vcmask 785920
  %s637 = scalar_lea.vmem %s1, 72
  %638 = vst.msk [vmem:[%s637] sm:$0xff] %vm636, %v635
  %s639 = scalar_lea.vmem %s0, 390
  %s640 = smov 3
  %v641 = vld [vmem:[%s639] ss:$16 sm:%s640]
  %s642 = scalar_lea.vmem %s0, 390
  %s643 = smov 12
  %v644 = vld [vmem:[%s642] ss:$16 sm:%s643]
  %vm645 = vcmask 1043458
  %v646 = vsel %vm645, %v644, %v641
  %s647 = scalar_lea.vmem %s0, 390
  %s648 = smov 48
  %v649 = vld [vmem:[%s647] ss:$16 sm:%s648]
  %vm650 = vcmask 1045508
  %v651 = vsel %vm650, %v649, %v646
  %s652 = scalar_lea.vmem %s0, 390
  %s653 = smov 192
  %v654 = vld [vmem:[%s652] ss:$16 sm:%s653]
  %vm655 = vcmask 1047558
  %v656 = vsel %vm655, %v654, %v651
  %657 = vrot.lane.b32.xlu0 %v656, 64
  %v658 = vpop.permute.xlu0 %657
  %vm659 = vcmask 785920
  %s660 = scalar_lea.vmem %s1, 104
  %661 = vst.msk [vmem:[%s660] sm:$0xff] %vm659, %v658
  %s662 = scalar_lea.vmem %s0, 10
  %s663 = smov 3
  %v664 = vld [vmem:[%s662] ss:$16 sm:%s663]
  %s665 = scalar_lea.vmem %s0, 10
  %s666 = smov 12
  %v667 = vld [vmem:[%s665] ss:$16 sm:%s666]
  %vm668 = vcmask 1043458
  %v669 = vsel %vm668, %v667, %v664
  %s670 = scalar_lea.vmem %s0, 10
  %s671 = smov 48
  %v672 = vld [vmem:[%s670] ss:$16 sm:%s671]
  %vm673 = vcmask 1045508
  %v674 = vsel %vm673, %v672, %v669
  %s675 = scalar_lea.vmem %s0, 10
  %s676 = smov 192
  %v677 = vld [vmem:[%s675] ss:$16 sm:%s676]
  %vm678 = vcmask 1047558
  %v679 = vsel %vm678, %v677, %v674
  %680 = vrot.lane.b32.xlu0 %v679, 64
  %v681 = vpop.permute.xlu0 %680
  %vm682 = vcmask 785920
  %s683 = scalar_lea.vmem %s1, 16
  %684 = vst.msk [vmem:[%s683] sm:$0xff] %vm682, %v681
  %s685 = scalar_lea.vmem %s0, 138
  %s686 = smov 3
  %v687 = vld [vmem:[%s685] ss:$16 sm:%s686]
  %s688 = scalar_lea.vmem %s0, 138
  %s689 = smov 12
  %v690 = vld [vmem:[%s688] ss:$16 sm:%s689]
  %vm691 = vcmask 1043458
  %v692 = vsel %vm691, %v690, %v687
  %s693 = scalar_lea.vmem %s0, 138
  %s694 = smov 48
  %v695 = vld [vmem:[%s693] ss:$16 sm:%s694]
  %vm696 = vcmask 1045508
  %v697 = vsel %vm696, %v695, %v692
  %s698 = scalar_lea.vmem %s0, 138
  %s699 = smov 192
  %v700 = vld [vmem:[%s698] ss:$16 sm:%s699]
  %vm701 = vcmask 1047558
  %v702 = vsel %vm701, %v700, %v697
  %703 = vrot.lane.b32.xlu0 %v702, 64
  %v704 = vpop.permute.xlu0 %703
  %vm705 = vcmask 785920
  %s706 = scalar_lea.vmem %s1, 48
  %707 = vst.msk [vmem:[%s706] sm:$0xff] %vm705, %v704
  %s708 = scalar_lea.vmem %s0, 266
  %s709 = smov 3
  %v710 = vld [vmem:[%s708] ss:$16 sm:%s709]
  %s711 = scalar_lea.vmem %s0, 266
  %s712 = smov 12
  %v713 = vld [vmem:[%s711] ss:$16 sm:%s712]
  %vm714 = vcmask 1043458
  %v715 = vsel %vm714, %v713, %v710
  %s716 = scalar_lea.vmem %s0, 266
  %s717 = smov 48
  %v718 = vld [vmem:[%s716] ss:$16 sm:%s717]
  %vm719 = vcmask 1045508
  %v720 = vsel %vm719, %v718, %v715
  %s721 = scalar_lea.vmem %s0, 266
  %s722 = smov 192
  %v723 = vld [vmem:[%s721] ss:$16 sm:%s722]
  %vm724 = vcmask 1047558
  %v725 = vsel %vm724, %v723, %v720
  %726 = vrot.lane.b32.xlu0 %v725, 64
  %v727 = vpop.permute.xlu0 %726
  %vm728 = vcmask 785920
  %s729 = scalar_lea.vmem %s1, 80
  %730 = vst.msk [vmem:[%s729] sm:$0xff] %vm728, %v727
  %s731 = scalar_lea.vmem %s0, 394
  %s732 = smov 3
  %v733 = vld [vmem:[%s731] ss:$16 sm:%s732]
  %s734 = scalar_lea.vmem %s0, 394
  %s735 = smov 12
  %v736 = vld [vmem:[%s734] ss:$16 sm:%s735]
  %vm737 = vcmask 1043458
  %v738 = vsel %vm737, %v736, %v733
  %s739 = scalar_lea.vmem %s0, 394
  %s740 = smov 48
  %v741 = vld [vmem:[%s739] ss:$16 sm:%s740]
  %vm742 = vcmask 1045508
  %v743 = vsel %vm742, %v741, %v738
  %s744 = scalar_lea.vmem %s0, 394
  %s745 = smov 192
  %v746 = vld [vmem:[%s744] ss:$16 sm:%s745]
  %vm747 = vcmask 1047558
  %v748 = vsel %vm747, %v746, %v743
  %749 = vrot.lane.b32.xlu0 %v748, 64
  %v750 = vpop.permute.xlu0 %749
  %vm751 = vcmask 785920
  %s752 = scalar_lea.vmem %s1, 112
  %753 = vst.msk [vmem:[%s752] sm:$0xff] %vm751, %v750
  %s754 = scalar_lea.vmem %s0, 14
  %s755 = smov 3
  %v756 = vld [vmem:[%s754] ss:$16 sm:%s755]
  %s757 = scalar_lea.vmem %s0, 14
  %s758 = smov 12
  %v759 = vld [vmem:[%s757] ss:$16 sm:%s758]
  %vm760 = vcmask 1043458
  %v761 = vsel %vm760, %v759, %v756
  %s762 = scalar_lea.vmem %s0, 14
  %s763 = smov 48
  %v764 = vld [vmem:[%s762] ss:$16 sm:%s763]
  %vm765 = vcmask 1045508
  %v766 = vsel %vm765, %v764, %v761
  %s767 = scalar_lea.vmem %s0, 14
  %s768 = smov 192
  %v769 = vld [vmem:[%s767] ss:$16 sm:%s768]
  %vm770 = vcmask 1047558
  %v771 = vsel %vm770, %v769, %v766
  %772 = vrot.lane.b32.xlu0 %v771, 64
  %v773 = vpop.permute.xlu0 %772
  %vm774 = vcmask 785920
  %s775 = scalar_lea.vmem %s1, 24
  %776 = vst.msk [vmem:[%s775] sm:$0xff] %vm774, %v773
  %s777 = scalar_lea.vmem %s0, 142
  %s778 = smov 3
  %v779 = vld [vmem:[%s777] ss:$16 sm:%s778]
  %s780 = scalar_lea.vmem %s0, 142
  %s781 = smov 12
  %v782 = vld [vmem:[%s780] ss:$16 sm:%s781]
  %vm783 = vcmask 1043458
  %v784 = vsel %vm783, %v782, %v779
  %s785 = scalar_lea.vmem %s0, 142
  %s786 = smov 48
  %v787 = vld [vmem:[%s785] ss:$16 sm:%s786]
  %vm788 = vcmask 1045508
  %v789 = vsel %vm788, %v787, %v784
  %s790 = scalar_lea.vmem %s0, 142
  %s791 = smov 192
  %v792 = vld [vmem:[%s790] ss:$16 sm:%s791]
  %vm793 = vcmask 1047558
  %v794 = vsel %vm793, %v792, %v789
  %795 = vrot.lane.b32.xlu0 %v794, 64
  %v796 = vpop.permute.xlu0 %795
  %vm797 = vcmask 785920
  %s798 = scalar_lea.vmem %s1, 56
  %799 = vst.msk [vmem:[%s798] sm:$0xff] %vm797, %v796
  %s800 = scalar_lea.vmem %s0, 270
  %s801 = smov 3
  %v802 = vld [vmem:[%s800] ss:$16 sm:%s801]
  %s803 = scalar_lea.vmem %s0, 270
  %s804 = smov 12
  %v805 = vld [vmem:[%s803] ss:$16 sm:%s804]
  %vm806 = vcmask 1043458
  %v807 = vsel %vm806, %v805, %v802
  %s808 = scalar_lea.vmem %s0, 270
  %s809 = smov 48
  %v810 = vld [vmem:[%s808] ss:$16 sm:%s809]
  %vm811 = vcmask 1045508
  %v812 = vsel %vm811, %v810, %v807
  %s813 = scalar_lea.vmem %s0, 270
  %s814 = smov 192
  %v815 = vld [vmem:[%s813] ss:$16 sm:%s814]
  %vm816 = vcmask 1047558
  %v817 = vsel %vm816, %v815, %v812
  %818 = vrot.lane.b32.xlu0 %v817, 64
  %v819 = vpop.permute.xlu0 %818
  %vm820 = vcmask 785920
  %s821 = scalar_lea.vmem %s1, 88
  %822 = vst.msk [vmem:[%s821] sm:$0xff] %vm820, %v819
  %s823 = scalar_lea.vmem %s0, 398
  %s824 = smov 3
  %v825 = vld [vmem:[%s823] ss:$16 sm:%s824]
  %s826 = scalar_lea.vmem %s0, 398
  %s827 = smov 12
  %v828 = vld [vmem:[%s826] ss:$16 sm:%s827]
  %vm829 = vcmask 1043458
  %v830 = vsel %vm829, %v828, %v825
  %s831 = scalar_lea.vmem %s0, 398
  %s832 = smov 48
  %v833 = vld [vmem:[%s831] ss:$16 sm:%s832]
  %vm834 = vcmask 1045508
  %v835 = vsel %vm834, %v833, %v830
  %s836 = scalar_lea.vmem %s0, 398
  %s837 = smov 192
  %v838 = vld [vmem:[%s836] ss:$16 sm:%s837]
  %vm839 = vcmask 1047558
  %v840 = vsel %vm839, %v838, %v835
  %841 = vrot.lane.b32.xlu0 %v840, 64
  %v842 = vpop.permute.xlu0 %841
  %vm843 = vcmask 785920
  %s844 = scalar_lea.vmem %s1, 120
  %845 = vst.msk [vmem:[%s844] sm:$0xff] %vm843, %v842
  %s846 = scalar_lea.vmem %s0, 1
  %s847 = smov 3
  %v848 = vld [vmem:[%s846] ss:$16 sm:%s847]
  %s849 = scalar_lea.vmem %s0, 1
  %s850 = smov 12
  %v851 = vld [vmem:[%s849] ss:$16 sm:%s850]
  %vm852 = vcmask 1043458
  %v853 = vsel %vm852, %v851, %v848
  %s854 = scalar_lea.vmem %s0, 1
  %s855 = smov 48
  %v856 = vld [vmem:[%s854] ss:$16 sm:%s855]
  %vm857 = vcmask 1045508
  %v858 = vsel %vm857, %v856, %v853
  %s859 = scalar_lea.vmem %s0, 1
  %s860 = smov 192
  %v861 = vld [vmem:[%s859] ss:$16 sm:%s860]
  %vm862 = vcmask 1047558
  %v863 = vsel %vm862, %v861, %v858
  %864 = vrot.lane.b32.xlu0 %v863, 32
  %v865 = vpop.permute.xlu0 %864
  %vm866 = vcmask 523520
  %867 = vst.msk [vmem:[%s1] sm:$0xff] %vm866, %v865
  %s868 = scalar_lea.vmem %s0, 129
  %s869 = smov 3
  %v870 = vld [vmem:[%s868] ss:$16 sm:%s869]
  %s871 = scalar_lea.vmem %s0, 129
  %s872 = smov 12
  %v873 = vld [vmem:[%s871] ss:$16 sm:%s872]
  %vm874 = vcmask 1043458
  %v875 = vsel %vm874, %v873, %v870
  %s876 = scalar_lea.vmem %s0, 129
  %s877 = smov 48
  %v878 = vld [vmem:[%s876] ss:$16 sm:%s877]
  %vm879 = vcmask 1045508
  %v880 = vsel %vm879, %v878, %v875
  %s881 = scalar_lea.vmem %s0, 129
  %s882 = smov 192
  %v883 = vld [vmem:[%s881] ss:$16 sm:%s882]
  %vm884 = vcmask 1047558
  %v885 = vsel %vm884, %v883, %v880
  %886 = vrot.lane.b32.xlu0 %v885, 32
  %v887 = vpop.permute.xlu0 %886
  %vm888 = vcmask 523520
  %s889 = scalar_lea.vmem %s1, 32
  %890 = vst.msk [vmem:[%s889] sm:$0xff] %vm888, %v887
  %s891 = scalar_lea.vmem %s0, 257
  %s892 = smov 3
  %v893 = vld [vmem:[%s891] ss:$16 sm:%s892]
  %s894 = scalar_lea.vmem %s0, 257
  %s895 = smov 12
  %v896 = vld [vmem:[%s894] ss:$16 sm:%s895]
  %vm897 = vcmask 1043458
  %v898 = vsel %vm897, %v896, %v893
  %s899 = scalar_lea.vmem %s0, 257
  %s900 = smov 48
  %v901 = vld [vmem:[%s899] ss:$16 sm:%s900]
  %vm902 = vcmask 1045508
  %v903 = vsel %vm902, %v901, %v898
  %s904 = scalar_lea.vmem %s0, 257
  %s905 = smov 192
  %v906 = vld [vmem:[%s904] ss:$16 sm:%s905]
  %vm907 = vcmask 1047558
  %v908 = vsel %vm907, %v906, %v903
  %909 = vrot.lane.b32.xlu0 %v908, 32
  %v910 = vpop.permute.xlu0 %909
  %vm911 = vcmask 523520
  %s912 = scalar_lea.vmem %s1, 64
  %913 = vst.msk [vmem:[%s912] sm:$0xff] %vm911, %v910
  %s914 = scalar_lea.vmem %s0, 385
  %s915 = smov 3
  %v916 = vld [vmem:[%s914] ss:$16 sm:%s915]
  %s917 = scalar_lea.vmem %s0, 385
  %s918 = smov 12
  %v919 = vld [vmem:[%s917] ss:$16 sm:%s918]
  %vm920 = vcmask 1043458
  %v921 = vsel %vm920, %v919, %v916
  %s922 = scalar_lea.vmem %s0, 385
  %s923 = smov 48
  %v924 = vld [vmem:[%s922] ss:$16 sm:%s923]
  %vm925 = vcmask 1045508
  %v926 = vsel %vm925, %v924, %v921
  %s927 = scalar_lea.vmem %s0, 385
  %s928 = smov 192
  %v929 = vld [vmem:[%s927] ss:$16 sm:%s928]
  %vm930 = vcmask 1047558
  %v931 = vsel %vm930, %v929, %v926
  %932 = vrot.lane.b32.xlu0 %v931, 32
  %v933 = vpop.permute.xlu0 %932
  %vm934 = vcmask 523520
  %s935 = scalar_lea.vmem %s1, 96
  %936 = vst.msk [vmem:[%s935] sm:$0xff] %vm934, %v933
  %s937 = scalar_lea.vmem %s0, 5
  %s938 = smov 3
  %v939 = vld [vmem:[%s937] ss:$16 sm:%s938]
  %s940 = scalar_lea.vmem %s0, 5
  %s941 = smov 12
  %v942 = vld [vmem:[%s940] ss:$16 sm:%s941]
  %vm943 = vcmask 1043458
  %v944 = vsel %vm943, %v942, %v939
  %s945 = scalar_lea.vmem %s0, 5
  %s946 = smov 48
  %v947 = vld [vmem:[%s945] ss:$16 sm:%s946]
  %vm948 = vcmask 1045508
  %v949 = vsel %vm948, %v947, %v944
  %s950 = scalar_lea.vmem %s0, 5
  %s951 = smov 192
  %v952 = vld [vmem:[%s950] ss:$16 sm:%s951]
  %vm953 = vcmask 1047558
  %v954 = vsel %vm953, %v952, %v949
  %955 = vrot.lane.b32.xlu0 %v954, 32
  %v956 = vpop.permute.xlu0 %955
  %vm957 = vcmask 523520
  %s958 = scalar_lea.vmem %s1, 8
  %959 = vst.msk [vmem:[%s958] sm:$0xff] %vm957, %v956
  %s960 = scalar_lea.vmem %s0, 133
  %s961 = smov 3
  %v962 = vld [vmem:[%s960] ss:$16 sm:%s961]
  %s963 = scalar_lea.vmem %s0, 133
  %s964 = smov 12
  %v965 = vld [vmem:[%s963] ss:$16 sm:%s964]
  %vm966 = vcmask 1043458
  %v967 = vsel %vm966, %v965, %v962
  %s968 = scalar_lea.vmem %s0, 133
  %s969 = smov 48
  %v970 = vld [vmem:[%s968] ss:$16 sm:%s969]
  %vm971 = vcmask 1045508
  %v972 = vsel %vm971, %v970, %v967
  %s973 = scalar_lea.vmem %s0, 133
  %s974 = smov 192
  %v975 = vld [vmem:[%s973] ss:$16 sm:%s974]
  %vm976 = vcmask 1047558
  %v977 = vsel %vm976, %v975, %v972
  %978 = vrot.lane.b32.xlu0 %v977, 32
  %v979 = vpop.permute.xlu0 %978
  %vm980 = vcmask 523520
  %s981 = scalar_lea.vmem %s1, 40
  %982 = vst.msk [vmem:[%s981] sm:$0xff] %vm980, %v979
  %s983 = scalar_lea.vmem %s0, 261
  %s984 = smov 3
  %v985 = vld [vmem:[%s983] ss:$16 sm:%s984]
  %s986 = scalar_lea.vmem %s0, 261
  %s987 = smov 12
  %v988 = vld [vmem:[%s986] ss:$16 sm:%s987]
  %vm989 = vcmask 1043458
  %v990 = vsel %vm989, %v988, %v985
  %s991 = scalar_lea.vmem %s0, 261
  %s992 = smov 48
  %v993 = vld [vmem:[%s991] ss:$16 sm:%s992]
  %vm994 = vcmask 1045508
  %v995 = vsel %vm994, %v993, %v990
  %s996 = scalar_lea.vmem %s0, 261
  %s997 = smov 192
  %v998 = vld [vmem:[%s996] ss:$16 sm:%s997]
  %vm999 = vcmask 1047558
  %v1000 = vsel %vm999, %v998, %v995
  %1001 = vrot.lane.b32.xlu0 %v1000, 32
  %v1002 = vpop.permute.xlu0 %1001
  %vm1003 = vcmask 523520
  %s1004 = scalar_lea.vmem %s1, 72
  %1005 = vst.msk [vmem:[%s1004] sm:$0xff] %vm1003, %v1002
  %s1006 = scalar_lea.vmem %s0, 389
  %s1007 = smov 3
  %v1008 = vld [vmem:[%s1006] ss:$16 sm:%s1007]
  %s1009 = scalar_lea.vmem %s0, 389
  %s1010 = smov 12
  %v1011 = vld [vmem:[%s1009] ss:$16 sm:%s1010]
  %vm1012 = vcmask 1043458
  %v1013 = vsel %vm1012, %v1011, %v1008
  %s1014 = scalar_lea.vmem %s0, 389
  %s1015 = smov 48
  %v1016 = vld [vmem:[%s1014] ss:$16 sm:%s1015]
  %vm1017 = vcmask 1045508
  %v1018 = vsel %vm1017, %v1016, %v1013
  %s1019 = scalar_lea.vmem %s0, 389
  %s1020 = smov 192
  %v1021 = vld [vmem:[%s1019] ss:$16 sm:%s1020]
  %vm1022 = vcmask 1047558
  %v1023 = vsel %vm1022, %v1021, %v1018
  %1024 = vrot.lane.b32.xlu0 %v1023, 32
  %v1025 = vpop.permute.xlu0 %1024
  %vm1026 = vcmask 523520
  %s1027 = scalar_lea.vmem %s1, 104
  %1028 = vst.msk [vmem:[%s1027] sm:$0xff] %vm1026, %v1025
  %s1029 = scalar_lea.vmem %s0, 9
  %s1030 = smov 3
  %v1031 = vld [vmem:[%s1029] ss:$16 sm:%s1030]
  %s1032 = scalar_lea.vmem %s0, 9
  %s1033 = smov 12
  %v1034 = vld [vmem:[%s1032] ss:$16 sm:%s1033]
  %vm1035 = vcmask 1043458
  %v1036 = vsel %vm1035, %v1034, %v1031
  %s1037 = scalar_lea.vmem %s0, 9
  %s1038 = smov 48
  %v1039 = vld [vmem:[%s1037] ss:$16 sm:%s1038]
  %vm1040 = vcmask 1045508
  %v1041 = vsel %vm1040, %v1039, %v1036
  %s1042 = scalar_lea.vmem %s0, 9
  %s1043 = smov 192
  %v1044 = vld [vmem:[%s1042] ss:$16 sm:%s1043]
  %vm1045 = vcmask 1047558
  %v1046 = vsel %vm1045, %v1044, %v1041
  %1047 = vrot.lane.b32.xlu0 %v1046, 32
  %v1048 = vpop.permute.xlu0 %1047
  %vm1049 = vcmask 523520
  %s1050 = scalar_lea.vmem %s1, 16
  %1051 = vst.msk [vmem:[%s1050] sm:$0xff] %vm1049, %v1048
  %s1052 = scalar_lea.vmem %s0, 137
  %s1053 = smov 3
  %v1054 = vld [vmem:[%s1052] ss:$16 sm:%s1053]
  %s1055 = scalar_lea.vmem %s0, 137
  %s1056 = smov 12
  %v1057 = vld [vmem:[%s1055] ss:$16 sm:%s1056]
  %vm1058 = vcmask 1043458
  %v1059 = vsel %vm1058, %v1057, %v1054
  %s1060 = scalar_lea.vmem %s0, 137
  %s1061 = smov 48
  %v1062 = vld [vmem:[%s1060] ss:$16 sm:%s1061]
  %vm1063 = vcmask 1045508
  %v1064 = vsel %vm1063, %v1062, %v1059
  %s1065 = scalar_lea.vmem %s0, 137
  %s1066 = smov 192
  %v1067 = vld [vmem:[%s1065] ss:$16 sm:%s1066]
  %vm1068 = vcmask 1047558
  %v1069 = vsel %vm1068, %v1067, %v1064
  %1070 = vrot.lane.b32.xlu0 %v1069, 32
  %v1071 = vpop.permute.xlu0 %1070
  %vm1072 = vcmask 523520
  %s1073 = scalar_lea.vmem %s1, 48
  %1074 = vst.msk [vmem:[%s1073] sm:$0xff] %vm1072, %v1071
  %s1075 = scalar_lea.vmem %s0, 265
  %s1076 = smov 3
  %v1077 = vld [vmem:[%s1075] ss:$16 sm:%s1076]
  %s1078 = scalar_lea.vmem %s0, 265
  %s1079 = smov 12
  %v1080 = vld [vmem:[%s1078] ss:$16 sm:%s1079]
  %vm1081 = vcmask 1043458
  %v1082 = vsel %vm1081, %v1080, %v1077
  %s1083 = scalar_lea.vmem %s0, 265
  %s1084 = smov 48
  %v1085 = vld [vmem:[%s1083] ss:$16 sm:%s1084]
  %vm1086 = vcmask 1045508
  %v1087 = vsel %vm1086, %v1085, %v1082
  %s1088 = scalar_lea.vmem %s0, 265
  %s1089 = smov 192
  %v1090 = vld [vmem:[%s1088] ss:$16 sm:%s1089]
  %vm1091 = vcmask 1047558
  %v1092 = vsel %vm1091, %v1090, %v1087
  %1093 = vrot.lane.b32.xlu0 %v1092, 32
  %v1094 = vpop.permute.xlu0 %1093
  %vm1095 = vcmask 523520
  %s1096 = scalar_lea.vmem %s1, 80
  %1097 = vst.msk [vmem:[%s1096] sm:$0xff] %vm1095, %v1094
  %s1098 = scalar_lea.vmem %s0, 393
  %s1099 = smov 3
  %v1100 = vld [vmem:[%s1098] ss:$16 sm:%s1099]
  %s1101 = scalar_lea.vmem %s0, 393
  %s1102 = smov 12
  %v1103 = vld [vmem:[%s1101] ss:$16 sm:%s1102]
  %vm1104 = vcmask 1043458
  %v1105 = vsel %vm1104, %v1103, %v1100
  %s1106 = scalar_lea.vmem %s0, 393
  %s1107 = smov 48
  %v1108 = vld [vmem:[%s1106] ss:$16 sm:%s1107]
  %vm1109 = vcmask 1045508
  %v1110 = vsel %vm1109, %v1108, %v1105
  %s1111 = scalar_lea.vmem %s0, 393
  %s1112 = smov 192
  %v1113 = vld [vmem:[%s1111] ss:$16 sm:%s1112]
  %vm1114 = vcmask 1047558
  %v1115 = vsel %vm1114, %v1113, %v1110
  %1116 = vrot.lane.b32.xlu0 %v1115, 32
  %v1117 = vpop.permute.xlu0 %1116
  %vm1118 = vcmask 523520
  %s1119 = scalar_lea.vmem %s1, 112
  %1120 = vst.msk [vmem:[%s1119] sm:$0xff] %vm1118, %v1117
  %s1121 = scalar_lea.vmem %s0, 13
  %s1122 = smov 3
  %v1123 = vld [vmem:[%s1121] ss:$16 sm:%s1122]
  %s1124 = scalar_lea.vmem %s0, 13
  %s1125 = smov 12
  %v1126 = vld [vmem:[%s1124] ss:$16 sm:%s1125]
  %vm1127 = vcmask 1043458
  %v1128 = vsel %vm1127, %v1126, %v1123
  %s1129 = scalar_lea.vmem %s0, 13
  %s1130 = smov 48
  %v1131 = vld [vmem:[%s1129] ss:$16 sm:%s1130]
  %vm1132 = vcmask 1045508
  %v1133 = vsel %vm1132, %v1131, %v1128
  %s1134 = scalar_lea.vmem %s0, 13
  %s1135 = smov 192
  %v1136 = vld [vmem:[%s1134] ss:$16 sm:%s1135]
  %vm1137 = vcmask 1047558
  %v1138 = vsel %vm1137, %v1136, %v1133
  %1139 = vrot.lane.b32.xlu0 %v1138, 32
  %v1140 = vpop.permute.xlu0 %1139
  %vm1141 = vcmask 523520
  %s1142 = scalar_lea.vmem %s1, 24
  %1143 = vst.msk [vmem:[%s1142] sm:$0xff] %vm1141, %v1140
  %s1144 = scalar_lea.vmem %s0, 141
  %s1145 = smov 3
  %v1146 = vld [vmem:[%s1144] ss:$16 sm:%s1145]
  %s1147 = scalar_lea.vmem %s0, 141
  %s1148 = smov 12
  %v1149 = vld [vmem:[%s1147] ss:$16 sm:%s1148]
  %vm1150 = vcmask 1043458
  %v1151 = vsel %vm1150, %v1149, %v1146
  %s1152 = scalar_lea.vmem %s0, 141
  %s1153 = smov 48
  %v1154 = vld [vmem:[%s1152] ss:$16 sm:%s1153]
  %vm1155 = vcmask 1045508
  %v1156 = vsel %vm1155, %v1154, %v1151
  %s1157 = scalar_lea.vmem %s0, 141
  %s1158 = smov 192
  %v1159 = vld [vmem:[%s1157] ss:$16 sm:%s1158]
  %vm1160 = vcmask 1047558
  %v1161 = vsel %vm1160, %v1159, %v1156
  %1162 = vrot.lane.b32.xlu0 %v1161, 32
  %v1163 = vpop.permute.xlu0 %1162
  %vm1164 = vcmask 523520
  %s1165 = scalar_lea.vmem %s1, 56
  %1166 = vst.msk [vmem:[%s1165] sm:$0xff] %vm1164, %v1163
  %s1167 = scalar_lea.vmem %s0, 269
  %s1168 = smov 3
  %v1169 = vld [vmem:[%s1167] ss:$16 sm:%s1168]
  %s1170 = scalar_lea.vmem %s0, 269
  %s1171 = smov 12
  %v1172 = vld [vmem:[%s1170] ss:$16 sm:%s1171]
  %vm1173 = vcmask 1043458
  %v1174 = vsel %vm1173, %v1172, %v1169
  %s1175 = scalar_lea.vmem %s0, 269
  %s1176 = smov 48
  %v1177 = vld [vmem:[%s1175] ss:$16 sm:%s1176]
  %vm1178 = vcmask 1045508
  %v1179 = vsel %vm1178, %v1177, %v1174
  %s1180 = scalar_lea.vmem %s0, 269
  %s1181 = smov 192
  %v1182 = vld [vmem:[%s1180] ss:$16 sm:%s1181]
  %vm1183 = vcmask 1047558
  %v1184 = vsel %vm1183, %v1182, %v1179
  %1185 = vrot.lane.b32.xlu0 %v1184, 32
  %v1186 = vpop.permute.xlu0 %1185
  %vm1187 = vcmask 523520
  %s1188 = scalar_lea.vmem %s1, 88
  %1189 = vst.msk [vmem:[%s1188] sm:$0xff] %vm1187, %v1186
  %s1190 = scalar_lea.vmem %s0, 397
  %s1191 = smov 3
  %v1192 = vld [vmem:[%s1190] ss:$16 sm:%s1191]
  %s1193 = scalar_lea.vmem %s0, 397
  %s1194 = smov 12
  %v1195 = vld [vmem:[%s1193] ss:$16 sm:%s1194]
  %vm1196 = vcmask 1043458
  %v1197 = vsel %vm1196, %v1195, %v1192
  %s1198 = scalar_lea.vmem %s0, 397
  %s1199 = smov 48
  %v1200 = vld [vmem:[%s1198] ss:$16 sm:%s1199]
  %vm1201 = vcmask 1045508
  %v1202 = vsel %vm1201, %v1200, %v1197
  %s1203 = scalar_lea.vmem %s0, 397
  %s1204 = smov 192
  %v1205 = vld [vmem:[%s1203] ss:$16 sm:%s1204]
  %vm1206 = vcmask 1047558
  %v1207 = vsel %vm1206, %v1205, %v1202
  %1208 = vrot.lane.b32.xlu0 %v1207, 32
  %v1209 = vpop.permute.xlu0 %1208
  %vm1210 = vcmask 523520
  %s1211 = scalar_lea.vmem %s1, 120
  %1212 = vst.msk [vmem:[%s1211] sm:$0xff] %vm1210, %v1209

// kernel: input_embedder_forward.3
$region0: #{input_embedder_forward.3}
  #allocation0 [shape = 'u32[]', space=smem, size = 0x4, offset = 0x4, fixed_abs, tag = 'smem constant byte address 0x4 - core index']
  #allocation1 [shape = 'u32[144,128]{1,0:T(1,128)}', space=vmem, size = 0x12000, scoped, tag = 'internal scratch']
  %s0 = inlined_call_operand.vmem [shape: f32[32,22], index: 0, kind: input, shape index: {}]
  %s1 = inlined_call_operand.vmem [shape: f32[22,32], index: 1, kind: input, shape index: {}]
  %s2 = inlined_call_operand.vmem [shape: f32[1,32], index: 2, kind: input, shape index: {}]
  %s3 = inlined_call_operand.vmem [shape: f32[22,32], index: 3, kind: input, shape index: {}]
  %s4 = inlined_call_operand.vmem [shape: f32[1,32], index: 4, kind: input, shape index: {}]
  %s5 = inlined_call_operand.vmem [shape: f32[1,32], index: 5, kind: input, shape index: {}]
  %s6 = inlined_call_operand.vmem [shape: f32[22,32], index: 6, kind: input, shape index: {}]
  %s7 = inlined_call_operand.vmem [shape: f32[1,32], index: 7, kind: input, shape index: {}]
  %s8 = inlined_call_operand.vmem [shape: f32[1,32], index: 8, kind: input, shape index: {}]
  %s9 = inlined_call_operand.vmem [shape: f32[32,32], index: 9, kind: output, shape index: {0}]
  %s10 = inlined_call_operand.vmem [shape: f32[32,32], index: 10, kind: output, shape index: {1}]
  %s11 = inlined_call_operand.vmem [shape: f32[32,32], index: 11, kind: output, shape index: {2}]
  %12 = xla_tuple %s9, %s10, %s11
  %s13 = sld [smem:[#allocation0]]
  $region62: #{input_embedder_forward.3} parent=0
    _
  %s15 = ssub.s32 1, %s13
  %s16 = scalar_select 0, %s15, %s13
  // Predicated region
  $region2: #{input_embedder_forward.3} parent=0 // pred_check
    _
  $region3: #{input_embedder_forward.3} parent=0 // pred_check_branch
    %18 = sbr.rel (0) target = $region5
  $region4: #{input_embedder_forward.3} parent=0 // pred_region
    _
  $region5: #{input_embedder_forward.3} parent=0 // pred_fallthru
    _
  // Predicated region
  $region6: #{input_embedder_forward.3} parent=0 // pred_check
    _
  $region7: #{input_embedder_forward.3} parent=0 // pred_check_branch
    %20 = sbr.rel (0) target = $region9
  $region8: #{input_embedder_forward.3} parent=0 // pred_region
    _
  $region9: #{input_embedder_forward.3} parent=0 // pred_fallthru
    _
  // Predicated region
  $region10: #{input_embedder_forward.3} parent=0 // pred_check
    _
  $region11: #{input_embedder_forward.3} parent=0 // pred_check_branch
    %22 = sbr.rel (0) target = $region13
  $region12: #{input_embedder_forward.3} parent=0 // pred_region
    _
  $region13: #{input_embedder_forward.3} parent=0 // pred_fallthru
    _
  // Predicated region
  $region14: #{input_embedder_forward.3} parent=0 // pred_check
    _
  $region15: #{input_embedder_forward.3} parent=0 // pred_check_branch
    %24 = sbr.rel (0) target = $region17
  $region16: #{input_embedder_forward.3} parent=0 // pred_region
    _
  $region17: #{input_embedder_forward.3} parent=0 // pred_fallthru
    _
  // Predicated region
  $region18: #{input_embedder_forward.3} parent=0 // pred_check
    _
  $region19: #{input_embedder_forward.3} parent=0 // pred_check_branch
    %26 = sbr.rel (0) target = $region21
  $region20: #{input_embedder_forward.3} parent=0 // pred_region
    _
  $region21: #{input_embedder_forward.3} parent=0 // pred_fallthru
    _
  // Predicated region
  $region22: #{input_embedder_forward.3} parent=0 // pred_check
    _
  $region23: #{input_embedder_forward.3} parent=0 // pred_check_branch
    %28 = sbr.rel (0) target = $region25
  $region24: #{input_embedder_forward.3} parent=0 // pred_region
    _
  $region25: #{input_embedder_forward.3} parent=0 // pred_fallthru
    _
  // Predicated region
  $region26: #{input_embedder_forward.3} parent=0 // pred_check
    _
  $region27: #{input_embedder_forward.3} parent=0 // pred_check_branch
    %30 = sbr.rel (0) target = $region29
  $region28: #{input_embedder_forward.3} parent=0 // pred_region
    _
  $region29: #{input_embedder_forward.3} parent=0 // pred_fallthru
    _
  // Predicated region
  $region30: #{input_embedder_forward.3} parent=0 // pred_check
    _
  $region31: #{input_embedder_forward.3} parent=0 // pred_check_branch
    %32 = sbr.rel (0) target = $region33
  $region32: #{input_embedder_forward.3} parent=0 // pred_region
    _
  $region33: #{input_embedder_forward.3} parent=0 // pred_fallthru
    _
  // Predicated region
  $region34: #{input_embedder_forward.3} parent=0 // pred_check
    _
  $region35: #{input_embedder_forward.3} parent=0 // pred_check_branch
    %34 = sbr.rel (0) target = $region37
  $region36: #{input_embedder_forward.3} parent=0 // pred_region
    _
  $region37: #{input_embedder_forward.3} parent=0 // pred_fallthru
    _
  %v35 = vld [vmem:[%s0] sm:$0xff]
  %v36 = vld [vmem:[%s0 + $0x8] sm:$0xff]
  %v37 = vld [vmem:[%s0 + $0x10] sm:$0xff]
  %v38 = vld [vmem:[%s0 + $0x18] sm:$0xff]
  %v39 = vld [vmem:[%s1] sm:$0xff]
  %v40 = vld [vmem:[%s1 + $0x8] sm:$0xff]
  %v41 = vld [vmem:[%s1 + $0x10] sm:$0x3f]
  %v42 = vld [vmem:[%s2] sm:$0x1]
  %v44 = vlaneseq
  %v45 = vshrl.u32 %v44, 7
  %v46 = vsub.s32 0, %v45
  %v47 = vrot.slane %v42, %v46
  %vm49 = vcmask 179200
  %v51 = vsel %vm49, %v35, 0
  %v54 = vsel %vm49, %v36, 0
  %v57 = vsel %vm49, %v37, 0
  %v60 = vsel %vm49, %v38, 0
  %vm62 = vcmask 1045504
  %v64 = vsel %vm62, %v41, 0
  %66 = vmatprep.subr.mxu0 0.0
  %67 = vmatpush1.msra.mxu0 %v39
  %68 = vmatprep.subr.mxu0 0.0
  %69 = vmatpush1.msra.mxu0 %v40
  %70 = vmatprep.subr.mxu0 0.0
  %71 = vmatpush1.msra.mxu0 %v64
  %72 = vmatprep.subr.mxu0 0.0
  %73 = vmatpush1.msra.mxu0 0.0
  %74 = vmatprep.subr.mxu0 0.0
  %75 = vmatpush1.msra.mxu0 0.0
  %76 = vmatprep.subr.mxu0 0.0
  %77 = vmatpush1.msra.mxu0 0.0
  %78 = vmatprep.subr.mxu0 0.0
  %79 = vmatpush1.msra.mxu0 0.0
  %80 = vmatprep.subr.mxu0 0.0
  %81 = vmatpush1.msra.mxu0 0.0
  %82 = vmatprep.subr.mxu0 0.0
  %83 = vmatpush1.msra.mxu0 0.0
  %84 = vmatprep.subr.mxu0 0.0
  %85 = vmatpush1.msra.mxu0 0.0
  %86 = vmatprep.subr.mxu0 0.0
  %87 = vmatpush1.msra.mxu0 0.0
  %88 = vmatprep.subr.mxu0 0.0
  %89 = vmatpush1.msra.mxu0 0.0
  %90 = vmatprep.subr.mxu0 0.0
  %91 = vmatpush1.msra.mxu0 0.0
  %92 = vmatprep.subr.mxu0 0.0
  %93 = vmatpush1.msra.mxu0 0.0
  %94 = vmatprep.subr.mxu0 0.0
  %95 = vmatpush1.msra.mxu0 0.0
  %96 = vmatprep.subr.mxu0 0.0
  %97 = vmatpush1.msra.mxu0 0.0
  %98 = vmatprep.subr.mxu0 0.0
  %99 = vmatpush1.msra.mxu0 0.0
  %100 = vmatprep.subr.mxu0 0.0
  %101 = vmatpush1.msra.mxu0 0.0
  %102 = vmatprep.subr.mxu0 0.0
  %103 = vmatpush1.msra.mxu0 0.0
  %104 = vmatprep.subr.mxu0 0.0
  %105 = vmatpush1.msra.mxu0 0.0
  %106 = vmatprep.subr.mxu0 0.0
  %107 = vmatpush1.msra.mxu0 0.0
  %108 = vmatprep.subr.mxu0 0.0
  %109 = vmatpush1.msra.mxu0 0.0
  %110 = vmatprep.subr.mxu0 0.0
  %111 = vmatpush1.msra.mxu0 0.0
  %112 = vmatprep.subr.mxu0 0.0
  %113 = vmatpush1.msra.mxu0 0.0
  %114 = vmatprep.subr.mxu0 0.0
  %115 = vmatpush1.msra.mxu0 0.0
  %116 = vmatprep.subr.mxu0 0.0
  %117 = vmatpush1.msra.mxu0 0.0
  %118 = vmatprep.subr.mxu0 0.0
  %119 = vmatpush1.msra.mxu0 0.0
  %120 = vmatprep.subr.mxu0 0.0
  %121 = vmatpush1.msra.mxu0 0.0
  %122 = vmatprep.subr.mxu0 0.0
  %123 = vmatpush1.msra.mxu0 0.0
  %124 = vmatprep.subr.mxu0 0.0
  %125 = vmatpush1.msra.mxu0 0.0
  %126 = vmatprep.subr.mxu0 0.0
  %127 = vmatpush1.msra.mxu0 0.0
  %128 = vmatprep.subr.mxu0 0.0
  %129 = vmatpush1.msra.mxu0 0.0
  %130 = vmatprep.mubr.f32.mxu0 0.0
  %131 = vmatmul.mubr.f32.gmra.mrb[0].mxu0 %v51
  %v132 = vpop.f32.mrb[0].mxu0
  %v133 = vadd.f32 %v47, %v132
  %v134 = vpop.f32.mrb[0].mxu0
  %135 = vmatprep.mubr.f32.mxu0 0.0
  %136 = vmatmul.mubr.f32.gmra.mrb[0].mxu0 %v54
  %v137 = vpop.f32.mrb[0].mxu0
  %v138 = vadd.f32 %v47, %v137
  %v139 = vpop.f32.mrb[0].mxu0
  %140 = vmatprep.mubr.f32.mxu0 0.0
  %141 = vmatmul.mubr.f32.gmra.mrb[0].mxu0 %v57
  %v142 = vpop.f32.mrb[0].mxu0
  %v143 = vadd.f32 %v47, %v142
  %v144 = vpop.f32.mrb[0].mxu0
  %145 = vmatprep.mubr.f32.mxu0 0.0
  %146 = vmatmul.mubr.f32.gmra.mrb[0].mxu0 %v60
  %v147 = vpop.f32.mrb[0].mxu0
  %v148 = vadd.f32 %v47, %v147
  %v149 = vpop.f32.mrb[0].mxu0
  %150 = vdwg.mxu0
  %vm151 = vcmask 261120
  %152 = vst.msk [vmem:[%s9] sm:$0xff] %vm151, %v133
  %153 = vst.msk [vmem:[%s9 + $0x8] sm:$0xff] %vm151, %v138
  %154 = vst.msk [vmem:[%s9 + $0x10] sm:$0xff] %vm151, %v143
  %155 = vst.msk [vmem:[%s9 + $0x18] sm:$0xff] %vm151, %v148
  %v156 = vld [vmem:[%s3] sm:$0xff]
  %v157 = vld [vmem:[%s3 + $0x8] sm:$0xff]
  %v158 = vld [vmem:[%s3 + $0x10] sm:$0x3f]
  %v159 = vld [vmem:[%s4] sm:$0x1]
  %v161 = vlaneseq
  %v162 = vshrl.u32 %v161, 7
  %v163 = vsub.s32 0, %v162
  %v164 = vrot.slane %v159, %v163
  %v167 = vsel %vm62, %v158, 0
  %169 = vmatprep.subr.mxu0 0.0
  %170 = vmatpush1.msra.mxu0 %v156
  %171 = vmatprep.subr.mxu0 0.0
  %172 = vmatpush1.msra.mxu0 %v157
  %173 = vmatprep.subr.mxu0 0.0
  %174 = vmatpush1.msra.mxu0 %v167
  %175 = vmatprep.subr.mxu0 0.0
  %176 = vmatpush1.msra.mxu0 0.0
  %177 = vmatprep.subr.mxu0 0.0
  %178 = vmatpush1.msra.mxu0 0.0
  %179 = vmatprep.subr.mxu0 0.0
  %180 = vmatpush1.msra.mxu0 0.0
  %181 = vmatprep.subr.mxu0 0.0
  %182 = vmatpush1.msra.mxu0 0.0
  %183 = vmatprep.subr.mxu0 0.0
  %184 = vmatpush1.msra.mxu0 0.0
  %185 = vmatprep.subr.mxu0 0.0
  %186 = vmatpush1.msra.mxu0 0.0
  %187 = vmatprep.subr.mxu0 0.0
  %188 = vmatpush1.msra.mxu0 0.0
  %189 = vmatprep.subr.mxu0 0.0
  %190 = vmatpush1.msra.mxu0 0.0
  %191 = vmatprep.subr.mxu0 0.0
  %192 = vmatpush1.msra.mxu0 0.0
  %193 = vmatprep.subr.mxu0 0.0
  %194 = vmatpush1.msra.mxu0 0.0
  %195 = vmatprep.subr.mxu0 0.0
  %196 = vmatpush1.msra.mxu0 0.0
  %197 = vmatprep.subr.mxu0 0.0
  %198 = vmatpush1.msra.mxu0 0.0
  %199 = vmatprep.subr.mxu0 0.0
  %200 = vmatpush1.msra.mxu0 0.0
  %201 = vmatprep.subr.mxu0 0.0
  %202 = vmatpush1.msra.mxu0 0.0
  %203 = vmatprep.subr.mxu0 0.0
  %204 = vmatpush1.msra.mxu0 0.0
  %205 = vmatprep.subr.mxu0 0.0
  %206 = vmatpush1.msra.mxu0 0.0
  %207 = vmatprep.subr.mxu0 0.0
  %208 = vmatpush1.msra.mxu0 0.0
  %209 = vmatprep.subr.mxu0 0.0
  %210 = vmatpush1.msra.mxu0 0.0
  %211 = vmatprep.subr.mxu0 0.0
  %212 = vmatpush1.msra.mxu0 0.0
  %213 = vmatprep.subr.mxu0 0.0
  %214 = vmatpush1.msra.mxu0 0.0
  %215 = vmatprep.subr.mxu0 0.0
  %216 = vmatpush1.msra.mxu0 0.0
  %217 = vmatprep.subr.mxu0 0.0
  %218 = vmatpush1.msra.mxu0 0.0
  %219 = vmatprep.subr.mxu0 0.0
  %220 = vmatpush1.msra.mxu0 0.0
  %221 = vmatprep.subr.mxu0 0.0
  %222 = vmatpush1.msra.mxu0 0.0
  %223 = vmatprep.subr.mxu0 0.0
  %224 = vmatpush1.msra.mxu0 0.0
  %225 = vmatprep.subr.mxu0 0.0
  %226 = vmatpush1.msra.mxu0 0.0
  %227 = vmatprep.subr.mxu0 0.0
  %228 = vmatpush1.msra.mxu0 0.0
  %229 = vmatprep.subr.mxu0 0.0
  %230 = vmatpush1.msra.mxu0 0.0
  %231 = vmatprep.subr.mxu0 0.0
  %232 = vmatpush1.msra.mxu0 0.0
  %233 = vmatprep.mubr.f32.mxu0 0.0
  %234 = vmatmul.mubr.f32.gmra.mrb[0].mxu0 %v51
  %v235 = vpop.f32.mrb[0].mxu0
  %v236 = vadd.f32 %v164, %v235
  %v237 = vpop.f32.mrb[0].mxu0
  %238 = vmatprep.mubr.f32.mxu0 0.0
  %239 = vmatmul.mubr.f32.gmra.mrb[0].mxu0 %v54
  %v240 = vpop.f32.mrb[0].mxu0
  %v241 = vadd.f32 %v164, %v240
  %v242 = vpop.f32.mrb[0].mxu0
  %243 = vmatprep.mubr.f32.mxu0 0.0
  %244 = vmatmul.mubr.f32.gmra.mrb[0].mxu0 %v57
  %v245 = vpop.f32.mrb[0].mxu0
  %v246 = vadd.f32 %v164, %v245
  %v247 = vpop.f32.mrb[0].mxu0
  %248 = vmatprep.mubr.f32.mxu0 0.0
  %249 = vmatmul.mubr.f32.gmra.mrb[0].mxu0 %v60
  %v250 = vpop.f32.mrb[0].mxu0
  %v251 = vadd.f32 %v164, %v250
  %v252 = vpop.f32.mrb[0].mxu0
  %253 = vdwg.mxu0
  %v254 = vld [vmem:[%s5] sm:$0x1]
  %v256 = vlaneseq
  %v257 = vshrl.u32 %v256, 7
  %v258 = vsub.s32 0, %v257
  %v259 = vrot.slane %v254, %v258
  %v261 = vadd.f32 %v236, %v259
  %v262 = vadd.f32 %v241, %v259
  %v263 = vadd.f32 %v246, %v259
  %v264 = vadd.f32 %v251, %v259
  %265 = vst.msk [vmem:[%s10] sm:$0xff] %vm151, %v261
  %266 = vst.msk [vmem:[%s10 + $0x8] sm:$0xff] %vm151, %v262
  %267 = vst.msk [vmem:[%s10 + $0x10] sm:$0xff] %vm151, %v263
  %268 = vst.msk [vmem:[%s10 + $0x18] sm:$0xff] %vm151, %v264
  %v269 = vld [vmem:[%s6] sm:$0xff]
  %v270 = vld [vmem:[%s6 + $0x8] sm:$0xff]
  %v271 = vld [vmem:[%s6 + $0x10] sm:$0x3f]
  %v272 = vld [vmem:[%s7] sm:$0x1]
  %v274 = vlaneseq
  %v275 = vshrl.u32 %v274, 7
  %v276 = vsub.s32 0, %v275
  %v277 = vrot.slane %v272, %v276
  %v280 = vsel %vm62, %v271, 0
  %282 = vmatprep.subr.mxu0 0.0
  %283 = vmatpush1.msra.mxu0 %v269
  %284 = vmatprep.subr.mxu0 0.0
  %285 = vmatpush1.msra.mxu0 %v270
  %286 = vmatprep.subr.mxu0 0.0
  %287 = vmatpush1.msra.mxu0 %v280
  %288 = vmatprep.subr.mxu0 0.0
  %289 = vmatpush1.msra.mxu0 0.0
  %290 = vmatprep.subr.mxu0 0.0
  %291 = vmatpush1.msra.mxu0 0.0
  %292 = vmatprep.subr.mxu0 0.0
  %293 = vmatpush1.msra.mxu0 0.0
  %294 = vmatprep.subr.mxu0 0.0
  %295 = vmatpush1.msra.mxu0 0.0
  %296 = vmatprep.subr.mxu0 0.0
  %297 = vmatpush1.msra.mxu0 0.0
  %298 = vmatprep.subr.mxu0 0.0
  %299 = vmatpush1.msra.mxu0 0.0
  %300 = vmatprep.subr.mxu0 0.0
  %301 = vmatpush1.msra.mxu0 0.0
  %302 = vmatprep.subr.mxu0 0.0
  %303 = vmatpush1.msra.mxu0 0.0
  %304 = vmatprep.subr.mxu0 0.0
  %305 = vmatpush1.msra.mxu0 0.0
  %306 = vmatprep.subr.mxu0 0.0
  %307 = vmatpush1.msra.mxu0 0.0
  %308 = vmatprep.subr.mxu0 0.0
  %309 = vmatpush1.msra.mxu0 0.0
  %310 = vmatprep.subr.mxu0 0.0
  %311 = vmatpush1.msra.mxu0 0.0
  %312 = vmatprep.subr.mxu0 0.0
  %313 = vmatpush1.msra.mxu0 0.0
  %314 = vmatprep.subr.mxu0 0.0
  %315 = vmatpush1.msra.mxu0 0.0
  %316 = vmatprep.subr.mxu0 0.0
  %317 = vmatpush1.msra.mxu0 0.0
  %318 = vmatprep.subr.mxu0 0.0
  %319 = vmatpush1.msra.mxu0 0.0
  %320 = vmatprep.subr.mxu0 0.0
  %321 = vmatpush1.msra.mxu0 0.0
  %322 = vmatprep.subr.mxu0 0.0
  %323 = vmatpush1.msra.mxu0 0.0
  %324 = vmatprep.subr.mxu0 0.0
  %325 = vmatpush1.msra.mxu0 0.0
  %326 = vmatprep.subr.mxu0 0.0
  %327 = vmatpush1.msra.mxu0 0.0
  %328 = vmatprep.subr.mxu0 0.0
  %329 = vmatpush1.msra.mxu0 0.0
  %330 = vmatprep.subr.mxu0 0.0
  %331 = vmatpush1.msra.mxu0 0.0
  %332 = vmatprep.subr.mxu0 0.0
  %333 = vmatpush1.msra.mxu0 0.0
  %334 = vmatprep.subr.mxu0 0.0
  %335 = vmatpush1.msra.mxu0 0.0
  %336 = vmatprep.subr.mxu0 0.0
  %337 = vmatpush1.msra.mxu0 0.0
  %338 = vmatprep.subr.mxu0 0.0
  %339 = vmatpush1.msra.mxu0 0.0
  %340 = vmatprep.subr.mxu0 0.0
  %341 = vmatpush1.msra.mxu0 0.0
  %342 = vmatprep.subr.mxu0 0.0
  %343 = vmatpush1.msra.mxu0 0.0
  %344 = vmatprep.subr.mxu0 0.0
  %345 = vmatpush1.msra.mxu0 0.0
  %346 = vmatprep.mubr.f32.mxu0 0.0
  %347 = vmatmul.mubr.f32.gmra.mrb[0].mxu0 %v51
  %v348 = vpop.f32.mrb[0].mxu0
  %v349 = vadd.f32 %v277, %v348
  %v350 = vpop.f32.mrb[0].mxu0
  %351 = vmatprep.mubr.f32.mxu0 0.0
  %352 = vmatmul.mubr.f32.gmra.mrb[0].mxu0 %v54
  %v353 = vpop.f32.mrb[0].mxu0
  %v354 = vadd.f32 %v277, %v353
  %v355 = vpop.f32.mrb[0].mxu0
  %356 = vmatprep.mubr.f32.mxu0 0.0
  %357 = vmatmul.mubr.f32.gmra.mrb[0].mxu0 %v57
  %v358 = vpop.f32.mrb[0].mxu0
  %v359 = vadd.f32 %v277, %v358
  %v360 = vpop.f32.mrb[0].mxu0
  %361 = vmatprep.mubr.f32.mxu0 0.0
  %362 = vmatmul.mubr.f32.gmra.mrb[0].mxu0 %v60
  %v363 = vpop.f32.mrb[0].mxu0
  %v364 = vadd.f32 %v277, %v363
  %v365 = vpop.f32.mrb[0].mxu0
  %366 = vdwg.mxu0
  %v367 = vld [vmem:[%s8] sm:$0x1]
  %v369 = vlaneseq
  %v370 = vshrl.u32 %v369, 7
  %v371 = vsub.s32 0, %v370
  %v372 = vrot.slane %v367, %v371
  %v374 = vadd.f32 %v349, %v372
  %v375 = vadd.f32 %v354, %v372
  %v376 = vadd.f32 %v359, %v372
  %v377 = vadd.f32 %v364, %v372
  %378 = vst.msk [vmem:[%s11] sm:$0xff] %vm151, %v374
  %379 = vst.msk [vmem:[%s11 + $0x8] sm:$0xff] %vm151, %v375
  %380 = vst.msk [vmem:[%s11 + $0x10] sm:$0xff] %vm151, %v376
  %381 = vst.msk [vmem:[%s11 + $0x18] sm:$0xff] %vm151, %v377
  // Predicated region
  $region38: #{input_embedder_forward.3} parent=0 // pred_check
    _
  $region39: #{input_embedder_forward.3} parent=0 // pred_check_branch
    %383 = sbr.rel (0) target = $region41
  $region40: #{input_embedder_forward.3} parent=0 // pred_region
    _
  $region41: #{input_embedder_forward.3} parent=0 // pred_fallthru
    _
  // Predicated region
  $region42: #{input_embedder_forward.3} parent=0 // pred_check
    _
  $region43: #{input_embedder_forward.3} parent=0 // pred_check_branch
    %385 = sbr.rel (0) target = $region45
  $region44: #{input_embedder_forward.3} parent=0 // pred_region
    _
  $region45: #{input_embedder_forward.3} parent=0 // pred_fallthru
    _
  // Predicated region
  $region46: #{input_embedder_forward.3} parent=0 // pred_check
    _
  $region47: #{input_embedder_forward.3} parent=0 // pred_check_branch
    %387 = sbr.rel (0) target = $region49
  $region48: #{input_embedder_forward.3} parent=0 // pred_region
    _
  $region49: #{input_embedder_forward.3} parent=0 // pred_fallthru
    _
  // Predicated region
  $region50: #{input_embedder_forward.3} parent=0 // pred_check
    _
  $region51: #{input_embedder_forward.3} parent=0 // pred_check_branch
    %389 = sbr.rel (0) target = $region53
  $region52: #{input_embedder_forward.3} parent=0 // pred_region
    _
  $region53: #{input_embedder_forward.3} parent=0 // pred_fallthru
    _
  // Predicated region
  $region54: #{input_embedder_forward.3} parent=0 // pred_check
    _
  $region55: #{input_embedder_forward.3} parent=0 // pred_check_branch
    %391 = sbr.rel (0) target = $region57
  $region56: #{input_embedder_forward.3} parent=0 // pred_region
    _
  $region57: #{input_embedder_forward.3} parent=0 // pred_fallthru
    _
  // Predicated region
  $region58: #{input_embedder_forward.3} parent=0 // pred_check
    _
  $region59: #{input_embedder_forward.3} parent=0 // pred_check_branch
    %393 = sbr.rel (0) target = $region61
  $region60: #{input_embedder_forward.3} parent=0 // pred_region
    _
  $region61: #{input_embedder_forward.3} parent=0 // pred_fallthru
    _

// kernel: input_embedder_forward.4
$region0: #{input_embedder_forward.4}
  #allocation0 [shape = 'u32[]', space=smem, size = 0x4, offset = 0x4, fixed_abs, tag = 'smem constant byte address 0x4 - core index']
  #allocation1 [shape = 'u32[144,128]{1,0:T(1,128)}', space=vmem, size = 0x12000, scoped, tag = 'internal scratch']
  %s0 = inlined_call_operand.vmem [shape: s32[32,1], index: 0, kind: input, shape index: {}]
  %s1 = inlined_call_operand.vmem [shape: s32[1,1024], index: 1, kind: input, shape index: {}]
  %s2 = inlined_call_operand.vmem [shape: f32[32,32], index: 2, kind: input, shape index: {}]
  %s3 = inlined_call_operand.vmem [shape: f32[1,1024], index: 3, kind: input, shape index: {}]
  %s4 = inlined_call_operand.vmem [shape: f32[9,512], index: 4, kind: input, shape index: {}]
  %s5 = inlined_call_operand.vmem [shape: f32[32,512], index: 5, kind: input, shape index: {}]
  %s6 = inlined_call_operand.vmem [shape: f32[32,1024], index: 6, kind: output, shape index: {}]
  %s7 = sld [smem:[#allocation0]]
  $region76: #{input_embedder_forward.4} parent=0
    _
  %s9 = ssub.s32 1, %s7
  %s10 = scalar_select 0, %s9, %s7
  $region1: #{input_embedder_forward.4} parent=0
    #allocation2 [shape = 'u8[65536]{0}', space=vmem, size = 0x10000, scoped, tag = 'output window, operand 0']
    loop: start=0, step=1, limit=6
    $region2: #{input_embedder_forward.4} parent=1 // loop_pre_header
      _
    $region3: #{input_embedder_forward.4} parent=1 // loop_header
      %s12 = sphi 0, %s16
      %p13 = scmp.ge.s32.totalorder %s12, 6
      %s19 = sphi 0, %s31
      %s20 = sphi 0, %s27
      %s21 = sphi 0, %s19
      %s22 = sphi 0, %s20
      %s23 = sphi 0, %s21
      %s24 = sphi 0, %s22
      %s34 = sphi 0, %s36
      %s37 = sphi 0, %s34
      %s38 = sphi 0, %s37
      %s54 = sphi 0, %s38
      %s60 = sphi 0, %s62
      %s63 = sphi 0, %s60
      %s64 = sphi 0, %s63
      %s80 = sphi 0, %s64
      %s86 = sphi 0, %s88
      %s89 = sphi 0, %s86
      %s90 = sphi 0, %s89
      %s106 = sphi 0, %s90
      %s112 = sphi 0, %s114
      %s115 = sphi 0, %s112
      %s116 = sphi 0, %s115
      %s132 = sphi 0, %s116
      %s136 = sphi 0, %s136
      %s138 = sphi 0, %s136
      %s139 = sphi 0, %s138
      %s153 = sphi 0, %s139
      %s157 = sphi 0, %s157
      %s159 = sphi 0, %s157
      %s160 = sphi 0, %s159
      %s174 = sphi 0, %s160
      %s182 = sphi 0, %s184
      %s185 = sphi 0, %s182
      %s186 = sphi 0, %s185
      %s202 = sphi 0, %s186
    $region4: #{input_embedder_forward.4} parent=1 // loop_header_branch
      %15 = sbr.rel (%p13) target = $region8
    $region5: #{input_embedder_forward.4} parent=1 // loop_body
      %s17 = ssub.s32 %s12, 1
      %s18 = ssub.s32 %s12, 2
      %s25 = sadd.s32 1, %s20
      %p26 = scmp.ge.s32.totalorder %s25, 2
      %s27 = scalar_select %p26, 0, %s25
      %s28 = sadd.s32 1, %s19
      %s29 = scalar_select %p26, %s28, %s19
      %p30 = scmp.ge.s32.totalorder %s29, 2
      %s31 = scalar_select %p30, 0, %s29
      %s32 = ssub.s32 %s19, %s31
      %p33 = scmp.eq.s32.totalorder %s32, 0
      %s35 = sadd.s32 %s34, 1
      %s36 = scalar_select %p33, %s34, %s35
      %p39 = pneg %p33
      %p40 = scmp.eq.s32.totalorder %s12, 3
      %p41 = por %p39, %p40
      %p42 = scmp.ne.s32.totalorder %s34, %s37
      %p43 = scmp.eq.s32.totalorder %s12, 0
      %p44 = por %p42, %p43
      %p45 = scmp.ne.s32.totalorder %s34, %s37
      %p46 = scmp.eq.s32.totalorder %s17, 3
      %p47 = por %p45, %p46
      %p48 = scmp.ne.s32.totalorder %s37, %s38
      %p49 = scmp.eq.s32.totalorder %s17, 0
      %p50 = por %p48, %p49
      %p51 = scmp.ne.s32.totalorder %s37, %s38
      %p52 = scmp.eq.s32.totalorder %s18, 3
      %p53 = por %p51, %p52
      %p55 = scmp.ne.s32.totalorder %s38, %s54
      %p56 = scmp.eq.s32.totalorder %s18, 0
      %p57 = por %p55, %p56
      %s58 = ssub.s32 %s20, %s27
      %p59 = scmp.eq.s32.totalorder %s58, 0
      %s61 = sadd.s32 %s60, 1
      %s62 = scalar_select %p59, %s60, %s61
      %p65 = pneg %p59
      %p66 = scmp.eq.s32.totalorder %s12, 3
      %p67 = por %p65, %p66
      %p68 = scmp.ne.s32.totalorder %s60, %s63
      %p69 = scmp.eq.s32.totalorder %s12, 0
      %p70 = por %p68, %p69
      %p71 = scmp.ne.s32.totalorder %s60, %s63
      %p72 = scmp.eq.s32.totalorder %s17, 3
      %p73 = por %p71, %p72
      %p74 = scmp.ne.s32.totalorder %s63, %s64
      %p75 = scmp.eq.s32.totalorder %s17, 0
      %p76 = por %p74, %p75
      %p77 = scmp.ne.s32.totalorder %s63, %s64
      %p78 = scmp.eq.s32.totalorder %s18, 3
      %p79 = por %p77, %p78
      %p81 = scmp.ne.s32.totalorder %s64, %s80
      %p82 = scmp.eq.s32.totalorder %s18, 0
      %p83 = por %p81, %p82
      %s84 = ssub.s32 %s19, %s31
      %p85 = scmp.eq.s32.totalorder %s84, 0
      %s87 = sadd.s32 %s86, 1
      %s88 = scalar_select %p85, %s86, %s87
      %p91 = pneg %p85
      %p92 = scmp.eq.s32.totalorder %s12, 3
      %p93 = por %p91, %p92
      %p94 = scmp.ne.s32.totalorder %s86, %s89
      %p95 = scmp.eq.s32.totalorder %s12, 0
      %p96 = por %p94, %p95
      %p97 = scmp.ne.s32.totalorder %s86, %s89
      %p98 = scmp.eq.s32.totalorder %s17, 3
      %p99 = por %p97, %p98
      %p100 = scmp.ne.s32.totalorder %s89, %s90
      %p101 = scmp.eq.s32.totalorder %s17, 0
      %p102 = por %p100, %p101
      %p103 = scmp.ne.s32.totalorder %s89, %s90
      %p104 = scmp.eq.s32.totalorder %s18, 3
      %p105 = por %p103, %p104
      %p107 = scmp.ne.s32.totalorder %s90, %s106
      %p108 = scmp.eq.s32.totalorder %s18, 0
      %p109 = por %p107, %p108
      %s110 = ssub.s32 %s20, %s27
      %p111 = scmp.eq.s32.totalorder %s110, 0
      %s113 = sadd.s32 %s112, 1
      %s114 = scalar_select %p111, %s112, %s113
      %p117 = pneg %p111
      %p118 = scmp.eq.s32.totalorder %s12, 3
      %p119 = por %p117, %p118
      %p120 = scmp.ne.s32.totalorder %s112, %s115
      %p121 = scmp.eq.s32.totalorder %s12, 0
      %p122 = por %p120, %p121
      %p123 = scmp.ne.s32.totalorder %s112, %s115
      %p124 = scmp.eq.s32.totalorder %s17, 3
      %p125 = por %p123, %p124
      %p126 = scmp.ne.s32.totalorder %s115, %s116
      %p127 = scmp.eq.s32.totalorder %s17, 0
      %p128 = por %p126, %p127
      %p129 = scmp.ne.s32.totalorder %s115, %s116
      %p130 = scmp.eq.s32.totalorder %s18, 3
      %p131 = por %p129, %p130
      %p133 = scmp.ne.s32.totalorder %s116, %s132
      %p134 = scmp.eq.s32.totalorder %s18, 0
      %p135 = por %p133, %p134
      %s137 = sadd.s32 %s136, 1
      %p140 = scmp.eq.s32.totalorder %s12, 3
      %p141 = scmp.ne.s32.totalorder %s136, %s138
      %p142 = scmp.eq.s32.totalorder %s12, 0
      %p143 = por %p141, %p142
      %p144 = scmp.ne.s32.totalorder %s136, %s138
      %p145 = scmp.eq.s32.totalorder %s17, 3
      %p146 = por %p144, %p145
      %p147 = scmp.ne.s32.totalorder %s138, %s139
      %p148 = scmp.eq.s32.totalorder %s17, 0
      %p149 = por %p147, %p148
      %p150 = scmp.ne.s32.totalorder %s138, %s139
      %p151 = scmp.eq.s32.totalorder %s18, 3
      %p152 = por %p150, %p151
      %p154 = scmp.ne.s32.totalorder %s139, %s153
      %p155 = scmp.eq.s32.totalorder %s18, 0
      %p156 = por %p154, %p155
      %s158 = sadd.s32 %s157, 1
      %p161 = scmp.eq.s32.totalorder %s12, 3
      %p162 = scmp.ne.s32.totalorder %s157, %s159
      %p163 = scmp.eq.s32.totalorder %s12, 0
      %p164 = por %p162, %p163
      %p165 = scmp.ne.s32.totalorder %s157, %s159
      %p166 = scmp.eq.s32.totalorder %s17, 3
      %p167 = por %p165, %p166
      %p168 = scmp.ne.s32.totalorder %s159, %s160
      %p169 = scmp.eq.s32.totalorder %s17, 0
      %p170 = por %p168, %p169
      %p171 = scmp.ne.s32.totalorder %s159, %s160
      %p172 = scmp.eq.s32.totalorder %s18, 3
      %p173 = por %p171, %p172
      %p175 = scmp.ne.s32.totalorder %s160, %s174
      %p176 = scmp.eq.s32.totalorder %s18, 0
      %p177 = por %p175, %p176
      %s178 = ssub.s32 %s19, %s31
      %s179 = ssub.s32 %s20, %s27
      %s180 = sor.u32 %s178, %s179
      %p181 = scmp.eq.s32.totalorder %s180, 0
      %s183 = sadd.s32 %s182, 1
      %s184 = scalar_select %p181, %s182, %s183
      %p187 = pneg %p181
      %p188 = scmp.eq.s32.totalorder %s12, 3
      %p189 = por %p187, %p188
      %p190 = scmp.ne.s32.totalorder %s182, %s185
      %p191 = scmp.eq.s32.totalorder %s12, 0
      %p192 = por %p190, %p191
      %p193 = scmp.ne.s32.totalorder %s182, %s185
      %p194 = scmp.eq.s32.totalorder %s17, 3
      %p195 = por %p193, %p194
      %p196 = scmp.ne.s32.totalorder %s185, %s186
      %p197 = scmp.eq.s32.totalorder %s17, 0
      %p198 = por %p196, %p197
      %p199 = scmp.ne.s32.totalorder %s185, %s186
      %p200 = scmp.eq.s32.totalorder %s18, 3
      %p201 = por %p199, %p200
      %p203 = scmp.ne.s32.totalorder %s186, %s202
      %p204 = scmp.eq.s32.totalorder %s18, 0
      %p205 = por %p203, %p204
      %p206 = scmp.le.s32.totalorder 1, %s12
      %p207 = scmp.lt.s32.totalorder %s12, 5
      %p208 = pnand %p206, %p207
      %p209 = pneg %p208
      // Predicated region
      $region9: #{input_embedder_forward.4} parent=5 // pred_check
        _
      $region10: #{input_embedder_forward.4} parent=5 // pred_check_branch
        %211 = sbr.rel (%p208) target = $region12
      $region11: #{input_embedder_forward.4} parent=5 // pred_region
        %s212 = ssub.s32 %s12, 1
        // Predicated region
        $region13: #{input_embedder_forward.4} parent=11 // pred_check
          %p213 = pneg %p149
        $region14: #{input_embedder_forward.4} parent=11 // pred_check_branch
          %215 = sbr.rel (%p213) target = $region16
        $region15: #{input_embedder_forward.4} parent=11 // pred_region
          _
        $region16: #{input_embedder_forward.4} parent=11 // pred_fallthru
          _
        // Predicated region
        $region17: #{input_embedder_forward.4} parent=11 // pred_check
          %p216 = pneg %p170
        $region18: #{input_embedder_forward.4} parent=11 // pred_check_branch
          %218 = sbr.rel (%p216) target = $region20
        $region19: #{input_embedder_forward.4} parent=11 // pred_region
          _
        $region20: #{input_embedder_forward.4} parent=11 // pred_fallthru
          _
      $region12: #{input_embedder_forward.4} parent=5 // pred_fallthru
        _
      %p219 = scmp.lt.s32.totalorder %s12, 4
      // Predicated region
      $region21: #{input_embedder_forward.4} parent=5 // pred_check
        %p220 = pneg %p219
      $region22: #{input_embedder_forward.4} parent=5 // pred_check_branch
        %222 = sbr.rel (%p220) target = $region24
      $region23: #{input_embedder_forward.4} parent=5 // pred_region
        // Predicated region
        $region25: #{input_embedder_forward.4} parent=23 // pred_check
          %p223 = pneg %p44
        $region26: #{input_embedder_forward.4} parent=23 // pred_check_branch
          %225 = sbr.rel (%p223) target = $region28
        $region27: #{input_embedder_forward.4} parent=23 // pred_region
          %s226 = smul.u32 2, %s19
          %p227 = scmp.lt.s32.totalorder %s226, 3
          %s228 = scalar_select %p227, %s226, 3
          %s229 = smul.addr %s228, 8
          %s230 = scalar_lea.vmem %s0, %s229
          %s231 = smul.u32 2, %s19
        $region28: #{input_embedder_forward.4} parent=23 // pred_fallthru
          _
        // Predicated region
        $region29: #{input_embedder_forward.4} parent=23 // pred_check
          %p232 = pneg %p70
        $region30: #{input_embedder_forward.4} parent=23 // pred_check_branch
          %234 = sbr.rel (%p232) target = $region32
        $region31: #{input_embedder_forward.4} parent=23 // pred_region
          %s235 = smul.u32 4, %s20
          %p236 = scmp.lt.s32.totalorder %s235, 7
          %s237 = scalar_select %p236, %s235, 7
          %s238 = scalar_lea.vmem %s1, %s237
          %s239 = smul.u32 4, %s20
        $region32: #{input_embedder_forward.4} parent=23 // pred_fallthru
          _
        // Predicated region
        $region33: #{input_embedder_forward.4} parent=23 // pred_check
          %p240 = pneg %p96
        $region34: #{input_embedder_forward.4} parent=23 // pred_check_branch
          %242 = sbr.rel (%p240) target = $region36
        $region35: #{input_embedder_forward.4} parent=23 // pred_region
          %s243 = smul.u32 2, %s19
          %p244 = scmp.lt.s32.totalorder %s243, 3
          %s245 = scalar_select %p244, %s243, 3
          %s246 = smul.addr %s245, 8
          %s247 = scalar_lea.vmem %s2, %s246
          %s248 = smul.u32 2, %s19
        $region36: #{input_embedder_forward.4} parent=23 // pred_fallthru
          _
        // Predicated region
        $region37: #{input_embedder_forward.4} parent=23 // pred_check
          %p249 = pneg %p122
        $region38: #{input_embedder_forward.4} parent=23 // pred_check_branch
          %251 = sbr.rel (%p249) target = $region40
        $region39: #{input_embedder_forward.4} parent=23 // pred_region
          %s252 = smul.u32 4, %s20
          %p253 = scmp.lt.s32.totalorder %s252, 7
          %s254 = scalar_select %p253, %s252, 7
          %s255 = scalar_lea.vmem %s3, %s254
          %s256 = smul.u32 4, %s20
        $region40: #{input_embedder_forward.4} parent=23 // pred_fallthru
          _
      $region24: #{input_embedder_forward.4} parent=5 // pred_fallthru
        _
      %p257 = scmp.le.s32.totalorder 1, %s12
      %p258 = scmp.lt.s32.totalorder %s12, 5
      %p259 = pnand %p257, %p258
      %p260 = pneg %p259
      // Predicated region
      $region41: #{input_embedder_forward.4} parent=5 // pred_check
        _
      $region42: #{input_embedder_forward.4} parent=5 // pred_check_branch
        %262 = sbr.rel (%p259) target = $region44
      $region43: #{input_embedder_forward.4} parent=5 // pred_region
        %s263 = ssub.s32 %s12, 1
        %s264 = smul.u32 2, %s21
        %p265 = scmp.lt.s32.totalorder %s264, 3
        %s266 = scalar_select %p265, %s264, 3
        %s267 = smul.addr %s266, 8
        %s268 = scalar_lea.vmem %s0, %s267
        %p269 = pneg %p50
        %p270 = pneg %p47
        %s271 = smul.u32 4, %s22
        %p272 = scmp.lt.s32.totalorder %s271, 7
        %s273 = scalar_select %p272, %s271, 7
        %s274 = scalar_lea.vmem %s1, %s273
        %p275 = pneg %p76
        %p276 = pneg %p73
        %s277 = smul.u32 2, %s21
        %p278 = scmp.lt.s32.totalorder %s277, 3
        %s279 = scalar_select %p278, %s277, 3
        %s280 = smul.addr %s279, 8
        %s281 = scalar_lea.vmem %s2, %s280
        %p282 = pneg %p102
        %p283 = pneg %p99
        %s284 = smul.u32 4, %s22
        %p285 = scmp.lt.s32.totalorder %s284, 7
        %s286 = scalar_select %p285, %s284, 7
        %s287 = scalar_lea.vmem %s3, %s286
        %p288 = pneg %p128
        %p289 = pneg %p125
        %p290 = pneg %p149
        %p291 = pneg %p146
        %p292 = pneg %p170
        %p293 = pneg %p167
        %p294 = pneg %p198
        %p295 = pneg %p195
        %s296 = sand.u32 %s185, 1
        %s297 = sand.u32 %s185, 1
        %s298 = smul.addr %s297, 64
        %s299 = scalar_lea.vmem [#allocation2], %s298
        %s300 = smul.u32 2, %s21
        %p301 = scmp.lt.s32.totalorder %s300, 3
        %s302 = scalar_select %p301, %s300, 3
        %s303 = smul.addr %s302, 8
        %s304 = scalar_lea.vmem %s0, %s303
        %s305 = smul.u32 2, %s21
        %s306 = smul.u32 4, %s22
        %p307 = scmp.lt.s32.totalorder %s306, 7
        %s308 = scalar_select %p307, %s306, 7
        %s309 = scalar_lea.vmem %s1, %s308
        %s310 = smul.u32 4, %s22
        %s311 = smul.u32 2, %s21
        %p312 = scmp.lt.s32.totalorder %s311, 3
        %s313 = scalar_select %p312, %s311, 3
        %s314 = smul.addr %s313, 8
        %s315 = scalar_lea.vmem %s2, %s314
        %s316 = smul.u32 2, %s21
        %s317 = smul.u32 4, %s22
        %p318 = scmp.lt.s32.totalorder %s317, 7
        %s319 = scalar_select %p318, %s317, 7
        %s320 = scalar_lea.vmem %s3, %s319
        %s321 = smul.u32 4, %s22
        %s322 = smul.u32 2, %s21
        %s323 = smul.u32 4, %s22
        %v324 = vld [vmem:[%s315] sm:$0xff]
        %v325 = vld [vmem:[%s315 + $0x8] sm:$0xff]
        %v326 = vld [vmem:[%s5] sm:$0xff]
        %v327 = vld [vmem:[%s5 + $0x8] sm:$0xff]
        %v328 = vld [vmem:[%s5 + $0x10] sm:$0xff]
        %v329 = vld [vmem:[%s5 + $0x18] sm:$0xff]
        %v330 = vld [vmem:[%s5 + $0x20] sm:$0xff]
        %v331 = vld [vmem:[%s5 + $0x28] sm:$0xff]
        %v332 = vld [vmem:[%s5 + $0x30] sm:$0xff]
        %v333 = vld [vmem:[%s5 + $0x38] sm:$0xff]
        %v334 = vld [vmem:[%s5 + $0x40] sm:$0xff]
        %v335 = vld [vmem:[%s5 + $0x48] sm:$0xff]
        %v336 = vld [vmem:[%s5 + $0x50] sm:$0xff]
        %v337 = vld [vmem:[%s5 + $0x58] sm:$0xff]
        %v338 = vld [vmem:[%s5 + $0x60] sm:$0xff]
        %v339 = vld [vmem:[%s5 + $0x68] sm:$0xff]
        %v340 = vld [vmem:[%s5 + $0x70] sm:$0xff]
        %v341 = vld [vmem:[%s5 + $0x78] sm:$0xff]
        %v342 = vld [vmem:[%s320] sm:$0xf]
        %v344 = vlaneseq
        %v345 = vshrl.u32 %v344, 7
        %v346 = vsub.s32 0, %v345
        %v347 = vrot.slane %v342, %v346
        %v348 = vlaneseq
        %v349 = vshrl.u32 %v348, 7
        %v350 = vsub.s32 1, %v349
        %v351 = vrot.slane %v342, %v350
        %v352 = vlaneseq
        %v353 = vshrl.u32 %v352, 7
        %v354 = vsub.s32 2, %v353
        %v355 = vrot.slane %v342, %v354
        %v356 = vlaneseq
        %v357 = vshrl.u32 %v356, 7
        %v358 = vsub.s32 3, %v357
        %v359 = vrot.slane %v342, %v358
        %vm364 = vcmask 261120
        %v366 = vsel %vm364, %v324, 0
        %v369 = vsel %vm364, %v325, 0
        %371 = vmatprep.subr.mxu0 %v327
        %372 = vmatpush1.msra.mxu0 %v326
        %373 = vmatprep.subr.mxu0 %v331
        %374 = vmatpush1.msra.mxu0 %v330
        %375 = vmatprep.subr.mxu0 %v335
        %376 = vmatpush1.msra.mxu0 %v334
        %377 = vmatprep.subr.mxu0 %v339
        %378 = vmatpush1.msra.mxu0 %v338
        %379 = vmatprep.subr.mxu0 0.0
        %380 = vmatpush1.msra.mxu0 0.0
        %381 = vmatprep.subr.mxu0 0.0
        %382 = vmatpush1.msra.mxu0 0.0
        %383 = vmatprep.subr.mxu0 0.0
        %384 = vmatpush1.msra.mxu0 0.0
        %385 = vmatprep.subr.mxu0 0.0
        %386 = vmatpush1.msra.mxu0 0.0
        %387 = vmatprep.subr.mxu0 0.0
        %388 = vmatpush1.msra.mxu0 0.0
        %389 = vmatprep.subr.mxu0 0.0
        %390 = vmatpush1.msra.mxu0 0.0
        %391 = vmatprep.subr.mxu0 0.0
        %392 = vmatpush1.msra.mxu0 0.0
        %393 = vmatprep.subr.mxu0 0.0
        %394 = vmatpush1.msra.mxu0 0.0
        %395 = vmatprep.subr.mxu0 0.0
        %396 = vmatpush1.msra.mxu0 0.0
        %397 = vmatprep.subr.mxu0 0.0
        %398 = vmatpush1.msra.mxu0 0.0
        %399 = vmatprep.subr.mxu0 0.0
        %400 = vmatpush1.msra.mxu0 0.0
        %401 = vmatprep.subr.mxu0 0.0
        %402 = vmatpush1.msra.mxu0 0.0
        %403 = vmatprep.subr.mxu0 0.0
        %404 = vmatpush1.msra.mxu0 0.0
        %405 = vmatprep.subr.mxu0 0.0
        %406 = vmatpush1.msra.mxu0 0.0
        %407 = vmatprep.subr.mxu0 0.0
        %408 = vmatpush1.msra.mxu0 0.0
        %409 = vmatprep.subr.mxu0 0.0
        %410 = vmatpush1.msra.mxu0 0.0
        %411 = vmatprep.subr.mxu0 0.0
        %412 = vmatpush1.msra.mxu0 0.0
        %413 = vmatprep.subr.mxu0 0.0
        %414 = vmatpush1.msra.mxu0 0.0
        %415 = vmatprep.subr.mxu0 0.0
        %416 = vmatpush1.msra.mxu0 0.0
        %417 = vmatprep.subr.mxu0 0.0
        %418 = vmatpush1.msra.mxu0 0.0
        %419 = vmatprep.subr.mxu0 0.0
        %420 = vmatpush1.msra.mxu0 0.0
        %421 = vmatprep.subr.mxu0 0.0
        %422 = vmatpush1.msra.mxu0 0.0
        %423 = vmatprep.subr.mxu0 0.0
        %424 = vmatpush1.msra.mxu0 0.0
        %425 = vmatprep.subr.mxu0 0.0
        %426 = vmatpush1.msra.mxu0 0.0
        %427 = vmatprep.subr.mxu0 0.0
        %428 = vmatpush1.msra.mxu0 0.0
        %429 = vmatprep.subr.mxu0 0.0
        %430 = vmatpush1.msra.mxu0 0.0
        %431 = vmatprep.subr.mxu0 0.0
        %432 = vmatpush1.msra.mxu0 0.0
        %433 = vmatprep.subr.mxu0 0.0
        %434 = vmatpush1.msra.mxu0 0.0
        %435 = vmatprep.mubr.f32.mxu0 0.0
        %436 = vmatmul.mubr.f32.gmra.mrb[0].mxu0 %v366
        %v437 = vpop.f32.mrb[0].mxu0
        %v438 = vadd.f32 %v347, %v437
        %v439 = vpop.f32.mrb[0].mxu0
        %v440 = vadd.f32 %v351, %v439
        %441 = vmatprep.mubr.f32.mxu0 0.0
        %442 = vmatmul.mubr.f32.gmra.mrb[0].mxu0 %v369
        %v443 = vpop.f32.mrb[0].mxu0
        %v444 = vadd.f32 %v347, %v443
        %v445 = vpop.f32.mrb[0].mxu0
        %v446 = vadd.f32 %v351, %v445
        %447 = vdwg.mxu0
        %448 = vmatprep.subr.mxu0 %v329
        %449 = vmatpush1.msra.mxu0 %v328
        %450 = vmatprep.subr.mxu0 %v333
        %451 = vmatpush1.msra.mxu0 %v332
        %452 = vmatprep.subr.mxu0 %v337
        %453 = vmatpush1.msra.mxu0 %v336
        %454 = vmatprep.subr.mxu0 %v341
        %455 = vmatpush1.msra.mxu0 %v340
        %456 = vmatprep.subr.mxu0 0.0
        %457 = vmatpush1.msra.mxu0 0.0
        %458 = vmatprep.subr.mxu0 0.0
        %459 = vmatpush1.msra.mxu0 0.0
        %460 = vmatprep.subr.mxu0 0.0
        %461 = vmatpush1.msra.mxu0 0.0
        %462 = vmatprep.subr.mxu0 0.0
        %463 = vmatpush1.msra.mxu0 0.0
        %464 = vmatprep.subr.mxu0 0.0
        %465 = vmatpush1.msra.mxu0 0.0
        %466 = vmatprep.subr.mxu0 0.0
        %467 = vmatpush1.msra.mxu0 0.0
        %468 = vmatprep.subr.mxu0 0.0
        %469 = vmatpush1.msra.mxu0 0.0
        %470 = vmatprep.subr.mxu0 0.0
        %471 = vmatpush1.msra.mxu0 0.0
        %472 = vmatprep.subr.mxu0 0.0
        %473 = vmatpush1.msra.mxu0 0.0
        %474 = vmatprep.subr.mxu0 0.0
        %475 = vmatpush1.msra.mxu0 0.0
        %476 = vmatprep.subr.mxu0 0.0
        %477 = vmatpush1.msra.mxu0 0.0
        %478 = vmatprep.subr.mxu0 0.0
        %479 = vmatpush1.msra.mxu0 0.0
        %480 = vmatprep.subr.mxu0 0.0
        %481 = vmatpush1.msra.mxu0 0.0
        %482 = vmatprep.subr.mxu0 0.0
        %483 = vmatpush1.msra.mxu0 0.0
        %484 = vmatprep.subr.mxu0 0.0
        %485 = vmatpush1.msra.mxu0 0.0
        %486 = vmatprep.subr.mxu0 0.0
        %487 = vmatpush1.msra.mxu0 0.0
        %488 = vmatprep.subr.mxu0 0.0
        %489 = vmatpush1.msra.mxu0 0.0
        %490 = vmatprep.subr.mxu0 0.0
        %491 = vmatpush1.msra.mxu0 0.0
        %492 = vmatprep.subr.mxu0 0.0
        %493 = vmatpush1.msra.mxu0 0.0
        %494 = vmatprep.subr.mxu0 0.0
        %495 = vmatpush1.msra.mxu0 0.0
        %496 = vmatprep.subr.mxu0 0.0
        %497 = vmatpush1.msra.mxu0 0.0
        %498 = vmatprep.subr.mxu0 0.0
        %499 = vmatpush1.msra.mxu0 0.0
        %500 = vmatprep.subr.mxu0 0.0
        %501 = vmatpush1.msra.mxu0 0.0
        %502 = vmatprep.subr.mxu0 0.0
        %503 = vmatpush1.msra.mxu0 0.0
        %504 = vmatprep.subr.mxu0 0.0
        %505 = vmatpush1.msra.mxu0 0.0
        %506 = vmatprep.subr.mxu0 0.0
        %507 = vmatpush1.msra.mxu0 0.0
        %508 = vmatprep.subr.mxu0 0.0
        %509 = vmatpush1.msra.mxu0 0.0
        %510 = vmatprep.subr.mxu0 0.0
        %511 = vmatpush1.msra.mxu0 0.0
        %512 = vmatprep.mubr.f32.mxu0 0.0
        %513 = vmatmul.mubr.f32.gmra.mrb[0].mxu0 %v366
        %v514 = vpop.f32.mrb[0].mxu0
        %v515 = vadd.f32 %v355, %v514
        %v516 = vpop.f32.mrb[0].mxu0
        %v517 = vadd.f32 %v359, %v516
        %518 = vmatprep.mubr.f32.mxu0 0.0
        %519 = vmatmul.mubr.f32.gmra.mrb[0].mxu0 %v369
        %v520 = vpop.f32.mrb[0].mxu0
        %v521 = vadd.f32 %v355, %v520
        %v522 = vpop.f32.mrb[0].mxu0
        %v523 = vadd.f32 %v359, %v522
        %524 = vdwg.mxu0
        %v525 = vld [vmem:[%s304] sm:$0xff]
        %v526 = vld [vmem:[%s304 + $0x8] sm:$0xff]
        %v527 = vld [vmem:[%s309] sm:$0xf]
        %528 = vset.pattern.permute.xlu0 0
        %529 = vperm.xlu0 %528, %v525
        %v530 = vpop.permute.xlu0 %529
        %531 = vset.pattern.permute.xlu0 0
        %532 = vperm.xlu0 %531, %v526
        %v533 = vpop.permute.xlu0 %532
        %v534 = vlaneseq
        %v535 = vshrl.u32 %v534, 7
        %v536 = vsub.s32 0, %v535
        %v537 = vrot.slane %v527, %v536
        %v538 = vlaneseq
        %v539 = vshrl.u32 %v538, 7
        %v540 = vsub.s32 1, %v539
        %v541 = vrot.slane %v527, %v540
        %v542 = vlaneseq
        %v543 = vshrl.u32 %v542, 7
        %v544 = vsub.s32 2, %v543
        %v545 = vrot.slane %v527, %v544
        %v546 = vlaneseq
        %v547 = vshrl.u32 %v546, 7
        %v548 = vsub.s32 3, %v547
        %v549 = vrot.slane %v527, %v548
        %v550 = vsub.s32 %v530, %v537
        %v551 = vsub.s32 %v530, %v541
        %v552 = vsub.s32 %v530, %v545
        %v553 = vsub.s32 %v530, %v549
        %v554 = vsub.s32 %v533, %v537
        %v555 = vsub.s32 %v533, %v541
        %v556 = vsub.s32 %v533, %v545
        %v557 = vsub.s32 %v533, %v549
        %vm558 = vcmp.gt.s32.totalorder %v550, 4294967292
        %v559 = vsel %vm558, %v550, 4294967292
        %vm560 = vcmp.gt.s32.totalorder %v551, 4294967292
        %v561 = vsel %vm560, %v551, 4294967292
        %vm562 = vcmp.gt.s32.totalorder %v552, 4294967292
        %v563 = vsel %vm562, %v552, 4294967292
        %vm564 = vcmp.gt.s32.totalorder %v553, 4294967292
        %v565 = vsel %vm564, %v553, 4294967292
        %vm566 = vcmp.gt.s32.totalorder %v554, 4294967292
        %v567 = vsel %vm566, %v554, 4294967292
        %vm568 = vcmp.gt.s32.totalorder %v555, 4294967292
        %v569 = vsel %vm568, %v555, 4294967292
        %vm570 = vcmp.gt.s32.totalorder %v556, 4294967292
        %v571 = vsel %vm570, %v556, 4294967292
        %vm572 = vcmp.gt.s32.totalorder %v557, 4294967292
        %v573 = vsel %vm572, %v557, 4294967292
        %vm574 = vcmp.lt.s32.totalorder %v559, 4
        %v575 = vsel %vm574, %v559, 4
        %vm576 = vcmp.lt.s32.totalorder %v561, 4
        %v577 = vsel %vm576, %v561, 4
        %vm578 = vcmp.lt.s32.totalorder %v563, 4
        %v579 = vsel %vm578, %v563, 4
        %vm580 = vcmp.lt.s32.totalorder %v565, 4
        %v581 = vsel %vm580, %v565, 4
        %vm582 = vcmp.lt.s32.totalorder %v567, 4
        %v583 = vsel %vm582, %v567, 4
        %vm584 = vcmp.lt.s32.totalorder %v569, 4
        %v585 = vsel %vm584, %v569, 4
        %vm586 = vcmp.lt.s32.totalorder %v571, 4
        %v587 = vsel %vm586, %v571, 4
        %vm588 = vcmp.lt.s32.totalorder %v573, 4
        %v589 = vsel %vm588, %v573, 4
        %v590 = vadd.s32 %v575, 4
        %v591 = vadd.s32 %v577, 4
        %v592 = vadd.s32 %v579, 4
        %v593 = vadd.s32 %v581, 4
        %v594 = vadd.s32 %v583, 4
        %v595 = vadd.s32 %v585, 4
        %v596 = vadd.s32 %v587, 4
        %v597 = vadd.s32 %v589, 4
        %vm598 = vcmp.eq.s32.totalorder %v590, 0
        %vm599 = vcmp.eq.s32.totalorder %v591, 0
        %vm600 = vcmp.eq.s32.totalorder %v592, 0
        %vm601 = vcmp.eq.s32.totalorder %v593, 0
        %vm602 = vcmp.eq.s32.totalorder %v594, 0
        %vm603 = vcmp.eq.s32.totalorder %v595, 0
        %vm604 = vcmp.eq.s32.totalorder %v596, 0
        %vm605 = vcmp.eq.s32.totalorder %v597, 0
        %v606 = vld [vmem:[%s4] ss:$8 sm:$0xf]
        %v608 = vlaneseq
        %v609 = vshrl.u32 %v608, 7
        %v610 = vsub.s32 0, %v609
        %v611 = vrot.slane %v606, %v610
        %v612 = vlaneseq
        %v613 = vshrl.u32 %v612, 7
        %v614 = vsub.s32 1, %v613
        %v615 = vrot.slane %v606, %v614
        %v616 = vlaneseq
        %v617 = vshrl.u32 %v616, 7
        %v618 = vsub.s32 2, %v617
        %v619 = vrot.slane %v606, %v618
        %v620 = vlaneseq
        %v621 = vshrl.u32 %v620, 7
        %v622 = vsub.s32 3, %v621
        %v623 = vrot.slane %v606, %v622
        %v628 = vsel %vm598, %v611, 0.0
        %v629 = vsel %vm599, %v615, 0.0
        %v630 = vsel %vm600, %v619, 0.0
        %v631 = vsel %vm601, %v623, 0.0
        %v632 = vsel %vm602, %v611, 0.0
        %v633 = vsel %vm603, %v615, 0.0
        %v634 = vsel %vm604, %v619, 0.0
        %v635 = vsel %vm605, %v623, 0.0
        %v636 = vadd.f32 %v438, %v628
        %v637 = vadd.f32 %v440, %v629
        %v638 = vadd.f32 %v515, %v630
        %v639 = vadd.f32 %v517, %v631
        %v640 = vadd.f32 %v444, %v632
        %v641 = vadd.f32 %v446, %v633
        %v642 = vadd.f32 %v521, %v634
        %v643 = vadd.f32 %v523, %v635
        %vm644 = vcmp.eq.s32.totalorder %v590, 1
        %vm645 = vcmp.eq.s32.totalorder %v591, 1
        %vm646 = vcmp.eq.s32.totalorder %v592, 1
        %vm647 = vcmp.eq.s32.totalorder %v593, 1
        %vm648 = vcmp.eq.s32.totalorder %v594, 1
        %vm649 = vcmp.eq.s32.totalorder %v595, 1
        %vm650 = vcmp.eq.s32.totalorder %v596, 1
        %vm651 = vcmp.eq.s32.totalorder %v597, 1
        %s652 = scalar_lea.vmem %s4, 1
        %v653 = vld [vmem:[%s652] ss:$8 sm:$0xf]
        %v655 = vlaneseq
        %v656 = vshrl.u32 %v655, 7
        %v657 = vsub.s32 0, %v656
        %v658 = vrot.slane %v653, %v657
        %v659 = vlaneseq
        %v660 = vshrl.u32 %v659, 7
        %v661 = vsub.s32 1, %v660
        %v662 = vrot.slane %v653, %v661
        %v663 = vlaneseq
        %v664 = vshrl.u32 %v663, 7
        %v665 = vsub.s32 2, %v664
        %v666 = vrot.slane %v653, %v665
        %v667 = vlaneseq
        %v668 = vshrl.u32 %v667, 7
        %v669 = vsub.s32 3, %v668
        %v670 = vrot.slane %v653, %v669
        %v675 = vsel %vm644, %v658, 0.0
        %v676 = vsel %vm645, %v662, 0.0
        %v677 = vsel %vm646, %v666, 0.0
        %v678 = vsel %vm647, %v670, 0.0
        %v679 = vsel %vm648, %v658, 0.0
        %v680 = vsel %vm649, %v662, 0.0
        %v681 = vsel %vm650, %v666, 0.0
        %v682 = vsel %vm651, %v670, 0.0
        %v683 = vadd.f32 %v636, %v675
        %v684 = vadd.f32 %v637, %v676
        %v685 = vadd.f32 %v638, %v677
        %v686 = vadd.f32 %v639, %v678
        %v687 = vadd.f32 %v640, %v679
        %v688 = vadd.f32 %v641, %v680
        %v689 = vadd.f32 %v642, %v681
        %v690 = vadd.f32 %v643, %v682
        %vm691 = vcmp.eq.s32.totalorder %v590, 2
        %vm692 = vcmp.eq.s32.totalorder %v591, 2
        %vm693 = vcmp.eq.s32.totalorder %v592, 2
        %vm694 = vcmp.eq.s32.totalorder %v593, 2
        %vm695 = vcmp.eq.s32.totalorder %v594, 2
        %vm696 = vcmp.eq.s32.totalorder %v595, 2
        %vm697 = vcmp.eq.s32.totalorder %v596, 2
        %vm698 = vcmp.eq.s32.totalorder %v597, 2
        %s699 = scalar_lea.vmem %s4, 2
        %v700 = vld [vmem:[%s699] ss:$8 sm:$0xf]
        %v702 = vlaneseq
        %v703 = vshrl.u32 %v702, 7
        %v704 = vsub.s32 0, %v703
        %v705 = vrot.slane %v700, %v704
        %v706 = vlaneseq
        %v707 = vshrl.u32 %v706, 7
        %v708 = vsub.s32 1, %v707
        %v709 = vrot.slane %v700, %v708
        %v710 = vlaneseq
        %v711 = vshrl.u32 %v710, 7
        %v712 = vsub.s32 2, %v711
        %v713 = vrot.slane %v700, %v712
        %v714 = vlaneseq
        %v715 = vshrl.u32 %v714, 7
        %v716 = vsub.s32 3, %v715
        %v717 = vrot.slane %v700, %v716
        %v722 = vsel %vm691, %v705, 0.0
        %v723 = vsel %vm692, %v709, 0.0
        %v724 = vsel %vm693, %v713, 0.0
        %v725 = vsel %vm694, %v717, 0.0
        %v726 = vsel %vm695, %v705, 0.0
        %v727 = vsel %vm696, %v709, 0.0
        %v728 = vsel %vm697, %v713, 0.0
        %v729 = vsel %vm698, %v717, 0.0
        %v730 = vadd.f32 %v683, %v722
        %v731 = vadd.f32 %v684, %v723
        %v732 = vadd.f32 %v685, %v724
        %v733 = vadd.f32 %v686, %v725
        %v734 = vadd.f32 %v687, %v726
        %v735 = vadd.f32 %v688, %v727
        %v736 = vadd.f32 %v689, %v728
        %v737 = vadd.f32 %v690, %v729
        %vm738 = vcmp.eq.s32.totalorder %v590, 3
        %vm739 = vcmp.eq.s32.totalorder %v591, 3
        %vm740 = vcmp.eq.s32.totalorder %v592, 3
        %vm741 = vcmp.eq.s32.totalorder %v593, 3
        %vm742 = vcmp.eq.s32.totalorder %v594, 3
        %vm743 = vcmp.eq.s32.totalorder %v595, 3
        %vm744 = vcmp.eq.s32.totalorder %v596, 3
        %vm745 = vcmp.eq.s32.totalorder %v597, 3
        %s746 = scalar_lea.vmem %s4, 3
        %v747 = vld [vmem:[%s746] ss:$8 sm:$0xf]
        %v749 = vlaneseq
        %v750 = vshrl.u32 %v749, 7
        %v751 = vsub.s32 0, %v750
        %v752 = vrot.slane %v747, %v751
        %v753 = vlaneseq
        %v754 = vshrl.u32 %v753, 7
        %v755 = vsub.s32 1, %v754
        %v756 = vrot.slane %v747, %v755
        %v757 = vlaneseq
        %v758 = vshrl.u32 %v757, 7
        %v759 = vsub.s32 2, %v758
        %v760 = vrot.slane %v747, %v759
        %v761 = vlaneseq
        %v762 = vshrl.u32 %v761, 7
        %v763 = vsub.s32 3, %v762
        %v764 = vrot.slane %v747, %v763
        %v769 = vsel %vm738, %v752, 0.0
        %v770 = vsel %vm739, %v756, 0.0
        %v771 = vsel %vm740, %v760, 0.0
        %v772 = vsel %vm741, %v764, 0.0
        %v773 = vsel %vm742, %v752, 0.0
        %v774 = vsel %vm743, %v756, 0.0
        %v775 = vsel %vm744, %v760, 0.0
        %v776 = vsel %vm745, %v764, 0.0
        %v777 = vadd.f32 %v730, %v769
        %v778 = vadd.f32 %v731, %v770
        %v779 = vadd.f32 %v732, %v771
        %v780 = vadd.f32 %v733, %v772
        %v781 = vadd.f32 %v734, %v773
        %v782 = vadd.f32 %v735, %v774
        %v783 = vadd.f32 %v736, %v775
        %v784 = vadd.f32 %v737, %v776
        %vm785 = vcmp.eq.s32.totalorder %v590, 4
        %vm786 = vcmp.eq.s32.totalorder %v591, 4
        %vm787 = vcmp.eq.s32.totalorder %v592, 4
        %vm788 = vcmp.eq.s32.totalorder %v593, 4
        %vm789 = vcmp.eq.s32.totalorder %v594, 4
        %vm790 = vcmp.eq.s32.totalorder %v595, 4
        %vm791 = vcmp.eq.s32.totalorder %v596, 4
        %vm792 = vcmp.eq.s32.totalorder %v597, 4
        %s793 = scalar_lea.vmem %s4, 4
        %v794 = vld [vmem:[%s793] ss:$8 sm:$0xf]
        %v796 = vlaneseq
        %v797 = vshrl.u32 %v796, 7
        %v798 = vsub.s32 0, %v797
        %v799 = vrot.slane %v794, %v798
        %v800 = vlaneseq
        %v801 = vshrl.u32 %v800, 7
        %v802 = vsub.s32 1, %v801
        %v803 = vrot.slane %v794, %v802
        %v804 = vlaneseq
        %v805 = vshrl.u32 %v804, 7
        %v806 = vsub.s32 2, %v805
        %v807 = vrot.slane %v794, %v806
        %v808 = vlaneseq
        %v809 = vshrl.u32 %v808, 7
        %v810 = vsub.s32 3, %v809
        %v811 = vrot.slane %v794, %v810
        %v816 = vsel %vm785, %v799, 0.0
        %v817 = vsel %vm786, %v803, 0.0
        %v818 = vsel %vm787, %v807, 0.0
        %v819 = vsel %vm788, %v811, 0.0
        %v820 = vsel %vm789, %v799, 0.0
        %v821 = vsel %vm790, %v803, 0.0
        %v822 = vsel %vm791, %v807, 0.0
        %v823 = vsel %vm792, %v811, 0.0
        %v824 = vadd.f32 %v777, %v816
        %v825 = vadd.f32 %v778, %v817
        %v826 = vadd.f32 %v779, %v818
        %v827 = vadd.f32 %v780, %v819
        %v828 = vadd.f32 %v781, %v820
        %v829 = vadd.f32 %v782, %v821
        %v830 = vadd.f32 %v783, %v822
        %v831 = vadd.f32 %v784, %v823
        %vm832 = vcmp.eq.s32.totalorder %v590, 5
        %vm833 = vcmp.eq.s32.totalorder %v591, 5
        %vm834 = vcmp.eq.s32.totalorder %v592, 5
        %vm835 = vcmp.eq.s32.totalorder %v593, 5
        %vm836 = vcmp.eq.s32.totalorder %v594, 5
        %vm837 = vcmp.eq.s32.totalorder %v595, 5
        %vm838 = vcmp.eq.s32.totalorder %v596, 5
        %vm839 = vcmp.eq.s32.totalorder %v597, 5
        %s840 = scalar_lea.vmem %s4, 5
        %v841 = vld [vmem:[%s840] ss:$8 sm:$0xf]
        %v843 = vlaneseq
        %v844 = vshrl.u32 %v843, 7
        %v845 = vsub.s32 0, %v844
        %v846 = vrot.slane %v841, %v845
        %v847 = vlaneseq
        %v848 = vshrl.u32 %v847, 7
        %v849 = vsub.s32 1, %v848
        %v850 = vrot.slane %v841, %v849
        %v851 = vlaneseq
        %v852 = vshrl.u32 %v851, 7
        %v853 = vsub.s32 2, %v852
        %v854 = vrot.slane %v841, %v853
        %v855 = vlaneseq
        %v856 = vshrl.u32 %v855, 7
        %v857 = vsub.s32 3, %v856
        %v858 = vrot.slane %v841, %v857
        %v863 = vsel %vm832, %v846, 0.0
        %v864 = vsel %vm833, %v850, 0.0
        %v865 = vsel %vm834, %v854, 0.0
        %v866 = vsel %vm835, %v858, 0.0
        %v867 = vsel %vm836, %v846, 0.0
        %v868 = vsel %vm837, %v850, 0.0
        %v869 = vsel %vm838, %v854, 0.0
        %v870 = vsel %vm839, %v858, 0.0
        %v871 = vadd.f32 %v824, %v863
        %v872 = vadd.f32 %v825, %v864
        %v873 = vadd.f32 %v826, %v865
        %v874 = vadd.f32 %v827, %v866
        %v875 = vadd.f32 %v828, %v867
        %v876 = vadd.f32 %v829, %v868
        %v877 = vadd.f32 %v830, %v869
        %v878 = vadd.f32 %v831, %v870
        %vm879 = vcmp.eq.s32.totalorder %v590, 6
        %vm880 = vcmp.eq.s32.totalorder %v591, 6
        %vm881 = vcmp.eq.s32.totalorder %v592, 6
        %vm882 = vcmp.eq.s32.totalorder %v593, 6
        %vm883 = vcmp.eq.s32.totalorder %v594, 6
        %vm884 = vcmp.eq.s32.totalorder %v595, 6
        %vm885 = vcmp.eq.s32.totalorder %v596, 6
        %vm886 = vcmp.eq.s32.totalorder %v597, 6
        %s887 = scalar_lea.vmem %s4, 6
        %v888 = vld [vmem:[%s887] ss:$8 sm:$0xf]
        %v890 = vlaneseq
        %v891 = vshrl.u32 %v890, 7
        %v892 = vsub.s32 0, %v891
        %v893 = vrot.slane %v888, %v892
        %v894 = vlaneseq
        %v895 = vshrl.u32 %v894, 7
        %v896 = vsub.s32 1, %v895
        %v897 = vrot.slane %v888, %v896
        %v898 = vlaneseq
        %v899 = vshrl.u32 %v898, 7
        %v900 = vsub.s32 2, %v899
        %v901 = vrot.slane %v888, %v900
        %v902 = vlaneseq
        %v903 = vshrl.u32 %v902, 7
        %v904 = vsub.s32 3, %v903
        %v905 = vrot.slane %v888, %v904
        %v910 = vsel %vm879, %v893, 0.0
        %v911 = vsel %vm880, %v897, 0.0
        %v912 = vsel %vm881, %v901, 0.0
        %v913 = vsel %vm882, %v905, 0.0
        %v914 = vsel %vm883, %v893, 0.0
        %v915 = vsel %vm884, %v897, 0.0
        %v916 = vsel %vm885, %v901, 0.0
        %v917 = vsel %vm886, %v905, 0.0
        %v918 = vadd.f32 %v871, %v910
        %v919 = vadd.f32 %v872, %v911
        %v920 = vadd.f32 %v873, %v912
        %v921 = vadd.f32 %v874, %v913
        %v922 = vadd.f32 %v875, %v914
        %v923 = vadd.f32 %v876, %v915
        %v924 = vadd.f32 %v877, %v916
        %v925 = vadd.f32 %v878, %v917
        %vm926 = vcmp.eq.s32.totalorder %v590, 7
        %vm927 = vcmp.eq.s32.totalorder %v591, 7
        %vm928 = vcmp.eq.s32.totalorder %v592, 7
        %vm929 = vcmp.eq.s32.totalorder %v593, 7
        %vm930 = vcmp.eq.s32.totalorder %v594, 7
        %vm931 = vcmp.eq.s32.totalorder %v595, 7
        %vm932 = vcmp.eq.s32.totalorder %v596, 7
        %vm933 = vcmp.eq.s32.totalorder %v597, 7
        %s934 = scalar_lea.vmem %s4, 7
        %v935 = vld [vmem:[%s934] ss:$8 sm:$0xf]
        %v937 = vlaneseq
        %v938 = vshrl.u32 %v937, 7
        %v939 = vsub.s32 0, %v938
        %v940 = vrot.slane %v935, %v939
        %v941 = vlaneseq
        %v942 = vshrl.u32 %v941, 7
        %v943 = vsub.s32 1, %v942
        %v944 = vrot.slane %v935, %v943
        %v945 = vlaneseq
        %v946 = vshrl.u32 %v945, 7
        %v947 = vsub.s32 2, %v946
        %v948 = vrot.slane %v935, %v947
        %v949 = vlaneseq
        %v950 = vshrl.u32 %v949, 7
        %v951 = vsub.s32 3, %v950
        %v952 = vrot.slane %v935, %v951
        %v957 = vsel %vm926, %v940, 0.0
        %v958 = vsel %vm927, %v944, 0.0
        %v959 = vsel %vm928, %v948, 0.0
        %v960 = vsel %vm929, %v952, 0.0
        %v961 = vsel %vm930, %v940, 0.0
        %v962 = vsel %vm931, %v944, 0.0
        %v963 = vsel %vm932, %v948, 0.0
        %v964 = vsel %vm933, %v952, 0.0
        %v965 = vadd.f32 %v918, %v957
        %v966 = vadd.f32 %v919, %v958
        %v967 = vadd.f32 %v920, %v959
        %v968 = vadd.f32 %v921, %v960
        %v969 = vadd.f32 %v922, %v961
        %v970 = vadd.f32 %v923, %v962
        %v971 = vadd.f32 %v924, %v963
        %v972 = vadd.f32 %v925, %v964
        %vm973 = vcmp.eq.s32.totalorder %v590, 8
        %vm974 = vcmp.eq.s32.totalorder %v591, 8
        %vm975 = vcmp.eq.s32.totalorder %v592, 8
        %vm976 = vcmp.eq.s32.totalorder %v593, 8
        %vm977 = vcmp.eq.s32.totalorder %v594, 8
        %vm978 = vcmp.eq.s32.totalorder %v595, 8
        %vm979 = vcmp.eq.s32.totalorder %v596, 8
        %vm980 = vcmp.eq.s32.totalorder %v597, 8
        %s981 = scalar_lea.vmem %s4, 32
        %v982 = vld [vmem:[%s981] ss:$8 sm:$0xf]
        %v984 = vlaneseq
        %v985 = vshrl.u32 %v984, 7
        %v986 = vsub.s32 0, %v985
        %v987 = vrot.slane %v982, %v986
        %v988 = vlaneseq
        %v989 = vshrl.u32 %v988, 7
        %v990 = vsub.s32 1, %v989
        %v991 = vrot.slane %v982, %v990
        %v992 = vlaneseq
        %v993 = vshrl.u32 %v992, 7
        %v994 = vsub.s32 2, %v993
        %v995 = vrot.slane %v982, %v994
        %v996 = vlaneseq
        %v997 = vshrl.u32 %v996, 7
        %v998 = vsub.s32 3, %v997
        %v999 = vrot.slane %v982, %v998
        %v1004 = vsel %vm973, %v987, 0.0
        %v1005 = vsel %vm974, %v991, 0.0
        %v1006 = vsel %vm975, %v995, 0.0
        %v1007 = vsel %vm976, %v999, 0.0
        %v1008 = vsel %vm977, %v987, 0.0
        %v1009 = vsel %vm978, %v991, 0.0
        %v1010 = vsel %vm979, %v995, 0.0
        %v1011 = vsel %vm980, %v999, 0.0
        %v1012 = vadd.f32 %v965, %v1004
        %v1013 = vadd.f32 %v966, %v1005
        %v1014 = vadd.f32 %v967, %v1006
        %v1015 = vadd.f32 %v968, %v1007
        %v1016 = vadd.f32 %v969, %v1008
        %v1017 = vadd.f32 %v970, %v1009
        %v1018 = vadd.f32 %v971, %v1010
        %v1019 = vadd.f32 %v972, %v1011
        %1020 = vst [vmem:[%s299] sm:$0xff] %v1012
        %1021 = vst [vmem:[%s299 + $0x8] sm:$0xff] %v1013
        %1022 = vst [vmem:[%s299 + $0x10] sm:$0xff] %v1014
        %1023 = vst [vmem:[%s299 + $0x18] sm:$0xff] %v1015
        %1024 = vst [vmem:[%s299 + $0x20] sm:$0xff] %v1016
        %1025 = vst [vmem:[%s299 + $0x28] sm:$0xff] %v1017
        %1026 = vst [vmem:[%s299 + $0x30] sm:$0xff] %v1018
        %1027 = vst [vmem:[%s299 + $0x38] sm:$0xff] %v1019
        %s1028 = sand.u32 %s185, 1
        %s1029 = sand.u32 %s185, 1
        %s1030 = smul.addr %s1029, 64
        %s1031 = scalar_lea.vmem [#allocation2], %s1030
        // Predicated region
        $region45: #{input_embedder_forward.4} parent=43 // pred_check
          %p1032 = pneg %p195
        $region46: #{input_embedder_forward.4} parent=43 // pred_check_branch
          %1034 = sbr.rel (%p1032) target = $region48
        $region47: #{input_embedder_forward.4} parent=43 // pred_region
          %s1035 = smul.u32 2, %s21
          %s1036 = smul.u32 4, %s22
          %s1037 = smul.addr %s1035, 8
          %s1038 = sadd.s32 %s1036, %s1037
          %s1039 = smul.addr %s1038, 8
          %s1040 = scalar_lea.vmem %s6, %s1039
          // Predicated region
          $region49: #{input_embedder_forward.4} parent=47 // pred_check
            _
          $region50: #{input_embedder_forward.4} parent=47 // pred_check_branch
            %1042 = sbr.rel (0) target = $region52
          $region51: #{input_embedder_forward.4} parent=47 // pred_region
            // Predicated region
            $region53: #{input_embedder_forward.4} parent=51 // pred_check
              _
            $region54: #{input_embedder_forward.4} parent=51 // pred_check_branch
              %1044 = sbr.rel (0) target = $region56
            $region55: #{input_embedder_forward.4} parent=51 // pred_region
              loop: start=0, step=1, limit=1
              $region57: #{input_embedder_forward.4} parent=55 // loop_pre_header
                _
              $region58: #{input_embedder_forward.4} parent=55 // loop_header
                %s1046 = sphi 0, %s1050
                %p1047 = scmp.ge.s32.totalorder %s1046, 1
                %s1051 = sphi %s1031, %s1031
                %s1052 = sphi %s1040, %s1040
              $region59: #{input_embedder_forward.4} parent=55 // loop_header_branch
                %1049 = sbr.rel (%p1047) target = $region63
              $region60: #{input_embedder_forward.4} parent=55 // loop_body
                %v1053 = vld [vmem:[%s1051] sm:$0xff]
                %1054 = vst [vmem:[%s1052] sm:$0xff] %v1053
                %v1055 = vld [vmem:[%s1051 + $0x8] sm:$0xff]
                %1056 = vst [vmem:[%s1052 + $0x8] sm:$0xff] %v1055
                %v1057 = vld [vmem:[%s1051 + $0x10] sm:$0xff]
                %1058 = vst [vmem:[%s1052 + $0x10] sm:$0xff] %v1057
                %v1059 = vld [vmem:[%s1051 + $0x18] sm:$0xff]
                %1060 = vst [vmem:[%s1052 + $0x18] sm:$0xff] %v1059
                %v1061 = vld [vmem:[%s1051 + $0x20] sm:$0xff]
                %1062 = vst [vmem:[%s1052 + $0x40] sm:$0xff] %v1061
                %v1063 = vld [vmem:[%s1051 + $0x28] sm:$0xff]
                %1064 = vst [vmem:[%s1052 + $0x48] sm:$0xff] %v1063
                %v1065 = vld [vmem:[%s1051 + $0x30] sm:$0xff]
                %1066 = vst [vmem:[%s1052 + $0x50] sm:$0xff] %v1065
                %v1067 = vld [vmem:[%s1051 + $0x38] sm:$0xff]
                %1068 = vst [vmem:[%s1052 + $0x58] sm:$0xff] %v1067
              $region61: #{input_embedder_forward.4} parent=55 // loop_footer
                %s1050 = sadd.s32 1, %s1046
              $region62: #{input_embedder_forward.4} parent=55 // loop_footer_branch
                %1045 = sbr.rel target = $region58
              $region63: #{input_embedder_forward.4} parent=55 // loop_exit
                _
            $region56: #{input_embedder_forward.4} parent=51 // pred_fallthru
              _
            // Predicated region
            $region64: #{input_embedder_forward.4} parent=51 // pred_check
              _
            $region65: #{input_embedder_forward.4} parent=51 // pred_check_branch
              %1070 = sbr.rel target = $region67
            $region66: #{input_embedder_forward.4} parent=51 // pred_region
              _
            $region67: #{input_embedder_forward.4} parent=51 // pred_fallthru
              _
          $region52: #{input_embedder_forward.4} parent=47 // pred_fallthru
            _
          %1071 = vnop
        $region48: #{input_embedder_forward.4} parent=43 // pred_fallthru
          _
      $region44: #{input_embedder_forward.4} parent=5 // pred_fallthru
        _
      %p1072 = scmp.le.s32.totalorder 2, %s12
      // Predicated region
      $region68: #{input_embedder_forward.4} parent=5 // pred_check
        %p1073 = pneg %p1072
      $region69: #{input_embedder_forward.4} parent=5 // pred_check_branch
        %1075 = sbr.rel (%p1073) target = $region71
      $region70: #{input_embedder_forward.4} parent=5 // pred_region
        %s1076 = ssub.s32 %s12, 2
        // Predicated region
        $region72: #{input_embedder_forward.4} parent=70 // pred_check
          %p1077 = pneg %p201
        $region73: #{input_embedder_forward.4} parent=70 // pred_check_branch
          %1079 = sbr.rel (%p1077) target = $region75
        $region74: #{input_embedder_forward.4} parent=70 // pred_region
          %s1080 = sand.u32 %s186, 1
          %s1081 = sand.u32 %s186, 1
          %s1082 = smul.addr %s1081, 64
          %s1083 = scalar_lea.vmem [#allocation2], %s1082
        $region75: #{input_embedder_forward.4} parent=70 // pred_fallthru
          _
      $region71: #{input_embedder_forward.4} parent=5 // pred_fallthru
        _
    $region6: #{input_embedder_forward.4} parent=1 // loop_footer
      %s16 = sadd.s32 1, %s12
    $region7: #{input_embedder_forward.4} parent=1 // loop_footer_branch
      %11 = sbr.rel target = $region3
    $region8: #{input_embedder_forward.4} parent=1 // loop_exit
      _

// kernel: input_embedder_forward.5
$region0: #{input_embedder_forward.5}
  #allocation0 [shape = 'u32[]', space=smem, size = 0x4, offset = 0x4, fixed_abs, tag = 'smem constant byte address 0x4 - core index']
  #allocation1 [shape = 'u32[144,128]{1,0:T(1,128)}', space=vmem, size = 0x12000, scoped, tag = 'internal scratch']
  %s0 = inlined_call_operand.vmem [shape: f32[128,56], index: 0, kind: input, shape index: {}]
  %s1 = inlined_call_operand.vmem [shape: f32[56,32], index: 1, kind: input, shape index: {}]
  %s2 = inlined_call_operand.vmem [shape: f32[64,32], index: 2, kind: input, shape index: {}]
  %s3 = inlined_call_operand.hbm [shape: f32[128,32], index: 3, kind: output, shape index: {}]
  %s4 = sld [smem:[#allocation0]]
  $region45: #{input_embedder_forward.5} parent=0
    _
  %s6 = ssub.s32 1, %s4
  %s7 = scalar_select 0, %s6, %s4
  $region1: #{input_embedder_forward.5} parent=0
    #allocation2 [shape = 'u8[65536]{0}', space=vmem, size = 0x10000, scoped, tag = 'output window, operand 0']
    #allocation3 [shape = 's32[2]{0}', space=sflag, size = 0x8, scoped, tag = 'scoped memory for input_embedder_forward.5']
    %8 = vsyncpa [#allocation3], 0
    %s9 = scalar_lea.sflag [#allocation3], 1
    %10 = vsyncpa %s9, 0
    loop: start=0, step=1, limit=4
    $region2: #{input_embedder_forward.5} parent=1 // loop_pre_header
      _
    $region3: #{input_embedder_forward.5} parent=1 // loop_header
      %s12 = sphi 0, %s16
      %p13 = scmp.ge.s32.totalorder %s12, 4
      %s22 = sphi 0, %s24
      %s25 = sphi 0, %s22
      %s26 = sphi 0, %s25
      %s42 = sphi 0, %s26
      %s46 = sphi 0, %s46
      %s48 = sphi 0, %s46
      %s49 = sphi 0, %s48
      %s63 = sphi 0, %s49
      %s67 = sphi 0, %s67
      %s69 = sphi 0, %s67
      %s70 = sphi 0, %s69
      %s84 = sphi 0, %s70
      %s90 = sphi 0, %s92
      %s93 = sphi 0, %s90
      %s94 = sphi 0, %s93
      %s110 = sphi 0, %s94
    $region4: #{input_embedder_forward.5} parent=1 // loop_header_branch
      %15 = sbr.rel (%p13) target = $region8
    $region5: #{input_embedder_forward.5} parent=1 // loop_body
      %s17 = ssub.s32 %s12, 1
      %s18 = ssub.s32 %s12, 2
      %s19 = sadd.s32 %s12, 1
      %s20 = ssub.s32 %s12, %s19
      %p21 = scmp.eq.s32.totalorder %s20, 0
      %s23 = sadd.s32 %s22, 1
      %s24 = scalar_select %p21, %s22, %s23
      %p27 = pneg %p21
      %p28 = scmp.eq.s32.totalorder %s12, 1
      %p29 = por %p27, %p28
      %p30 = scmp.ne.s32.totalorder %s22, %s25
      %p31 = scmp.eq.s32.totalorder %s12, 0
      %p32 = por %p30, %p31
      %p33 = scmp.ne.s32.totalorder %s22, %s25
      %p34 = scmp.eq.s32.totalorder %s17, 1
      %p35 = por %p33, %p34
      %p36 = scmp.ne.s32.totalorder %s25, %s26
      %p37 = scmp.eq.s32.totalorder %s17, 0
      %p38 = por %p36, %p37
      %p39 = scmp.ne.s32.totalorder %s25, %s26
      %p40 = scmp.eq.s32.totalorder %s18, 1
      %p41 = por %p39, %p40
      %p43 = scmp.ne.s32.totalorder %s26, %s42
      %p44 = scmp.eq.s32.totalorder %s18, 0
      %p45 = por %p43, %p44
      %s47 = sadd.s32 %s46, 1
      %p50 = scmp.eq.s32.totalorder %s12, 1
      %p51 = scmp.ne.s32.totalorder %s46, %s48
      %p52 = scmp.eq.s32.totalorder %s12, 0
      %p53 = por %p51, %p52
      %p54 = scmp.ne.s32.totalorder %s46, %s48
      %p55 = scmp.eq.s32.totalorder %s17, 1
      %p56 = por %p54, %p55
      %p57 = scmp.ne.s32.totalorder %s48, %s49
      %p58 = scmp.eq.s32.totalorder %s17, 0
      %p59 = por %p57, %p58
      %p60 = scmp.ne.s32.totalorder %s48, %s49
      %p61 = scmp.eq.s32.totalorder %s18, 1
      %p62 = por %p60, %p61
      %p64 = scmp.ne.s32.totalorder %s49, %s63
      %p65 = scmp.eq.s32.totalorder %s18, 0
      %p66 = por %p64, %p65
      %s68 = sadd.s32 %s67, 1
      %p71 = scmp.eq.s32.totalorder %s12, 1
      %p72 = scmp.ne.s32.totalorder %s67, %s69
      %p73 = scmp.eq.s32.totalorder %s12, 0
      %p74 = por %p72, %p73
      %p75 = scmp.ne.s32.totalorder %s67, %s69
      %p76 = scmp.eq.s32.totalorder %s17, 1
      %p77 = por %p75, %p76
      %p78 = scmp.ne.s32.totalorder %s69, %s70
      %p79 = scmp.eq.s32.totalorder %s17, 0
      %p80 = por %p78, %p79
      %p81 = scmp.ne.s32.totalorder %s69, %s70
      %p82 = scmp.eq.s32.totalorder %s18, 1
      %p83 = por %p81, %p82
      %p85 = scmp.ne.s32.totalorder %s70, %s84
      %p86 = scmp.eq.s32.totalorder %s18, 0
      %p87 = por %p85, %p86
      %s88 = ssub.s32 %s12, %s19
      %p89 = scmp.eq.s32.totalorder %s88, 0
      %s91 = sadd.s32 %s90, 1
      %s92 = scalar_select %p89, %s90, %s91
      %p95 = pneg %p89
      %p96 = scmp.eq.s32.totalorder %s12, 1
      %p97 = por %p95, %p96
      %p98 = scmp.ne.s32.totalorder %s90, %s93
      %p99 = scmp.eq.s32.totalorder %s12, 0
      %p100 = por %p98, %p99
      %p101 = scmp.ne.s32.totalorder %s90, %s93
      %p102 = scmp.eq.s32.totalorder %s17, 1
      %p103 = por %p101, %p102
      %p104 = scmp.ne.s32.totalorder %s93, %s94
      %p105 = scmp.eq.s32.totalorder %s17, 0
      %p106 = por %p104, %p105
      %p107 = scmp.ne.s32.totalorder %s93, %s94
      %p108 = scmp.eq.s32.totalorder %s18, 1
      %p109 = por %p107, %p108
      %p111 = scmp.ne.s32.totalorder %s94, %s110
      %p112 = scmp.eq.s32.totalorder %s18, 0
      %p113 = por %p111, %p112
      %p114 = scmp.le.s32.totalorder 1, %s12
      %p115 = scmp.lt.s32.totalorder %s12, 3
      %p116 = pnand %p114, %p115
      %p117 = pneg %p116
      // Predicated region
      $region9: #{input_embedder_forward.5} parent=5 // pred_check
        _
      $region10: #{input_embedder_forward.5} parent=5 // pred_check_branch
        %119 = sbr.rel (%p116) target = $region12
      $region11: #{input_embedder_forward.5} parent=5 // pred_region
        %s120 = ssub.s32 %s12, 1
        // Predicated region
        $region13: #{input_embedder_forward.5} parent=11 // pred_check
          %p121 = pneg %p59
        $region14: #{input_embedder_forward.5} parent=11 // pred_check_branch
          %123 = sbr.rel (%p121) target = $region16
        $region15: #{input_embedder_forward.5} parent=11 // pred_region
          _
        $region16: #{input_embedder_forward.5} parent=11 // pred_fallthru
          _
        // Predicated region
        $region17: #{input_embedder_forward.5} parent=11 // pred_check
          %p124 = pneg %p80
        $region18: #{input_embedder_forward.5} parent=11 // pred_check_branch
          %126 = sbr.rel (%p124) target = $region20
        $region19: #{input_embedder_forward.5} parent=11 // pred_region
          _
        $region20: #{input_embedder_forward.5} parent=11 // pred_fallthru
          _
      $region12: #{input_embedder_forward.5} parent=5 // pred_fallthru
        _
      %p127 = scmp.lt.s32.totalorder %s12, 2
      // Predicated region
      $region21: #{input_embedder_forward.5} parent=5 // pred_check
        %p128 = pneg %p127
      $region22: #{input_embedder_forward.5} parent=5 // pred_check_branch
        %130 = sbr.rel (%p128) target = $region24
      $region23: #{input_embedder_forward.5} parent=5 // pred_region
        // Predicated region
        $region25: #{input_embedder_forward.5} parent=23 // pred_check
          %p131 = pneg %p32
        $region26: #{input_embedder_forward.5} parent=23 // pred_check_branch
          %133 = sbr.rel (%p131) target = $region28
        $region27: #{input_embedder_forward.5} parent=23 // pred_region
          %s134 = smul.u32 8, %s12
          %p135 = scmp.lt.s32.totalorder %s134, 15
          %s136 = scalar_select %p135, %s134, 15
          %s137 = smul.addr %s136, 8
          %s138 = scalar_lea.vmem %s0, %s137
          %s139 = smul.u32 8, %s12
        $region28: #{input_embedder_forward.5} parent=23 // pred_fallthru
          _
      $region24: #{input_embedder_forward.5} parent=5 // pred_fallthru
        _
      %p140 = scmp.le.s32.totalorder 1, %s12
      %p141 = scmp.lt.s32.totalorder %s12, 3
      %p142 = pnand %p140, %p141
      %p143 = pneg %p142
      // Predicated region
      $region29: #{input_embedder_forward.5} parent=5 // pred_check
        _
      $region30: #{input_embedder_forward.5} parent=5 // pred_check_branch
        %145 = sbr.rel (%p142) target = $region32
      $region31: #{input_embedder_forward.5} parent=5 // pred_region
        %s146 = ssub.s32 %s12, 1
        %s147 = smul.u32 8, %s17
        %p148 = scmp.lt.s32.totalorder %s147, 15
        %s149 = scalar_select %p148, %s147, 15
        %s150 = smul.addr %s149, 8
        %s151 = scalar_lea.vmem %s0, %s150
        %p152 = pneg %p38
        %p153 = pneg %p35
        %p154 = pneg %p59
        %p155 = pneg %p56
        %p156 = pneg %p80
        %p157 = pneg %p77
        %p158 = pneg %p106
        %p159 = pneg %p103
        %s160 = sand.u32 %s93, 1
        %s161 = scalar_lea.sflag [#allocation3], %s160
        %s162 = sand.u32 %s93, 1
        %s163 = smul.addr %s162, 64
        %s164 = scalar_lea.vmem [#allocation2], %s163
        %s165 = smul.u32 8, %s17
        %p166 = scmp.lt.s32.totalorder %s165, 15
        %s167 = scalar_select %p166, %s165, 15
        %s168 = smul.addr %s167, 8
        %s169 = scalar_lea.vmem %s0, %s168
        %s170 = smul.u32 8, %s17
        %s171 = smul.u32 8, %s17
        %v172 = vld [vmem:[%s169] sm:$0xff]
        %v173 = vld [vmem:[%s169 + $0x8] sm:$0xff]
        %v174 = vld [vmem:[%s169 + $0x10] sm:$0xff]
        %v175 = vld [vmem:[%s169 + $0x18] sm:$0xff]
        %v176 = vld [vmem:[%s169 + $0x20] sm:$0xff]
        %v177 = vld [vmem:[%s169 + $0x28] sm:$0xff]
        %v178 = vld [vmem:[%s169 + $0x30] sm:$0xff]
        %v179 = vld [vmem:[%s169 + $0x38] sm:$0xff]
        %v180 = vld [vmem:[%s1] sm:$0xff]
        %v181 = vld [vmem:[%s1 + $0x8] sm:$0xff]
        %v182 = vld [vmem:[%s1 + $0x10] sm:$0xff]
        %v183 = vld [vmem:[%s1 + $0x18] sm:$0xff]
        %v184 = vld [vmem:[%s1 + $0x20] sm:$0xff]
        %v185 = vld [vmem:[%s1 + $0x28] sm:$0xff]
        %v186 = vld [vmem:[%s1 + $0x30] sm:$0xff]
        %v187 = vld [vmem:[%s2] sm:$0xff]
        %v188 = vld [vmem:[%s2 + $0x8] sm:$0xff]
        %v189 = vld [vmem:[%s2 + $0x10] sm:$0xff]
        %v190 = vld [vmem:[%s2 + $0x18] sm:$0xff]
        %v191 = vld [vmem:[%s2 + $0x20] sm:$0xff]
        %v192 = vld [vmem:[%s2 + $0x28] sm:$0xff]
        %v193 = vld [vmem:[%s2 + $0x30] sm:$0xff]
        %v194 = vld [vmem:[%s2 + $0x38] sm:$0xff]
        %vm195 = vcmask 457728
        %v197 = vsel %vm195, %v172, 0
        %v200 = vsel %vm195, %v173, 0
        %v203 = vsel %vm195, %v174, 0
        %v206 = vsel %vm195, %v175, 0
        %v209 = vsel %vm195, %v176, 0
        %v212 = vsel %vm195, %v177, 0
        %v215 = vsel %vm195, %v178, 0
        %v218 = vsel %vm195, %v179, 0
        %220 = vmatprep.subr.mxu0 0.0
        %221 = vmatpush1.msra.mxu0 %v180
        %222 = vmatprep.subr.mxu0 0.0
        %223 = vmatpush1.msra.mxu0 %v181
        %224 = vmatprep.subr.mxu0 0.0
        %225 = vmatpush1.msra.mxu0 %v182
        %226 = vmatprep.subr.mxu0 0.0
        %227 = vmatpush1.msra.mxu0 %v183
        %228 = vmatprep.subr.mxu0 0.0
        %229 = vmatpush1.msra.mxu0 %v184
        %230 = vmatprep.subr.mxu0 0.0
        %231 = vmatpush1.msra.mxu0 %v185
        %232 = vmatprep.subr.mxu0 0.0
        %233 = vmatpush1.msra.mxu0 %v186
        %234 = vmatprep.subr.mxu0 0.0
        %235 = vmatpush1.msra.mxu0 0.0
        %236 = vmatprep.subr.mxu0 0.0
        %237 = vmatpush1.msra.mxu0 0.0
        %238 = vmatprep.subr.mxu0 0.0
        %239 = vmatpush1.msra.mxu0 0.0
        %240 = vmatprep.subr.mxu0 0.0
        %241 = vmatpush1.msra.mxu0 0.0
        %242 = vmatprep.subr.mxu0 0.0
        %243 = vmatpush1.msra.mxu0 0.0
        %244 = vmatprep.subr.mxu0 0.0
        %245 = vmatpush1.msra.mxu0 0.0
        %246 = vmatprep.subr.mxu0 0.0
        %247 = vmatpush1.msra.mxu0 0.0
        %248 = vmatprep.subr.mxu0 0.0
        %249 = vmatpush1.msra.mxu0 0.0
        %250 = vmatprep.subr.mxu0 0.0
        %251 = vmatpush1.msra.mxu0 0.0
        %252 = vmatprep.subr.mxu0 0.0
        %253 = vmatpush1.msra.mxu0 0.0
        %254 = vmatprep.subr.mxu0 0.0
        %255 = vmatpush1.msra.mxu0 0.0
        %256 = vmatprep.subr.mxu0 0.0
        %257 = vmatpush1.msra.mxu0 0.0
        %258 = vmatprep.subr.mxu0 0.0
        %259 = vmatpush1.msra.mxu0 0.0
        %260 = vmatprep.subr.mxu0 0.0
        %261 = vmatpush1.msra.mxu0 0.0
        %262 = vmatprep.subr.mxu0 0.0
        %263 = vmatpush1.msra.mxu0 0.0
        %264 = vmatprep.subr.mxu0 0.0
        %265 = vmatpush1.msra.mxu0 0.0
        %266 = vmatprep.subr.mxu0 0.0
        %267 = vmatpush1.msra.mxu0 0.0
        %268 = vmatprep.subr.mxu0 0.0
        %269 = vmatpush1.msra.mxu0 0.0
        %270 = vmatprep.subr.mxu0 0.0
        %271 = vmatpush1.msra.mxu0 0.0
        %272 = vmatprep.subr.mxu0 0.0
        %273 = vmatpush1.msra.mxu0 0.0
        %274 = vmatprep.subr.mxu0 0.0
        %275 = vmatpush1.msra.mxu0 0.0
        %276 = vmatprep.subr.mxu0 0.0
        %277 = vmatpush1.msra.mxu0 0.0
        %278 = vmatprep.subr.mxu0 0.0
        %279 = vmatpush1.msra.mxu0 0.0
        %280 = vmatprep.subr.mxu0 0.0
        %281 = vmatpush1.msra.mxu0 0.0
        %282 = vmatprep.subr.mxu0 0.0
        %283 = vmatpush1.msra.mxu0 0.0
        %284 = vmatprep.mubr.f32.mxu0 0.0
        %285 = vmatmul.mubr.f32.gmra.mrb[0].mxu0 %v197
        %v286 = vpop.f32.mrb[0].mxu0
        %v287 = vadd.f32 %v187, %v286
        %v288 = vpop.f32.mrb[0].mxu0
        %289 = vmatprep.mubr.f32.mxu0 0.0
        %290 = vmatmul.mubr.f32.gmra.mrb[0].mxu0 %v200
        %v291 = vpop.f32.mrb[0].mxu0
        %v292 = vadd.f32 %v188, %v291
        %v293 = vpop.f32.mrb[0].mxu0
        %294 = vmatprep.mubr.f32.mxu0 0.0
        %295 = vmatmul.mubr.f32.gmra.mrb[0].mxu0 %v203
        %v296 = vpop.f32.mrb[0].mxu0
        %v297 = vadd.f32 %v189, %v296
        %v298 = vpop.f32.mrb[0].mxu0
        %299 = vmatprep.mubr.f32.mxu0 0.0
        %300 = vmatmul.mubr.f32.gmra.mrb[0].mxu0 %v206
        %v301 = vpop.f32.mrb[0].mxu0
        %v302 = vadd.f32 %v190, %v301
        %v303 = vpop.f32.mrb[0].mxu0
        %304 = vmatprep.mubr.f32.mxu0 0.0
        %305 = vmatmul.mubr.f32.gmra.mrb[0].mxu0 %v209
        %v306 = vpop.f32.mrb[0].mxu0
        %v307 = vadd.f32 %v191, %v306
        %v308 = vpop.f32.mrb[0].mxu0
        %309 = vmatprep.mubr.f32.mxu0 0.0
        %310 = vmatmul.mubr.f32.gmra.mrb[0].mxu0 %v212
        %v311 = vpop.f32.mrb[0].mxu0
        %v312 = vadd.f32 %v192, %v311
        %v313 = vpop.f32.mrb[0].mxu0
        %314 = vmatprep.mubr.f32.mxu0 0.0
        %315 = vmatmul.mubr.f32.gmra.mrb[0].mxu0 %v215
        %v316 = vpop.f32.mrb[0].mxu0
        %v317 = vadd.f32 %v193, %v316
        %v318 = vpop.f32.mrb[0].mxu0
        %319 = vmatprep.mubr.f32.mxu0 0.0
        %320 = vmatmul.mubr.f32.gmra.mrb[0].mxu0 %v218
        %v321 = vpop.f32.mrb[0].mxu0
        %v322 = vadd.f32 %v194, %v321
        %v323 = vpop.f32.mrb[0].mxu0
        %324 = vdwg.mxu0
        %vm325 = vcmask 261120
        %326 = vst.msk [vmem:[%s164] sm:$0xff] %vm325, %v287
        %327 = vst.msk [vmem:[%s164 + $0x8] sm:$0xff] %vm325, %v292
        %328 = vst.msk [vmem:[%s164 + $0x10] sm:$0xff] %vm325, %v297
        %329 = vst.msk [vmem:[%s164 + $0x18] sm:$0xff] %vm325, %v302
        %330 = vst.msk [vmem:[%s164 + $0x20] sm:$0xff] %vm325, %v307
        %331 = vst.msk [vmem:[%s164 + $0x28] sm:$0xff] %vm325, %v312
        %332 = vst.msk [vmem:[%s164 + $0x30] sm:$0xff] %vm325, %v317
        %333 = vst.msk [vmem:[%s164 + $0x38] sm:$0xff] %vm325, %v322
        %s334 = sand.u32 %s93, 1
        %s335 = scalar_lea.sflag [#allocation3], %s334
        %s336 = sand.u32 %s93, 1
        %s337 = smul.addr %s336, 64
        %s338 = scalar_lea.vmem [#allocation2], %s337
        // Predicated region
        $region33: #{input_embedder_forward.5} parent=31 // pred_check
          %p339 = pneg %p103
        $region34: #{input_embedder_forward.5} parent=31 // pred_check_branch
          %341 = sbr.rel (%p339) target = $region36
        $region35: #{input_embedder_forward.5} parent=31 // pred_region
          %s342 = smul.u32 8, %s17
          %s344 = ssub.s32 1024, 1024
          %345 = vsyncadd %s335, %s344
          %s346 = smul.addr %s342, 128
          %s347 = scalar_lea.hbm %s3, %s346
          %s348 = sshll.u32 %s338, 4
          %s349 = int_to_ptr.vmem [resolvable:$true] %s348
          %354 = dma.vmem_to_hbm [thread:$0]  %s349, 1024, %s347, %s335, 128, 128, 8
        $region36: #{input_embedder_forward.5} parent=31 // pred_fallthru
          _
      $region32: #{input_embedder_forward.5} parent=5 // pred_fallthru
        _
      %p355 = scmp.le.s32.totalorder 2, %s12
      // Predicated region
      $region37: #{input_embedder_forward.5} parent=5 // pred_check
        %p356 = pneg %p355
      $region38: #{input_embedder_forward.5} parent=5 // pred_check_branch
        %358 = sbr.rel (%p356) target = $region40
      $region39: #{input_embedder_forward.5} parent=5 // pred_region
        %s359 = ssub.s32 %s12, 2
        // Predicated region
        $region41: #{input_embedder_forward.5} parent=39 // pred_check
          %p360 = pneg %p109
        $region42: #{input_embedder_forward.5} parent=39 // pred_check_branch
          %362 = sbr.rel (%p360) target = $region44
        $region43: #{input_embedder_forward.5} parent=39 // pred_region
          %s363 = sand.u32 %s94, 1
          %s364 = scalar_lea.sflag [#allocation3], %s363
          %s365 = sand.u32 %s94, 1
          %s366 = smul.addr %s365, 64
          %s367 = scalar_lea.vmem [#allocation2], %s366
          %368 = dma.done %s364, 1024
        $region44: #{input_embedder_forward.5} parent=39 // pred_fallthru
          _
      $region40: #{input_embedder_forward.5} parent=5 // pred_fallthru
        _
    $region6: #{input_embedder_forward.5} parent=1 // loop_footer
      %s16 = sadd.s32 1, %s12
    $region7: #{input_embedder_forward.5} parent=1 // loop_footer_branch
      %11 = sbr.rel target = $region3
    $region8: #{input_embedder_forward.5} parent=1 // loop_exit
      _
    %369 = vsyncpa [#allocation3], 1
    %s370 = scalar_lea.sflag [#allocation3], 1
    %371 = vsyncpa %s370, 1

</llo_original>
